<compile_context>
chip_gen: v7x
topology: tpu7x:2x2x1
jax: 0.10.0
libtpu: 0.0.40
codegen_flags: <defaults>
</compile_context>

<pallas_src>
import functools

import numpy as np
import jax
import jax.numpy as jnp
from jax.experimental import pallas as pl
from jax.experimental.pallas import tpu as pltpu

_VMEM_LIMIT = 48 * 1024 * 1024  # under v7x 64 MiB physical, above v5e 16 MiB scoped default


# ----------------------------------------------------------------------------
# Deterministic interpolation "parameters" (align_corners=True linear resize)
# ----------------------------------------------------------------------------
def interp_matrix(out_size: int, in_size: int) -> jnp.ndarray:
    """A[out, in] so that y = A @ x is 1-D linear resize with align_corners=True."""
    A = np.zeros((out_size, in_size), dtype=np.float32)
    if out_size == 1:
        src = np.zeros((1,), dtype=np.float64)
    else:
        src = np.arange(out_size, dtype=np.float64) * (in_size - 1) / (out_size - 1)
    i0 = np.clip(np.floor(src).astype(np.int64), 0, in_size - 1)
    i1 = np.minimum(i0 + 1, in_size - 1)
    w1 = (src - i0).astype(np.float32)
    w0 = 1.0 - w1
    rows = np.arange(out_size)
    np.add.at(A, (rows, i0), w0)
    np.add.at(A, (rows, i1), w1)
    return jnp.asarray(A)


def _linear_taps(out_size: int, in_size: int):
    """Static 2-tap (index, weight) pairs for align_corners=True linear resize."""
    if out_size == 1:
        src = np.zeros((1,), dtype=np.float64)
    else:
        src = np.arange(out_size, dtype=np.float64) * (in_size - 1) / (out_size - 1)
    i0 = np.clip(np.floor(src).astype(np.int64), 0, in_size - 1)
    i1 = np.minimum(i0 + 1, in_size - 1)
    w1 = src - i0
    w0 = 1.0 - w1
    return ([int(v) for v in i0], [int(v) for v in i1],
            [float(v) for v in w0], [float(v) for v in w1])


# ----------------------------------------------------------------------------
# Kernel 1: fused trilinear resample + clip + per-volume sum / sumsq maps
# ----------------------------------------------------------------------------
def _make_resample_kernel(Din, Hin, Win, Dout, Hout, Wout, clip_window):
    d_i0, d_i1, d_w0, d_w1 = _linear_taps(Dout, Din)
    do_clip = clip_window is not None
    if do_clip:
        lo, hi = float(clip_window[0]), float(clip_window[1])

    def kernel(x_ref, ah_ref, aw_ref, y_ref, *stat_refs):
        # x_ref : (1, Din, Hin, Win)  -- whole input volume resident in VMEM
        # ah_ref: (Hout, Hin)   aw_ref: (Wout, Win)
        # y_ref : (1, Dout, Hout, Wout)
        ah = ah_ref[...]
        aw = aw_ref[...]
        if do_clip:
            s_acc = jnp.zeros((Hout, Wout), jnp.float32)
            q_acc = jnp.zeros((Hout, Wout), jnp.float32)
        # TODO(synk): for very large Dout, switch this static unroll to a
        # lax.fori_loop with SMEM-resident tap indices/weights (and tile the
        # grid over D-blocks so a huge volume also fits v7x's 64 MiB VMEM).
        for dp in range(Dout):
            # D axis: 2-tap gather + lerp (interp matrix has 2 nonzeros/row).
            x0 = x_ref[0, d_i0[dp]]                              # (Hin, Win)
            x1 = x_ref[0, d_i1[dp]]
            xs = d_w0[dp] * x0 + d_w1[dp] * x1
            # H axis: Ah @ xs  -> (Hout, Win)
            t = jax.lax.dot_general(ah, xs, (((1,), (0,)), ((), ())),
                                    preferred_element_type=jnp.float32)
            # W axis: t @ Aw^T -> (Hout, Wout)
            y = jax.lax.dot_general(t, aw, (((1,), (1,)), ((), ())),
                                    preferred_element_type=jnp.float32)
            if do_clip:
                y = jnp.clip(y, lo, hi)
                s_acc = s_acc + y
                q_acc = q_acc + y * y
            y_ref[0, dp] = y
        if do_clip:
            s_ref, q_ref = stat_refs
            s_ref[0] = s_acc
            q_ref[0] = q_acc

    return kernel


def _resample_clip(x4, Dout, Hout, Wout, clip_window):
    NC, Din, Hin, Win = x4.shape
    Ah = interp_matrix(Hout, Hin)
    Aw = interp_matrix(Wout, Win)
    do_clip = clip_window is not None
    kernel = _make_resample_kernel(Din, Hin, Win, Dout, Hout, Wout, clip_window)

    y_shape = jax.ShapeDtypeStruct((NC, Dout, Hout, Wout), jnp.float32)
    y_spec = pl.BlockSpec((1, Dout, Hout, Wout), lambda nc: (nc, 0, 0, 0))
    if do_clip:
        stat_shape = jax.ShapeDtypeStruct((NC, Hout, Wout), jnp.float32)
        stat_spec = pl.BlockSpec((1, Hout, Wout), lambda nc: (nc, 0, 0))
        out_shape = (y_shape, stat_shape, stat_shape)
        out_specs = (y_spec, stat_spec, stat_spec)
    else:
        out_shape = y_shape
        out_specs = y_spec

    grid_spec = pltpu.PrefetchScalarGridSpec(
        num_scalar_prefetch=0,
        grid=(NC,),
        in_specs=[
            pl.BlockSpec((1, Din, Hin, Win), lambda nc: (nc, 0, 0, 0)),
            pl.BlockSpec((Hout, Hin), lambda nc: (0, 0)),
            pl.BlockSpec((Wout, Win), lambda nc: (0, 0)),
        ],
        out_specs=out_specs,
    )
    return pl.pallas_call(
        kernel,
        out_shape=out_shape,
        grid_spec=grid_spec,
        compiler_params=pltpu.CompilerParams(
            dimension_semantics=("parallel",),
            vmem_limit_bytes=_VMEM_LIMIT),
    )(x4, Ah, Aw)


# ----------------------------------------------------------------------------
# Kernel 2: tiled global (x - mean) / (eps + std) normalization
# ----------------------------------------------------------------------------
def _make_normalize_kernel(n_elems, eps=1e-5):
    n = float(n_elems)

    def kernel(s_ref, q_ref, y_ref, o_ref):
        total = jnp.sum(s_ref[...])
        total_sq = jnp.sum(q_ref[...])
        mean = total / n
        var = (total_sq - total * mean) / (n - 1.0)   # unbiased, torch.std default
        std = jnp.sqrt(jnp.maximum(var, 0.0))
        o_ref[...] = (y_ref[...] - mean) / (eps + std)

    return kernel


def _normalize(y, s_map, q_map):
    NC, Dout, Hout, Wout = y.shape
    kernel = _make_normalize_kernel(NC * Dout * Hout * Wout)
    grid_spec = pltpu.PrefetchScalarGridSpec(
        num_scalar_prefetch=0,
        grid=(NC, Dout),
        in_specs=[
            pl.BlockSpec((NC, Hout, Wout), lambda nc, d: (0, 0, 0)),   # resident
            pl.BlockSpec((NC, Hout, Wout), lambda nc, d: (0, 0, 0)),   # resident
            pl.BlockSpec((1, 1, Hout, Wout), lambda nc, d: (nc, d, 0, 0)),
        ],
        out_specs=pl.BlockSpec((1, 1, Hout, Wout), lambda nc, d: (nc, d, 0, 0)),
    )
    return pl.pallas_call(
        kernel,
        out_shape=jax.ShapeDtypeStruct(y.shape, jnp.float32),
        grid_spec=grid_spec,
        compiler_params=pltpu.CompilerParams(
            dimension_semantics=("parallel", "parallel"),
            vmem_limit_bytes=_VMEM_LIMIT),
    )(s_map, q_map, y)


# ----------------------------------------------------------------------------
# Forward pass of the `Input` module
# ----------------------------------------------------------------------------
def input_forward(x, input_size, clip_window=None):
    """x: (N, C, Din, Hin, Win) float32 -> (N, C, Dout, Hout, Wout) float32."""
    N, C, Din, Hin, Win = x.shape
    Dout, Hout, Wout = input_size
    x4 = x.astype(jnp.float32).reshape(N * C, Din, Hin, Win)   # free (contiguous)
    if clip_window is not None:
        y, s_map, q_map = _resample_clip(x4, Dout, Hout, Wout, clip_window)
        y = _normalize(y, s_map, q_map)
    else:
        y = _resample_clip(x4, Dout, Hout, Wout, None)
    return y.reshape(N, C, Dout, Hout, Wout)


# Pure-JAX reference (same interpolation matrices) to validate the Pallas path.
def _ref_forward(x, input_size, clip_window):
    Dout, Hout, Wout = input_size
    Ad = interp_matrix(Dout, x.shape[2])
    Ah = interp_matrix(Hout, x.shape[3])
    Aw = interp_matrix(Wout, x.shape[4])
    y = jnp.einsum('ncdhw,ed->ncehw', x.astype(jnp.float32), Ad)
    y = jnp.einsum('ncdhw,eh->ncdew', y, Ah)
    y = jnp.einsum('ncdhw,ew->ncdhe', y, Aw)
    if clip_window is not None:
        y = jnp.clip(y, clip_window[0], clip_window[1])
        mean = jnp.mean(y)
        std = jnp.std(y, ddof=1)
        y = (y - mean) / (1e-5 + std)
    return y


if __name__ == "__main__":
    input_size = (12, 10, 16)          # (Dout, Hout, Wout), small demo size
    clip_window = (-1200.0, 1200.0)

    key = jax.random.PRNGKey(0)
    x = jax.random.uniform(key, (2, 2, 8, 8, 8), dtype=jnp.float32,
                           minval=-2000.0, maxval=2000.0)

    fwd = jax.jit(functools.partial(input_forward,
                                    input_size=input_size,
                                    clip_window=clip_window))
    y = jax.block_until_ready(fwd(x))

    y_ref = jax.block_until_ready(_ref_forward(x, input_size, clip_window))
    assert y.shape == (2, 2) + input_size, y.shape
    assert np.allclose(np.asarray(y), np.asarray(y_ref), rtol=1e-4, atol=1e-4)

    print("KERNEL_OK")
</pallas_src>

<mosaic_0001>
module attributes {stable_mosaic.version = 11 : i64} {
  func.func @kernel(%arg0: i32, %arg1: i32, %arg2: memref<4x10x16xf32, #tpu.memory_space<vmem>>, %arg3: memref<4x10x16xf32, #tpu.memory_space<vmem>>, %arg4: memref<1x1x10x16xf32, #tpu.memory_space<vmem>>, %arg5: memref<1x1x10x16xf32, #tpu.memory_space<vmem>>) attributes {dimension_semantics = [#tpu.dimension_semantics<parallel>, #tpu.dimension_semantics<parallel>], iteration_bounds = array<i64: 4, 12>, scalar_prefetch = 0 : i64, scratch_operands = 0 : i64, tpu.core_type = #tpu.core_type<tc>, window_params = [{pipeline_mode = #tpu.pipeline_mode<synchronous>, transform_indices = @transform_0, window_bounds = array<i64: 4, 10, 16>}, {pipeline_mode = #tpu.pipeline_mode<synchronous>, transform_indices = @transform_1, window_bounds = array<i64: 4, 10, 16>}, {transform_indices = @transform_2, window_bounds = array<i64: 1, 1, 10, 16>}, {transform_indices = @transform_3, window_bounds = array<i64: 1, 1, 10, 16>}]} {
    %c0 = arith.constant 0 : index
    %c0_0 = arith.constant 0 : index
    %c0_1 = arith.constant 0 : index
    %0 = vector.load %arg2[%c0, %c0_0, %c0_1] : memref<4x10x16xf32, #tpu.memory_space<vmem>>, vector<4x10x16xf32>
    %1 = vector.shape_cast %0 : vector<4x10x16xf32> to vector<1x4x10x16xf32>
    %cst = arith.constant dense<0.000000e+00> : vector<1xf32>
    %2 = vector.multi_reduction <add>, %1, %cst [1, 2, 3] : vector<1x4x10x16xf32> to vector<1xf32>
    %3 = vector.shape_cast %2 : vector<1xf32> to vector<1x1x1x1xf32>
    %4 = vector.extract %3[0, 0, 0, 0] : f32 from vector<1x1x1x1xf32>
    %c0_2 = arith.constant 0 : index
    %c0_3 = arith.constant 0 : index
    %c0_4 = arith.constant 0 : index
    %5 = vector.load %arg3[%c0_2, %c0_3, %c0_4] : memref<4x10x16xf32, #tpu.memory_space<vmem>>, vector<4x10x16xf32>
    %6 = vector.shape_cast %5 : vector<4x10x16xf32> to vector<1x4x10x16xf32>
    %cst_5 = arith.constant dense<0.000000e+00> : vector<1xf32>
    %7 = vector.multi_reduction <add>, %6, %cst_5 [1, 2, 3] : vector<1x4x10x16xf32> to vector<1xf32>
    %8 = vector.shape_cast %7 : vector<1xf32> to vector<1x1x1x1xf32>
    %9 = vector.extract %8[0, 0, 0, 0] : f32 from vector<1x1x1x1xf32>
    %cst_6 = arith.constant 7.680000e+03 : f32
    %10 = arith.divf %4, %cst_6 : f32
    %11 = arith.mulf %4, %10 : f32
    %12 = arith.subf %9, %11 : f32
    %cst_7 = arith.constant 7.679000e+03 : f32
    %13 = arith.divf %12, %cst_7 : f32
    %cst_8 = arith.constant 0.000000e+00 : f32
    %14 = arith.maximumf %13, %cst_8 : f32
    %15 = math.sqrt %14 : f32
    %c0_9 = arith.constant 0 : index
    %c0_10 = arith.constant 0 : index
    %c0_11 = arith.constant 0 : index
    %c0_12 = arith.constant 0 : index
    %16 = vector.load %arg4[%c0_9, %c0_10, %c0_11, %c0_12] : memref<1x1x10x16xf32, #tpu.memory_space<vmem>>, vector<1x1x10x16xf32>
    %17 = vector.broadcast %10 : f32 to vector<1x1x10x16xf32>
    %18 = arith.subf %16, %17 : vector<1x1x10x16xf32>
    %cst_13 = arith.constant 9.99999974E-6 : f32
    %19 = arith.addf %cst_13, %15 : f32
    %20 = vector.broadcast %19 : f32 to vector<1x1x10x16xf32>
    %21 = arith.divf %18, %20 : vector<1x1x10x16xf32>
    %c0_14 = arith.constant 0 : index
    %c0_15 = arith.constant 0 : index
    %c0_16 = arith.constant 0 : index
    %c0_17 = arith.constant 0 : index
    %22 = vector.load %arg5[%c0_14, %c0_15, %c0_16, %c0_17] : memref<1x1x10x16xf32, #tpu.memory_space<vmem>>, vector<1x1x10x16xf32>
    tpu.vector_store %arg5[%c0_14, %c0_15, %c0_16, %c0_17], %21 {strides = array<i32>} : memref<1x1x10x16xf32, #tpu.memory_space<vmem>>, vector<1x1x10x16xf32>,
    return
  }
  func.func @transform_0(%arg0: i32, %arg1: i32) -> (i32, i32, i32) {
    %c0_i32 = arith.constant 0 : i32
    %c0_i32_0 = arith.constant 0 : i32
    %c0_i32_1 = arith.constant 0 : i32
    %c0_i32_2 = arith.constant 0 : i32
    return %c0_i32, %c0_i32_0, %c0_i32_1 : i32, i32, i32
  }
  func.func @transform_1(%arg0: i32, %arg1: i32) -> (i32, i32, i32) {
    %c0_i32 = arith.constant 0 : i32
    %c0_i32_0 = arith.constant 0 : i32
    %c0_i32_1 = arith.constant 0 : i32
    %c0_i32_2 = arith.constant 0 : i32
    return %c0_i32, %c0_i32_0, %c0_i32_1 : i32, i32, i32
  }
  func.func @transform_2(%arg0: i32, %arg1: i32) -> (i32, i32, i32, i32) {
    %c0_i32 = arith.constant 0 : i32
    %c0_i32_0 = arith.constant 0 : i32
    %c0_i32_1 = arith.constant 0 : i32
    return %arg0, %arg1, %c0_i32, %c0_i32_0 : i32, i32, i32, i32
  }
  func.func @transform_3(%arg0: i32, %arg1: i32) -> (i32, i32, i32, i32) {
    %c0_i32 = arith.constant 0 : i32
    %c0_i32_0 = arith.constant 0 : i32
    %c0_i32_1 = arith.constant 0 : i32
    return %arg0, %arg1, %c0_i32, %c0_i32_0 : i32, i32, i32, i32
  }
}

module attributes {stable_mosaic.version = 11 : i64} {
  func.func @kernel(%arg0: i32, %arg1: memref<1x8x8x8xf32, #tpu.memory_space<vmem>>, %arg2: memref<10x8xf32, #tpu.memory_space<vmem>>, %arg3: memref<16x8xf32, #tpu.memory_space<vmem>>, %arg4: memref<1x12x10x16xf32, #tpu.memory_space<vmem>>, %arg5: memref<1x10x16xf32, #tpu.memory_space<vmem>>, %arg6: memref<1x10x16xf32, #tpu.memory_space<vmem>>) attributes {dimension_semantics = [#tpu.dimension_semantics<parallel>], iteration_bounds = array<i64: 4>, scalar_prefetch = 0 : i64, scratch_operands = 0 : i64, tpu.core_type = #tpu.core_type<tc>, window_params = [{transform_indices = @transform_0, window_bounds = array<i64: 1, 8, 8, 8>}, {pipeline_mode = #tpu.pipeline_mode<synchronous>, transform_indices = @transform_1, window_bounds = array<i64: 10, 8>}, {pipeline_mode = #tpu.pipeline_mode<synchronous>, transform_indices = @transform_2, window_bounds = array<i64: 16, 8>}, {transform_indices = @transform_3, window_bounds = array<i64: 1, 12, 10, 16>}, {transform_indices = @transform_4, window_bounds = array<i64: 1, 10, 16>}, {transform_indices = @transform_5, window_bounds = array<i64: 1, 10, 16>}]} {
    %c0 = arith.constant 0 : index
    %c0_0 = arith.constant 0 : index
    %0 = vector.load %arg2[%c0, %c0_0] : memref<10x8xf32, #tpu.memory_space<vmem>>, vector<10x8xf32>
    %c0_1 = arith.constant 0 : index
    %c0_2 = arith.constant 0 : index
    %1 = vector.load %arg3[%c0_1, %c0_2] : memref<16x8xf32, #tpu.memory_space<vmem>>, vector<16x8xf32>
    %cst = arith.constant 0.000000e+00 : f32
    %2 = vector.broadcast %cst : f32 to vector<10x16xf32>
    %cst_3 = arith.constant 0.000000e+00 : f32
    %3 = vector.broadcast %cst_3 : f32 to vector<10x16xf32>
    %c0_4 = arith.constant 0 : index
    %c0_5 = arith.constant 0 : index
    %c0_6 = arith.constant 0 : index
    %c0_7 = arith.constant 0 : index
    %4 = vector.load %arg1[%c0_4, %c0_5, %c0_6, %c0_7] : memref<1x8x8x8xf32, #tpu.memory_space<vmem>>, vector<1x1x8x8xf32>
    %5 = vector.shape_cast %4 : vector<1x1x8x8xf32> to vector<8x8xf32>
    %c0_8 = arith.constant 0 : index
    %c1 = arith.constant 1 : index
    %c0_9 = arith.constant 0 : index
    %c0_10 = arith.constant 0 : index
    %6 = vector.load %arg1[%c0_8, %c1, %c0_9, %c0_10] : memref<1x8x8x8xf32, #tpu.memory_space<vmem>>, vector<1x1x8x8xf32>
    %7 = vector.shape_cast %6 : vector<1x1x8x8xf32> to vector<8x8xf32>
    %cst_11 = arith.constant 1.000000e+00 : f32
    %8 = vector.broadcast %cst_11 : f32 to vector<8x8xf32>
    %9 = arith.mulf %8, %5 : vector<8x8xf32>
    %cst_12 = arith.constant 0.000000e+00 : f32
    %10 = vector.broadcast %cst_12 : f32 to vector<8x8xf32>
    %11 = arith.mulf %10, %7 : vector<8x8xf32>
    %12 = arith.addf %9, %11 : vector<8x8xf32>
    %cst_13 = arith.constant dense<0.000000e+00> : vector<10x8xf32>
    %13 = tpu.matmul %0, %12, %cst_13 {dimension_numbers = #tpu.dot_dimension_numbers<[1], [0], [0], [1], [0, 0, 1, 1], [], []>} : vector<10x8xf32>, vector<8x8xf32>, vector<10x8xf32> -> vector<10x8xf32>
    %cst_14 = arith.constant dense<0.000000e+00> : vector<10x16xf32>
    %14 = tpu.matmul %13, %1, %cst_14 {dimension_numbers = #tpu.dot_dimension_numbers<[1], [1], [0], [0], [0, 0, 1, 0], [], []>} : vector<10x8xf32>, vector<16x8xf32>, vector<10x16xf32> -> vector<10x16xf32>
    %cst_15 = arith.constant -1.200000e+03 : f32
    %cst_16 = arith.constant 1.200000e+03 : f32
    %15 = vector.broadcast %cst_15 : f32 to vector<10x16xf32>
    %16 = arith.maximumf %15, %14 : vector<10x16xf32>
    %17 = vector.broadcast %cst_16 : f32 to vector<10x16xf32>
    %18 = arith.minimumf %17, %16 : vector<10x16xf32>
    %19 = arith.addf %2, %18 : vector<10x16xf32>
    %20 = arith.mulf %18, %18 : vector<10x16xf32>
    %21 = arith.addf %3, %20 : vector<10x16xf32>
    %c0_17 = arith.constant 0 : index
    %c0_18 = arith.constant 0 : index
    %c0_19 = arith.constant 0 : index
    %c0_20 = arith.constant 0 : index
    %22 = vector.load %arg4[%c0_17, %c0_18, %c0_19, %c0_20] : memref<1x12x10x16xf32, #tpu.memory_space<vmem>>, vector<1x1x10x16xf32>
    %23 = vector.shape_cast %22 : vector<1x1x10x16xf32> to vector<10x16xf32>
    %24 = vector.shape_cast %18 : vector<10x16xf32> to vector<1x1x10x16xf32>
    tpu.vector_store %arg4[%c0_17, %c0_18, %c0_19, %c0_20], %24 {strides = array<i32>} : memref<1x12x10x16xf32, #tpu.memory_space<vmem>>, vector<1x1x10x16xf32>,
    %c0_21 = arith.constant 0 : index
    %c0_22 = arith.constant 0 : index
    %c0_23 = arith.constant 0 : index
    %c0_24 = arith.constant 0 : index
    %25 = vector.load %arg1[%c0_21, %c0_22, %c0_23, %c0_24] : memref<1x8x8x8xf32, #tpu.memory_space<vmem>>, vector<1x1x8x8xf32>
    %26 = vector.shape_cast %25 : vector<1x1x8x8xf32> to vector<8x8xf32>
    %c0_25 = arith.constant 0 : index
    %c1_26 = arith.constant 1 : index
    %c0_27 = arith.constant 0 : index
    %c0_28 = arith.constant 0 : index
    %27 = vector.load %arg1[%c0_25, %c1_26, %c0_27, %c0_28] : memref<1x8x8x8xf32, #tpu.memory_space<vmem>>, vector<1x1x8x8xf32>
    %28 = vector.shape_cast %27 : vector<1x1x8x8xf32> to vector<8x8xf32>
    %cst_29 = arith.constant 0.363636374 : f32
    %29 = vector.broadcast %cst_29 : f32 to vector<8x8xf32>
    %30 = arith.mulf %29, %26 : vector<8x8xf32>
    %cst_30 = arith.constant 0.636363626 : f32
    %31 = vector.broadcast %cst_30 : f32 to vector<8x8xf32>
    %32 = arith.mulf %31, %28 : vector<8x8xf32>
    %33 = arith.addf %30, %32 : vector<8x8xf32>
    %cst_31 = arith.constant dense<0.000000e+00> : vector<10x8xf32>
    %34 = tpu.matmul %0, %33, %cst_31 {dimension_numbers = #tpu.dot_dimension_numbers<[1], [0], [0], [1], [0, 0, 1, 1], [], []>} : vector<10x8xf32>, vector<8x8xf32>, vector<10x8xf32> -> vector<10x8xf32>
    %cst_32 = arith.constant dense<0.000000e+00> : vector<10x16xf32>
    %35 = tpu.matmul %34, %1, %cst_32 {dimension_numbers = #tpu.dot_dimension_numbers<[1], [1], [0], [0], [0, 0, 1, 0], [], []>} : vector<10x8xf32>, vector<16x8xf32>, vector<10x16xf32> -> vector<10x16xf32>
    %cst_33 = arith.constant -1.200000e+03 : f32
    %cst_34 = arith.constant 1.200000e+03 : f32
    %36 = vector.broadcast %cst_33 : f32 to vector<10x16xf32>
    %37 = arith.maximumf %36, %35 : vector<10x16xf32>
    %38 = vector.broadcast %cst_34 : f32 to vector<10x16xf32>
    %39 = arith.minimumf %38, %37 : vector<10x16xf32>
    %40 = arith.addf %19, %39 : vector<10x16xf32>
    %41 = arith.mulf %39, %39 : vector<10x16xf32>
    %42 = arith.addf %21, %41 : vector<10x16xf32>
    %c0_35 = arith.constant 0 : index
    %c1_36 = arith.constant 1 : index
    %c0_37 = arith.constant 0 : index
    %c0_38 = arith.constant 0 : index
    %43 = vector.load %arg4[%c0_35, %c1_36, %c0_37, %c0_38] : memref<1x12x10x16xf32, #tpu.memory_space<vmem>>, vector<1x1x10x16xf32>
    %44 = vector.shape_cast %43 : vector<1x1x10x16xf32> to vector<10x16xf32>
    %45 = vector.shape_cast %39 : vector<10x16xf32> to vector<1x1x10x16xf32>
    tpu.vector_store %arg4[%c0_35, %c1_36, %c0_37, %c0_38], %45 {strides = array<i32>} : memref<1x12x10x16xf32, #tpu.memory_space<vmem>>, vector<1x1x10x16xf32>,
    %c0_39 = arith.constant 0 : index
    %c1_40 = arith.constant 1 : index
    %c0_41 = arith.constant 0 : index
    %c0_42 = arith.constant 0 : index
    %46 = vector.load %arg1[%c0_39, %c1_40, %c0_41, %c0_42] : memref<1x8x8x8xf32, #tpu.memory_space<vmem>>, vector<1x1x8x8xf32>
    %47 = vector.shape_cast %46 : vector<1x1x8x8xf32> to vector<8x8xf32>
    %c0_43 = arith.constant 0 : index
    %c2 = arith.constant 2 : index
    %c0_44 = arith.constant 0 : index
    %c0_45 = arith.constant 0 : index
    %48 = vector.load %arg1[%c0_43, %c2, %c0_44, %c0_45] : memref<1x8x8x8xf32, #tpu.memory_space<vmem>>, vector<1x1x8x8xf32>
    %49 = vector.shape_cast %48 : vector<1x1x8x8xf32> to vector<8x8xf32>
    %cst_46 = arith.constant 0.727272749 : f32
    %50 = vector.broadcast %cst_46 : f32 to vector<8x8xf32>
    %51 = arith.mulf %50, %47 : vector<8x8xf32>
    %cst_47 = arith.constant 0.272727281 : f32
    %52 = vector.broadcast %cst_47 : f32 to vector<8x8xf32>
    %53 = arith.mulf %52, %49 : vector<8x8xf32>
    %54 = arith.addf %51, %53 : vector<8x8xf32>
    %cst_48 = arith.constant dense<0.000000e+00> : vector<10x8xf32>
    %55 = tpu.matmul %0, %54, %cst_48 {dimension_numbers = #tpu.dot_dimension_numbers<[1], [0], [0], [1], [0, 0, 1, 1], [], []>} : vector<10x8xf32>, vector<8x8xf32>, vector<10x8xf32> -> vector<10x8xf32>
    %cst_49 = arith.constant dense<0.000000e+00> : vector<10x16xf32>
    %56 = tpu.matmul %55, %1, %cst_49 {dimension_numbers = #tpu.dot_dimension_numbers<[1], [1], [0], [0], [0, 0, 1, 0], [], []>} : vector<10x8xf32>, vector<16x8xf32>, vector<10x16xf32> -> vector<10x16xf32>
    %cst_50 = arith.constant -1.200000e+03 : f32
    %cst_51 = arith.constant 1.200000e+03 : f32
    %57 = vector.broadcast %cst_50 : f32 to vector<10x16xf32>
    %58 = arith.maximumf %57, %56 : vector<10x16xf32>
    %59 = vector.broadcast %cst_51 : f32 to vector<10x16xf32>
    %60 = arith.minimumf %59, %58 : vector<10x16xf32>
    %61 = arith.addf %40, %60 : vector<10x16xf32>
    %62 = arith.mulf %60, %60 : vector<10x16xf32>
    %63 = arith.addf %42, %62 : vector<10x16xf32>
    %c0_52 = arith.constant 0 : index
    %c2_53 = arith.constant 2 : index
    %c0_54 = arith.constant 0 : index
    %c0_55 = arith.constant 0 : index
    %64 = vector.load %arg4[%c0_52, %c2_53, %c0_54, %c0_55] : memref<1x12x10x16xf32, #tpu.memory_space<vmem>>, vector<1x1x10x16xf32>
    %65 = vector.shape_cast %64 : vector<1x1x10x16xf32> to vector<10x16xf32>
    %66 = vector.shape_cast %60 : vector<10x16xf32> to vector<1x1x10x16xf32>
    tpu.vector_store %arg4[%c0_52, %c2_53, %c0_54, %c0_55], %66 {strides = array<i32>} : memref<1x12x10x16xf32, #tpu.memory_space<vmem>>, vector<1x1x10x16xf32>,
    %c0_56 = arith.constant 0 : index
    %c1_57 = arith.constant 1 : index
    %c0_58 = arith.constant 0 : index
    %c0_59 = arith.constant 0 : index
    %67 = vector.load %arg1[%c0_56, %c1_57, %c0_58, %c0_59] : memref<1x8x8x8xf32, #tpu.memory_space<vmem>>, vector<1x1x8x8xf32>
    %68 = vector.shape_cast %67 : vector<1x1x8x8xf32> to vector<8x8xf32>
    %c0_60 = arith.constant 0 : index
    %c2_61 = arith.constant 2 : index
    %c0_62 = arith.constant 0 : index
    %c0_63 = arith.constant 0 : index
    %69 = vector.load %arg1[%c0_60, %c2_61, %c0_62, %c0_63] : memref<1x8x8x8xf32, #tpu.memory_space<vmem>>, vector<1x1x8x8xf32>
    %70 = vector.shape_cast %69 : vector<1x1x8x8xf32> to vector<8x8xf32>
    %cst_64 = arith.constant 0.0909090936 : f32
    %71 = vector.broadcast %cst_64 : f32 to vector<8x8xf32>
    %72 = arith.mulf %71, %68 : vector<8x8xf32>
    %cst_65 = arith.constant 0.909090936 : f32
    %73 = vector.broadcast %cst_65 : f32 to vector<8x8xf32>
    %74 = arith.mulf %73, %70 : vector<8x8xf32>
    %75 = arith.addf %72, %74 : vector<8x8xf32>
    %cst_66 = arith.constant dense<0.000000e+00> : vector<10x8xf32>
    %76 = tpu.matmul %0, %75, %cst_66 {dimension_numbers = #tpu.dot_dimension_numbers<[1], [0], [0], [1], [0, 0, 1, 1], [], []>} : vector<10x8xf32>, vector<8x8xf32>, vector<10x8xf32> -> vector<10x8xf32>
    %cst_67 = arith.constant dense<0.000000e+00> : vector<10x16xf32>
    %77 = tpu.matmul %76, %1, %cst_67 {dimension_numbers = #tpu.dot_dimension_numbers<[1], [1], [0], [0], [0, 0, 1, 0], [], []>} : vector<10x8xf32>, vector<16x8xf32>, vector<10x16xf32> -> vector<10x16xf32>
    %cst_68 = arith.constant -1.200000e+03 : f32
    %cst_69 = arith.constant 1.200000e+03 : f32
    %78 = vector.broadcast %cst_68 : f32 to vector<10x16xf32>
    %79 = arith.maximumf %78, %77 : vector<10x16xf32>
    %80 = vector.broadcast %cst_69 : f32 to vector<10x16xf32>
    %81 = arith.minimumf %80, %79 : vector<10x16xf32>
    %82 = arith.addf %61, %81 : vector<10x16xf32>
    %83 = arith.mulf %81, %81 : vector<10x16xf32>
    %84 = arith.addf %63, %83 : vector<10x16xf32>
    %c0_70 = arith.constant 0 : index
    %c3 = arith.constant 3 : index
    %c0_71 = arith.constant 0 : index
    %c0_72 = arith.constant 0 : index
    %85 = vector.load %arg4[%c0_70, %c3, %c0_71, %c0_72] : memref<1x12x10x16xf32, #tpu.memory_space<vmem>>, vector<1x1x10x16xf32>
    %86 = vector.shape_cast %85 : vector<1x1x10x16xf32> to vector<10x16xf32>
    %87 = vector.shape_cast %81 : vector<10x16xf32> to vector<1x1x10x16xf32>
    tpu.vector_store %arg4[%c0_70, %c3, %c0_71, %c0_72], %87 {strides = array<i32>} : memref<1x12x10x16xf32, #tpu.memory_space<vmem>>, vector<1x1x10x16xf32>,
    %c0_73 = arith.constant 0 : index
    %c2_74 = arith.constant 2 : index
    %c0_75 = arith.constant 0 : index
    %c0_76 = arith.constant 0 : index
    %88 = vector.load %arg1[%c0_73, %c2_74, %c0_75, %c0_76] : memref<1x8x8x8xf32, #tpu.memory_space<vmem>>, vector<1x1x8x8xf32>
    %89 = vector.shape_cast %88 : vector<1x1x8x8xf32> to vector<8x8xf32>
    %c0_77 = arith.constant 0 : index
    %c3_78 = arith.constant 3 : index
    %c0_79 = arith.constant 0 : index
    %c0_80 = arith.constant 0 : index
    %90 = vector.load %arg1[%c0_77, %c3_78, %c0_79, %c0_80] : memref<1x8x8x8xf32, #tpu.memory_space<vmem>>, vector<1x1x8x8xf32>
    %91 = vector.shape_cast %90 : vector<1x1x8x8xf32> to vector<8x8xf32>
    %cst_81 = arith.constant 0.454545468 : f32
    %92 = vector.broadcast %cst_81 : f32 to vector<8x8xf32>
    %93 = arith.mulf %92, %89 : vector<8x8xf32>
    %cst_82 = arith.constant 0.545454562 : f32
    %94 = vector.broadcast %cst_82 : f32 to vector<8x8xf32>
    %95 = arith.mulf %94, %91 : vector<8x8xf32>
    %96 = arith.addf %93, %95 : vector<8x8xf32>
    %cst_83 = arith.constant dense<0.000000e+00> : vector<10x8xf32>
    %97 = tpu.matmul %0, %96, %cst_83 {dimension_numbers = #tpu.dot_dimension_numbers<[1], [0], [0], [1], [0, 0, 1, 1], [], []>} : vector<10x8xf32>, vector<8x8xf32>, vector<10x8xf32> -> vector<10x8xf32>
    %cst_84 = arith.constant dense<0.000000e+00> : vector<10x16xf32>
    %98 = tpu.matmul %97, %1, %cst_84 {dimension_numbers = #tpu.dot_dimension_numbers<[1], [1], [0], [0], [0, 0, 1, 0], [], []>} : vector<10x8xf32>, vector<16x8xf32>, vector<10x16xf32> -> vector<10x16xf32>
    %cst_85 = arith.constant -1.200000e+03 : f32
    %cst_86 = arith.constant 1.200000e+03 : f32
    %99 = vector.broadcast %cst_85 : f32 to vector<10x16xf32>
    %100 = arith.maximumf %99, %98 : vector<10x16xf32>
    %101 = vector.broadcast %cst_86 : f32 to vector<10x16xf32>
    %102 = arith.minimumf %101, %100 : vector<10x16xf32>
    %103 = arith.addf %82, %102 : vector<10x16xf32>
    %104 = arith.mulf %102, %102 : vector<10x16xf32>
    %105 = arith.addf %84, %104 : vector<10x16xf32>
    %c0_87 = arith.constant 0 : index
    %c4 = arith.constant 4 : index
    %c0_88 = arith.constant 0 : index
    %c0_89 = arith.constant 0 : index
    %106 = vector.load %arg4[%c0_87, %c4, %c0_88, %c0_89] : memref<1x12x10x16xf32, #tpu.memory_space<vmem>>, vector<1x1x10x16xf32>
    %107 = vector.shape_cast %106 : vector<1x1x10x16xf32> to vector<10x16xf32>
    %108 = vector.shape_cast %102 : vector<10x16xf32> to vector<1x1x10x16xf32>
    tpu.vector_store %arg4[%c0_87, %c4, %c0_88, %c0_89], %108 {strides = array<i32>} : memref<1x12x10x16xf32, #tpu.memory_space<vmem>>, vector<1x1x10x16xf32>,
    %c0_90 = arith.constant 0 : index
    %c3_91 = arith.constant 3 : index
    %c0_92 = arith.constant 0 : index
    %c0_93 = arith.constant 0 : index
    %109 = vector.load %arg1[%c0_90, %c3_91, %c0_92, %c0_93] : memref<1x8x8x8xf32, #tpu.memory_space<vmem>>, vector<1x1x8x8xf32>
    %110 = vector.shape_cast %109 : vector<1x1x8x8xf32> to vector<8x8xf32>
    %c0_94 = arith.constant 0 : index
    %c4_95 = arith.constant 4 : index
    %c0_96 = arith.constant 0 : index
    %c0_97 = arith.constant 0 : index
    %111 = vector.load %arg1[%c0_94, %c4_95, %c0_96, %c0_97] : memref<1x8x8x8xf32, #tpu.memory_space<vmem>>, vector<1x1x8x8xf32>
    %112 = vector.shape_cast %111 : vector<1x1x8x8xf32> to vector<8x8xf32>
    %cst_98 = arith.constant 0.818181812 : f32
    %113 = vector.broadcast %cst_98 : f32 to vector<8x8xf32>
    %114 = arith.mulf %113, %110 : vector<8x8xf32>
    %cst_99 = arith.constant 0.181818187 : f32
    %115 = vector.broadcast %cst_99 : f32 to vector<8x8xf32>
    %116 = arith.mulf %115, %112 : vector<8x8xf32>
    %117 = arith.addf %114, %116 : vector<8x8xf32>
    %cst_100 = arith.constant dense<0.000000e+00> : vector<10x8xf32>
    %118 = tpu.matmul %0, %117, %cst_100 {dimension_numbers = #tpu.dot_dimension_numbers<[1], [0], [0], [1], [0, 0, 1, 1], [], []>} : vector<10x8xf32>, vector<8x8xf32>, vector<10x8xf32> -> vector<10x8xf32>
    %cst_101 = arith.constant dense<0.000000e+00> : vector<10x16xf32>
    %119 = tpu.matmul %118, %1, %cst_101 {dimension_numbers = #tpu.dot_dimension_numbers<[1], [1], [0], [0], [0, 0, 1, 0], [], []>} : vector<10x8xf32>, vector<16x8xf32>, vector<10x16xf32> -> vector<10x16xf32>
    %cst_102 = arith.constant -1.200000e+03 : f32
    %cst_103 = arith.constant 1.200000e+03 : f32
    %120 = vector.broadcast %cst_102 : f32 to vector<10x16xf32>
    %121 = arith.maximumf %120, %119 : vector<10x16xf32>
    %122 = vector.broadcast %cst_103 : f32 to vector<10x16xf32>
    %123 = arith.minimumf %122, %121 : vector<10x16xf32>
    %124 = arith.addf %103, %123 : vector<10x16xf32>
    %125 = arith.mulf %123, %123 : vector<10x16xf32>
    %126 = arith.addf %105, %125 : vector<10x16xf32>
    %c0_104 = arith.constant 0 : index
    %c5 = arith.constant 5 : index
    %c0_105 = arith.constant 0 : index
    %c0_106 = arith.constant 0 : index
    %127 = vector.load %arg4[%c0_104, %c5, %c0_105, %c0_106] : memref<1x12x10x16xf32, #tpu.memory_space<vmem>>, vector<1x1x10x16xf32>
    %128 = vector.shape_cast %127 : vector<1x1x10x16xf32> to vector<10x16xf32>
    %129 = vector.shape_cast %123 : vector<10x16xf32> to vector<1x1x10x16xf32>
    tpu.vector_store %arg4[%c0_104, %c5, %c0_105, %c0_106], %129 {strides = array<i32>} : memref<1x12x10x16xf32, #tpu.memory_space<vmem>>, vector<1x1x10x16xf32>,
    %c0_107 = arith.constant 0 : index
    %c3_108 = arith.constant 3 : index
    %c0_109 = arith.constant 0 : index
    %c0_110 = arith.constant 0 : index
    %130 = vector.load %arg1[%c0_107, %c3_108, %c0_109, %c0_110] : memref<1x8x8x8xf32, #tpu.memory_space<vmem>>, vector<1x1x8x8xf32>
    %131 = vector.shape_cast %130 : vector<1x1x8x8xf32> to vector<8x8xf32>
    %c0_111 = arith.constant 0 : index
    %c4_112 = arith.constant 4 : index
    %c0_113 = arith.constant 0 : index
    %c0_114 = arith.constant 0 : index
    %132 = vector.load %arg1[%c0_111, %c4_112, %c0_113, %c0_114] : memref<1x8x8x8xf32, #tpu.memory_space<vmem>>, vector<1x1x8x8xf32>
    %133 = vector.shape_cast %132 : vector<1x1x8x8xf32> to vector<8x8xf32>
    %cst_115 = arith.constant 0.181818187 : f32
    %134 = vector.broadcast %cst_115 : f32 to vector<8x8xf32>
    %135 = arith.mulf %134, %131 : vector<8x8xf32>
    %cst_116 = arith.constant 0.818181812 : f32
    %136 = vector.broadcast %cst_116 : f32 to vector<8x8xf32>
    %137 = arith.mulf %136, %133 : vector<8x8xf32>
    %138 = arith.addf %135, %137 : vector<8x8xf32>
    %cst_117 = arith.constant dense<0.000000e+00> : vector<10x8xf32>
    %139 = tpu.matmul %0, %138, %cst_117 {dimension_numbers = #tpu.dot_dimension_numbers<[1], [0], [0], [1], [0, 0, 1, 1], [], []>} : vector<10x8xf32>, vector<8x8xf32>, vector<10x8xf32> -> vector<10x8xf32>
    %cst_118 = arith.constant dense<0.000000e+00> : vector<10x16xf32>
    %140 = tpu.matmul %139, %1, %cst_118 {dimension_numbers = #tpu.dot_dimension_numbers<[1], [1], [0], [0], [0, 0, 1, 0], [], []>} : vector<10x8xf32>, vector<16x8xf32>, vector<10x16xf32> -> vector<10x16xf32>
    %cst_119 = arith.constant -1.200000e+03 : f32
    %cst_120 = arith.constant 1.200000e+03 : f32
    %141 = vector.broadcast %cst_119 : f32 to vector<10x16xf32>
    %142 = arith.maximumf %141, %140 : vector<10x16xf32>
    %143 = vector.broadcast %cst_120 : f32 to vector<10x16xf32>
    %144 = arith.minimumf %143, %142 : vector<10x16xf32>
    %145 = arith.addf %124, %144 : vector<10x16xf32>
    %146 = arith.mulf %144, %144 : vector<10x16xf32>
    %147 = arith.addf %126, %146 : vector<10x16xf32>
    %c0_121 = arith.constant 0 : index
    %c6 = arith.constant 6 : index
    %c0_122 = arith.constant 0 : index
    %c0_123 = arith.constant 0 : index
    %148 = vector.load %arg4[%c0_121, %c6, %c0_122, %c0_123] : memref<1x12x10x16xf32, #tpu.memory_space<vmem>>, vector<1x1x10x16xf32>
    %149 = vector.shape_cast %148 : vector<1x1x10x16xf32> to vector<10x16xf32>
    %150 = vector.shape_cast %144 : vector<10x16xf32> to vector<1x1x10x16xf32>
    tpu.vector_store %arg4[%c0_121, %c6, %c0_122, %c0_123], %150 {strides = array<i32>} : memref<1x12x10x16xf32, #tpu.memory_space<vmem>>, vector<1x1x10x16xf32>,
    %c0_124 = arith.constant 0 : index
    %c4_125 = arith.constant 4 : index
    %c0_126 = arith.constant 0 : index
    %c0_127 = arith.constant 0 : index
    %151 = vector.load %arg1[%c0_124, %c4_125, %c0_126, %c0_127] : memref<1x8x8x8xf32, #tpu.memory_space<vmem>>, vector<1x1x8x8xf32>
    %152 = vector.shape_cast %151 : vector<1x1x8x8xf32> to vector<8x8xf32>
    %c0_128 = arith.constant 0 : index
    %c5_129 = arith.constant 5 : index
    %c0_130 = arith.constant 0 : index
    %c0_131 = arith.constant 0 : index
    %153 = vector.load %arg1[%c0_128, %c5_129, %c0_130, %c0_131] : memref<1x8x8x8xf32, #tpu.memory_space<vmem>>, vector<1x1x8x8xf32>
    %154 = vector.shape_cast %153 : vector<1x1x8x8xf32> to vector<8x8xf32>
    %cst_132 = arith.constant 0.545454562 : f32
    %155 = vector.broadcast %cst_132 : f32 to vector<8x8xf32>
    %156 = arith.mulf %155, %152 : vector<8x8xf32>
    %cst_133 = arith.constant 0.454545468 : f32
    %157 = vector.broadcast %cst_133 : f32 to vector<8x8xf32>
    %158 = arith.mulf %157, %154 : vector<8x8xf32>
    %159 = arith.addf %156, %158 : vector<8x8xf32>
    %cst_134 = arith.constant dense<0.000000e+00> : vector<10x8xf32>
    %160 = tpu.matmul %0, %159, %cst_134 {dimension_numbers = #tpu.dot_dimension_numbers<[1], [0], [0], [1], [0, 0, 1, 1], [], []>} : vector<10x8xf32>, vector<8x8xf32>, vector<10x8xf32> -> vector<10x8xf32>
    %cst_135 = arith.constant dense<0.000000e+00> : vector<10x16xf32>
    %161 = tpu.matmul %160, %1, %cst_135 {dimension_numbers = #tpu.dot_dimension_numbers<[1], [1], [0], [0], [0, 0, 1, 0], [], []>} : vector<10x8xf32>, vector<16x8xf32>, vector<10x16xf32> -> vector<10x16xf32>
    %cst_136 = arith.constant -1.200000e+03 : f32
    %cst_137 = arith.constant 1.200000e+03 : f32
    %162 = vector.broadcast %cst_136 : f32 to vector<10x16xf32>
    %163 = arith.maximumf %162, %161 : vector<10x16xf32>
    %164 = vector.broadcast %cst_137 : f32 to vector<10x16xf32>
    %165 = arith.minimumf %164, %163 : vector<10x16xf32>
    %166 = arith.addf %145, %165 : vector<10x16xf32>
    %167 = arith.mulf %165, %165 : vector<10x16xf32>
    %168 = arith.addf %147, %167 : vector<10x16xf32>
    %c0_138 = arith.constant 0 : index
    %c7 = arith.constant 7 : index
    %c0_139 = arith.constant 0 : index
    %c0_140 = arith.constant 0 : index
    %169 = vector.load %arg4[%c0_138, %c7, %c0_139, %c0_140] : memref<1x12x10x16xf32, #tpu.memory_space<vmem>>, vector<1x1x10x16xf32>
    %170 = vector.shape_cast %169 : vector<1x1x10x16xf32> to vector<10x16xf32>
    %171 = vector.shape_cast %165 : vector<10x16xf32> to vector<1x1x10x16xf32>
    tpu.vector_store %arg4[%c0_138, %c7, %c0_139, %c0_140], %171 {strides = array<i32>} : memref<1x12x10x16xf32, #tpu.memory_space<vmem>>, vector<1x1x10x16xf32>,
    %c0_141 = arith.constant 0 : index
    %c5_142 = arith.constant 5 : index
    %c0_143 = arith.constant 0 : index
    %c0_144 = arith.constant 0 : index
    %172 = vector.load %arg1[%c0_141, %c5_142, %c0_143, %c0_144] : memref<1x8x8x8xf32, #tpu.memory_space<vmem>>, vector<1x1x8x8xf32>
    %173 = vector.shape_cast %172 : vector<1x1x8x8xf32> to vector<8x8xf32>
    %c0_145 = arith.constant 0 : index
    %c6_146 = arith.constant 6 : index
    %c0_147 = arith.constant 0 : index
    %c0_148 = arith.constant 0 : index
    %174 = vector.load %arg1[%c0_145, %c6_146, %c0_147, %c0_148] : memref<1x8x8x8xf32, #tpu.memory_space<vmem>>, vector<1x1x8x8xf32>
    %175 = vector.shape_cast %174 : vector<1x1x8x8xf32> to vector<8x8xf32>
    %cst_149 = arith.constant 0.909090936 : f32
    %176 = vector.broadcast %cst_149 : f32 to vector<8x8xf32>
    %177 = arith.mulf %176, %173 : vector<8x8xf32>
    %cst_150 = arith.constant 0.0909090936 : f32
    %178 = vector.broadcast %cst_150 : f32 to vector<8x8xf32>
    %179 = arith.mulf %178, %175 : vector<8x8xf32>
    %180 = arith.addf %177, %179 : vector<8x8xf32>
    %cst_151 = arith.constant dense<0.000000e+00> : vector<10x8xf32>
    %181 = tpu.matmul %0, %180, %cst_151 {dimension_numbers = #tpu.dot_dimension_numbers<[1], [0], [0], [1], [0, 0, 1, 1], [], []>} : vector<10x8xf32>, vector<8x8xf32>, vector<10x8xf32> -> vector<10x8xf32>
    %cst_152 = arith.constant dense<0.000000e+00> : vector<10x16xf32>
    %182 = tpu.matmul %181, %1, %cst_152 {dimension_numbers = #tpu.dot_dimension_numbers<[1], [1], [0], [0], [0, 0, 1, 0], [], []>} : vector<10x8xf32>, vector<16x8xf32>, vector<10x16xf32> -> vector<10x16xf32>
    %cst_153 = arith.constant -1.200000e+03 : f32
    %cst_154 = arith.constant 1.200000e+03 : f32
    %183 = vector.broadcast %cst_153 : f32 to vector<10x16xf32>
    %184 = arith.maximumf %183, %182 : vector<10x16xf32>
    %185 = vector.broadcast %cst_154 : f32 to vector<10x16xf32>
    %186 = arith.minimumf %185, %184 : vector<10x16xf32>
    %187 = arith.addf %166, %186 : vector<10x16xf32>
    %188 = arith.mulf %186, %186 : vector<10x16xf32>
    %189 = arith.addf %168, %188 : vector<10x16xf32>
    %c0_155 = arith.constant 0 : index
    %c8 = arith.constant 8 : index
    %c0_156 = arith.constant 0 : index
    %c0_157 = arith.constant 0 : index
    %190 = vector.load %arg4[%c0_155, %c8, %c0_156, %c0_157] : memref<1x12x10x16xf32, #tpu.memory_space<vmem>>, vector<1x1x10x16xf32>
    %191 = vector.shape_cast %190 : vector<1x1x10x16xf32> to vector<10x16xf32>
    %192 = vector.shape_cast %186 : vector<10x16xf32> to vector<1x1x10x16xf32>
    tpu.vector_store %arg4[%c0_155, %c8, %c0_156, %c0_157], %192 {strides = array<i32>} : memref<1x12x10x16xf32, #tpu.memory_space<vmem>>, vector<1x1x10x16xf32>,
    %c0_158 = arith.constant 0 : index
    %c5_159 = arith.constant 5 : index
    %c0_160 = arith.constant 0 : index
    %c0_161 = arith.constant 0 : index
    %193 = vector.load %arg1[%c0_158, %c5_159, %c0_160, %c0_161] : memref<1x8x8x8xf32, #tpu.memory_space<vmem>>, vector<1x1x8x8xf32>
    %194 = vector.shape_cast %193 : vector<1x1x8x8xf32> to vector<8x8xf32>
    %c0_162 = arith.constant 0 : index
    %c6_163 = arith.constant 6 : index
    %c0_164 = arith.constant 0 : index
    %c0_165 = arith.constant 0 : index
    %195 = vector.load %arg1[%c0_162, %c6_163, %c0_164, %c0_165] : memref<1x8x8x8xf32, #tpu.memory_space<vmem>>, vector<1x1x8x8xf32>
    %196 = vector.shape_cast %195 : vector<1x1x8x8xf32> to vector<8x8xf32>
    %cst_166 = arith.constant 0.272727281 : f32
    %197 = vector.broadcast %cst_166 : f32 to vector<8x8xf32>
    %198 = arith.mulf %197, %194 : vector<8x8xf32>
    %cst_167 = arith.constant 0.727272749 : f32
    %199 = vector.broadcast %cst_167 : f32 to vector<8x8xf32>
    %200 = arith.mulf %199, %196 : vector<8x8xf32>
    %201 = arith.addf %198, %200 : vector<8x8xf32>
    %cst_168 = arith.constant dense<0.000000e+00> : vector<10x8xf32>
    %202 = tpu.matmul %0, %201, %cst_168 {dimension_numbers = #tpu.dot_dimension_numbers<[1], [0], [0], [1], [0, 0, 1, 1], [], []>} : vector<10x8xf32>, vector<8x8xf32>, vector<10x8xf32> -> vector<10x8xf32>
    %cst_169 = arith.constant dense<0.000000e+00> : vector<10x16xf32>
    %203 = tpu.matmul %202, %1, %cst_169 {dimension_numbers = #tpu.dot_dimension_numbers<[1], [1], [0], [0], [0, 0, 1, 0], [], []>} : vector<10x8xf32>, vector<16x8xf32>, vector<10x16xf32> -> vector<10x16xf32>
    %cst_170 = arith.constant -1.200000e+03 : f32
    %cst_171 = arith.constant 1.200000e+03 : f32
    %204 = vector.broadcast %cst_170 : f32 to vector<10x16xf32>
    %205 = arith.maximumf %204, %203 : vector<10x16xf32>
    %206 = vector.broadcast %cst_171 : f32 to vector<10x16xf32>
    %207 = arith.minimumf %206, %205 : vector<10x16xf32>
    %208 = arith.addf %187, %207 : vector<10x16xf32>
    %209 = arith.mulf %207, %207 : vector<10x16xf32>
    %210 = arith.addf %189, %209 : vector<10x16xf32>
    %c0_172 = arith.constant 0 : index
    %c9 = arith.constant 9 : index
    %c0_173 = arith.constant 0 : index
    %c0_174 = arith.constant 0 : index
    %211 = vector.load %arg4[%c0_172, %c9, %c0_173, %c0_174] : memref<1x12x10x16xf32, #tpu.memory_space<vmem>>, vector<1x1x10x16xf32>
    %212 = vector.shape_cast %211 : vector<1x1x10x16xf32> to vector<10x16xf32>
    %213 = vector.shape_cast %207 : vector<10x16xf32> to vector<1x1x10x16xf32>
    tpu.vector_store %arg4[%c0_172, %c9, %c0_173, %c0_174], %213 {strides = array<i32>} : memref<1x12x10x16xf32, #tpu.memory_space<vmem>>, vector<1x1x10x16xf32>,
    %c0_175 = arith.constant 0 : index
    %c6_176 = arith.constant 6 : index
    %c0_177 = arith.constant 0 : index
    %c0_178 = arith.constant 0 : index
    %214 = vector.load %arg1[%c0_175, %c6_176, %c0_177, %c0_178] : memref<1x8x8x8xf32, #tpu.memory_space<vmem>>, vector<1x1x8x8xf32>
    %215 = vector.shape_cast %214 : vector<1x1x8x8xf32> to vector<8x8xf32>
    %c0_179 = arith.constant 0 : index
    %c7_180 = arith.constant 7 : index
    %c0_181 = arith.constant 0 : index
    %c0_182 = arith.constant 0 : index
    %216 = vector.load %arg1[%c0_179, %c7_180, %c0_181, %c0_182] : memref<1x8x8x8xf32, #tpu.memory_space<vmem>>, vector<1x1x8x8xf32>
    %217 = vector.shape_cast %216 : vector<1x1x8x8xf32> to vector<8x8xf32>
    %cst_183 = arith.constant 0.636363626 : f32
    %218 = vector.broadcast %cst_183 : f32 to vector<8x8xf32>
    %219 = arith.mulf %218, %215 : vector<8x8xf32>
    %cst_184 = arith.constant 0.363636374 : f32
    %220 = vector.broadcast %cst_184 : f32 to vector<8x8xf32>
    %221 = arith.mulf %220, %217 : vector<8x8xf32>
    %222 = arith.addf %219, %221 : vector<8x8xf32>
    %cst_185 = arith.constant dense<0.000000e+00> : vector<10x8xf32>
    %223 = tpu.matmul %0, %222, %cst_185 {dimension_numbers = #tpu.dot_dimension_numbers<[1], [0], [0], [1], [0, 0, 1, 1], [], []>} : vector<10x8xf32>, vector<8x8xf32>, vector<10x8xf32> -> vector<10x8xf32>
    %cst_186 = arith.constant dense<0.000000e+00> : vector<10x16xf32>
    %224 = tpu.matmul %223, %1, %cst_186 {dimension_numbers = #tpu.dot_dimension_numbers<[1], [1], [0], [0], [0, 0, 1, 0], [], []>} : vector<10x8xf32>, vector<16x8xf32>, vector<10x16xf32> -> vector<10x16xf32>
    %cst_187 = arith.constant -1.200000e+03 : f32
    %cst_188 = arith.constant 1.200000e+03 : f32
    %225 = vector.broadcast %cst_187 : f32 to vector<10x16xf32>
    %226 = arith.maximumf %225, %224 : vector<10x16xf32>
    %227 = vector.broadcast %cst_188 : f32 to vector<10x16xf32>
    %228 = arith.minimumf %227, %226 : vector<10x16xf32>
    %229 = arith.addf %208, %228 : vector<10x16xf32>
    %230 = arith.mulf %228, %228 : vector<10x16xf32>
    %231 = arith.addf %210, %230 : vector<10x16xf32>
    %c0_189 = arith.constant 0 : index
    %c10 = arith.constant 10 : index
    %c0_190 = arith.constant 0 : index
    %c0_191 = arith.constant 0 : index
    %232 = vector.load %arg4[%c0_189, %c10, %c0_190, %c0_191] : memref<1x12x10x16xf32, #tpu.memory_space<vmem>>, vector<1x1x10x16xf32>
    %233 = vector.shape_cast %232 : vector<1x1x10x16xf32> to vector<10x16xf32>
    %234 = vector.shape_cast %228 : vector<10x16xf32> to vector<1x1x10x16xf32>
    tpu.vector_store %arg4[%c0_189, %c10, %c0_190, %c0_191], %234 {strides = array<i32>} : memref<1x12x10x16xf32, #tpu.memory_space<vmem>>, vector<1x1x10x16xf32>,
    %c0_192 = arith.constant 0 : index
    %c7_193 = arith.constant 7 : index
    %c0_194 = arith.constant 0 : index
    %c0_195 = arith.constant 0 : index
    %235 = vector.load %arg1[%c0_192, %c7_193, %c0_194, %c0_195] : memref<1x8x8x8xf32, #tpu.memory_space<vmem>>, vector<1x1x8x8xf32>
    %236 = vector.shape_cast %235 : vector<1x1x8x8xf32> to vector<8x8xf32>
    %c0_196 = arith.constant 0 : index
    %c7_197 = arith.constant 7 : index
    %c0_198 = arith.constant 0 : index
    %c0_199 = arith.constant 0 : index
    %237 = vector.load %arg1[%c0_196, %c7_197, %c0_198, %c0_199] : memref<1x8x8x8xf32, #tpu.memory_space<vmem>>, vector<1x1x8x8xf32>
    %238 = vector.shape_cast %237 : vector<1x1x8x8xf32> to vector<8x8xf32>
    %cst_200 = arith.constant 1.000000e+00 : f32
    %239 = vector.broadcast %cst_200 : f32 to vector<8x8xf32>
    %240 = arith.mulf %239, %236 : vector<8x8xf32>
    %cst_201 = arith.constant 0.000000e+00 : f32
    %241 = vector.broadcast %cst_201 : f32 to vector<8x8xf32>
    %242 = arith.mulf %241, %238 : vector<8x8xf32>
    %243 = arith.addf %240, %242 : vector<8x8xf32>
    %cst_202 = arith.constant dense<0.000000e+00> : vector<10x8xf32>
    %244 = tpu.matmul %0, %243, %cst_202 {dimension_numbers = #tpu.dot_dimension_numbers<[1], [0], [0], [1], [0, 0, 1, 1], [], []>} : vector<10x8xf32>, vector<8x8xf32>, vector<10x8xf32> -> vector<10x8xf32>
    %cst_203 = arith.constant dense<0.000000e+00> : vector<10x16xf32>
    %245 = tpu.matmul %244, %1, %cst_203 {dimension_numbers = #tpu.dot_dimension_numbers<[1], [1], [0], [0], [0, 0, 1, 0], [], []>} : vector<10x8xf32>, vector<16x8xf32>, vector<10x16xf32> -> vector<10x16xf32>
    %cst_204 = arith.constant -1.200000e+03 : f32
    %cst_205 = arith.constant 1.200000e+03 : f32
    %246 = vector.broadcast %cst_204 : f32 to vector<10x16xf32>
    %247 = arith.maximumf %246, %245 : vector<10x16xf32>
    %248 = vector.broadcast %cst_205 : f32 to vector<10x16xf32>
    %249 = arith.minimumf %248, %247 : vector<10x16xf32>
    %250 = arith.addf %229, %249 : vector<10x16xf32>
    %251 = arith.mulf %249, %249 : vector<10x16xf32>
    %252 = arith.addf %231, %251 : vector<10x16xf32>
    %c0_206 = arith.constant 0 : index
    %c11 = arith.constant 11 : index
    %c0_207 = arith.constant 0 : index
    %c0_208 = arith.constant 0 : index
    %253 = vector.load %arg4[%c0_206, %c11, %c0_207, %c0_208] : memref<1x12x10x16xf32, #tpu.memory_space<vmem>>, vector<1x1x10x16xf32>
    %254 = vector.shape_cast %253 : vector<1x1x10x16xf32> to vector<10x16xf32>
    %255 = vector.shape_cast %249 : vector<10x16xf32> to vector<1x1x10x16xf32>
    tpu.vector_store %arg4[%c0_206, %c11, %c0_207, %c0_208], %255 {strides = array<i32>} : memref<1x12x10x16xf32, #tpu.memory_space<vmem>>, vector<1x1x10x16xf32>,
    %c0_209 = arith.constant 0 : index
    %c0_210 = arith.constant 0 : index
    %c0_211 = arith.constant 0 : index
    %256 = vector.load %arg5[%c0_209, %c0_210, %c0_211] : memref<1x10x16xf32, #tpu.memory_space<vmem>>, vector<1x10x16xf32>
    %257 = vector.shape_cast %256 : vector<1x10x16xf32> to vector<10x16xf32>
    %258 = vector.shape_cast %250 : vector<10x16xf32> to vector<1x10x16xf32>
    tpu.vector_store %arg5[%c0_209, %c0_210, %c0_211], %258 {strides = array<i32>} : memref<1x10x16xf32, #tpu.memory_space<vmem>>, vector<1x10x16xf32>,
    %c0_212 = arith.constant 0 : index
    %c0_213 = arith.constant 0 : index
    %c0_214 = arith.constant 0 : index
    %259 = vector.load %arg6[%c0_212, %c0_213, %c0_214] : memref<1x10x16xf32, #tpu.memory_space<vmem>>, vector<1x10x16xf32>
    %260 = vector.shape_cast %259 : vector<1x10x16xf32> to vector<10x16xf32>
    %261 = vector.shape_cast %252 : vector<10x16xf32> to vector<1x10x16xf32>
    tpu.vector_store %arg6[%c0_212, %c0_213, %c0_214], %261 {strides = array<i32>} : memref<1x10x16xf32, #tpu.memory_space<vmem>>, vector<1x10x16xf32>,
    return
  }
  func.func @transform_0(%arg0: i32) -> (i32, i32, i32, i32) {
    %c0_i32 = arith.constant 0 : i32
    %c0_i32_0 = arith.constant 0 : i32
    %c0_i32_1 = arith.constant 0 : i32
    %c0_i32_2 = arith.constant 0 : i32
    return %arg0, %c0_i32, %c0_i32_0, %c0_i32_1 : i32, i32, i32, i32
  }
  func.func @transform_1(%arg0: i32) -> (i32, i32) {
    %c0_i32 = arith.constant 0 : i32
    %c0_i32_0 = arith.constant 0 : i32
    %c0_i32_1 = arith.constant 0 : i32
    return %c0_i32, %c0_i32_0 : i32, i32
  }
  func.func @transform_2(%arg0: i32) -> (i32, i32) {
    %c0_i32 = arith.constant 0 : i32
    %c0_i32_0 = arith.constant 0 : i32
    %c0_i32_1 = arith.constant 0 : i32
    return %c0_i32, %c0_i32_0 : i32, i32
  }
  func.func @transform_3(%arg0: i32) -> (i32, i32, i32, i32) {
    %c0_i32 = arith.constant 0 : i32
    %c0_i32_0 = arith.constant 0 : i32
    %c0_i32_1 = arith.constant 0 : i32
    %c0_i32_2 = arith.constant 0 : i32
    return %arg0, %c0_i32, %c0_i32_0, %c0_i32_1 : i32, i32, i32, i32
  }
  func.func @transform_4(%arg0: i32) -> (i32, i32, i32) {
    %c0_i32 = arith.constant 0 : i32
    %c0_i32_0 = arith.constant 0 : i32
    %c0_i32_1 = arith.constant 0 : i32
    return %arg0, %c0_i32, %c0_i32_0 : i32, i32, i32
  }
  func.func @transform_5(%arg0: i32) -> (i32, i32, i32) {
    %c0_i32 = arith.constant 0 : i32
    %c0_i32_0 = arith.constant 0 : i32
    %c0_i32_1 = arith.constant 0 : i32
    return %arg0, %c0_i32, %c0_i32_0 : i32, i32, i32
  }
}

</mosaic_0001>

<llo_original>
// kernel: input_forward.3
$region0: #{input_forward.3}
  #allocation0 [shape = 'u32[]', space=smem, size = 0x4, offset = 0x4, fixed_abs, tag = 'smem constant byte address 0x4 - core index']
  #allocation1 [shape = 'u32[144,128]{1,0:T(1,128)}', space=vmem, size = 0x12000, scoped, tag = 'internal scratch']
  %s0 = inlined_call_operand.vmem [shape: f32[4,10,16], index: 0, kind: input, shape index: {}]
  %s1 = inlined_call_operand.vmem [shape: f32[4,10,16], index: 1, kind: input, shape index: {}]
  %s2 = inlined_call_operand.vmem [shape: f32[4,12,10,16], index: 2, kind: input, shape index: {}]
  %s3 = inlined_call_operand.vmem [shape: f32[4,12,10,16], index: 3, kind: output, shape index: {}]
  %s4 = sld [smem:[#allocation0]]
  $region45: #{input_forward.3} parent=0
    _
  %s6 = ssub.s32 1, %s4
  %s7 = scalar_select 0, %s6, %s4
  loop: start=0, step=1, limit=50
  $region2: #{input_forward.3} parent=0 // loop_pre_header
    _
  $region3: #{input_forward.3} parent=0 // loop_header
    %s9 = sphi 0, %s13
    %p10 = scmp.ge.s32.totalorder %s9, 50
    %s16 = sphi 0, %s28
    %s17 = sphi 0, %s24
    %s18 = sphi 0, %s16
    %s19 = sphi 0, %s17
    %s20 = sphi 0, %s18
    %s21 = sphi 0, %s19
    %s29 = sphi 0, %s29
    %s31 = sphi 0, %s29
    %s32 = sphi 0, %s31
    %s46 = sphi 0, %s32
    %s50 = sphi 0, %s50
    %s52 = sphi 0, %s50
    %s53 = sphi 0, %s52
    %s67 = sphi 0, %s53
    %s75 = sphi 0, %s77
    %s78 = sphi 0, %s75
    %s79 = sphi 0, %s78
    %s95 = sphi 0, %s79
    %s103 = sphi 0, %s105
    %s106 = sphi 0, %s103
    %s107 = sphi 0, %s106
    %s123 = sphi 0, %s107
  $region4: #{input_forward.3} parent=0 // loop_header_branch
    %12 = sbr.rel (%p10) target = $region8
  $region5: #{input_forward.3} parent=0 // loop_body
    %s14 = ssub.s32 %s9, 1
    %s15 = ssub.s32 %s9, 2
    %s22 = sadd.s32 1, %s17
    %p23 = scmp.ge.s32.totalorder %s22, 12
    %s24 = scalar_select %p23, 0, %s22
    %s25 = sadd.s32 1, %s16
    %s26 = scalar_select %p23, %s25, %s16
    %p27 = scmp.ge.s32.totalorder %s26, 4
    %s28 = scalar_select %p27, 0, %s26
    %s30 = sadd.s32 %s29, 1
    %p33 = scmp.eq.s32.totalorder %s9, 47
    %p34 = scmp.ne.s32.totalorder %s29, %s31
    %p35 = scmp.eq.s32.totalorder %s9, 0
    %p36 = por %p34, %p35
    %p37 = scmp.ne.s32.totalorder %s29, %s31
    %p38 = scmp.eq.s32.totalorder %s14, 47
    %p39 = por %p37, %p38
    %p40 = scmp.ne.s32.totalorder %s31, %s32
    %p41 = scmp.eq.s32.totalorder %s14, 0
    %p42 = por %p40, %p41
    %p43 = scmp.ne.s32.totalorder %s31, %s32
    %p44 = scmp.eq.s32.totalorder %s15, 47
    %p45 = por %p43, %p44
    %p47 = scmp.ne.s32.totalorder %s32, %s46
    %p48 = scmp.eq.s32.totalorder %s15, 0
    %p49 = por %p47, %p48
    %s51 = sadd.s32 %s50, 1
    %p54 = scmp.eq.s32.totalorder %s9, 47
    %p55 = scmp.ne.s32.totalorder %s50, %s52
    %p56 = scmp.eq.s32.totalorder %s9, 0
    %p57 = por %p55, %p56
    %p58 = scmp.ne.s32.totalorder %s50, %s52
    %p59 = scmp.eq.s32.totalorder %s14, 47
    %p60 = por %p58, %p59
    %p61 = scmp.ne.s32.totalorder %s52, %s53
    %p62 = scmp.eq.s32.totalorder %s14, 0
    %p63 = por %p61, %p62
    %p64 = scmp.ne.s32.totalorder %s52, %s53
    %p65 = scmp.eq.s32.totalorder %s15, 47
    %p66 = por %p64, %p65
    %p68 = scmp.ne.s32.totalorder %s53, %s67
    %p69 = scmp.eq.s32.totalorder %s15, 0
    %p70 = por %p68, %p69
    %s71 = ssub.s32 %s16, %s28
    %s72 = ssub.s32 %s17, %s24
    %s73 = sor.u32 %s71, %s72
    %p74 = scmp.eq.s32.totalorder %s73, 0
    %s76 = sadd.s32 %s75, 1
    %s77 = scalar_select %p74, %s75, %s76
    %p80 = pneg %p74
    %p81 = scmp.eq.s32.totalorder %s9, 47
    %p82 = por %p80, %p81
    %p83 = scmp.ne.s32.totalorder %s75, %s78
    %p84 = scmp.eq.s32.totalorder %s9, 0
    %p85 = por %p83, %p84
    %p86 = scmp.ne.s32.totalorder %s75, %s78
    %p87 = scmp.eq.s32.totalorder %s14, 47
    %p88 = por %p86, %p87
    %p89 = scmp.ne.s32.totalorder %s78, %s79
    %p90 = scmp.eq.s32.totalorder %s14, 0
    %p91 = por %p89, %p90
    %p92 = scmp.ne.s32.totalorder %s78, %s79
    %p93 = scmp.eq.s32.totalorder %s15, 47
    %p94 = por %p92, %p93
    %p96 = scmp.ne.s32.totalorder %s79, %s95
    %p97 = scmp.eq.s32.totalorder %s15, 0
    %p98 = por %p96, %p97
    %s99 = ssub.s32 %s16, %s28
    %s100 = ssub.s32 %s17, %s24
    %s101 = sor.u32 %s99, %s100
    %p102 = scmp.eq.s32.totalorder %s101, 0
    %s104 = sadd.s32 %s103, 1
    %s105 = scalar_select %p102, %s103, %s104
    %p108 = pneg %p102
    %p109 = scmp.eq.s32.totalorder %s9, 47
    %p110 = por %p108, %p109
    %p111 = scmp.ne.s32.totalorder %s103, %s106
    %p112 = scmp.eq.s32.totalorder %s9, 0
    %p113 = por %p111, %p112
    %p114 = scmp.ne.s32.totalorder %s103, %s106
    %p115 = scmp.eq.s32.totalorder %s14, 47
    %p116 = por %p114, %p115
    %p117 = scmp.ne.s32.totalorder %s106, %s107
    %p118 = scmp.eq.s32.totalorder %s14, 0
    %p119 = por %p117, %p118
    %p120 = scmp.ne.s32.totalorder %s106, %s107
    %p121 = scmp.eq.s32.totalorder %s15, 47
    %p122 = por %p120, %p121
    %p124 = scmp.ne.s32.totalorder %s107, %s123
    %p125 = scmp.eq.s32.totalorder %s15, 0
    %p126 = por %p124, %p125
    %p127 = scmp.le.s32.totalorder 1, %s9
    %p128 = scmp.lt.s32.totalorder %s9, 49
    %p129 = pnand %p127, %p128
    %p130 = pneg %p129
    // Predicated region
    $region9: #{input_forward.3} parent=5 // pred_check
      _
    $region10: #{input_forward.3} parent=5 // pred_check_branch
      %132 = sbr.rel (%p129) target = $region12
    $region11: #{input_forward.3} parent=5 // pred_region
      %s133 = ssub.s32 %s9, 1
      // Predicated region
      $region13: #{input_forward.3} parent=11 // pred_check
        %p134 = pneg %p42
      $region14: #{input_forward.3} parent=11 // pred_check_branch
        %136 = sbr.rel (%p134) target = $region16
      $region15: #{input_forward.3} parent=11 // pred_region
        _
      $region16: #{input_forward.3} parent=11 // pred_fallthru
        _
      // Predicated region
      $region17: #{input_forward.3} parent=11 // pred_check
        %p137 = pneg %p63
      $region18: #{input_forward.3} parent=11 // pred_check_branch
        %139 = sbr.rel (%p137) target = $region20
      $region19: #{input_forward.3} parent=11 // pred_region
        _
      $region20: #{input_forward.3} parent=11 // pred_fallthru
        _
    $region12: #{input_forward.3} parent=5 // pred_fallthru
      _
    %p140 = scmp.lt.s32.totalorder %s9, 48
    // Predicated region
    $region21: #{input_forward.3} parent=5 // pred_check
      %p141 = pneg %p140
    $region22: #{input_forward.3} parent=5 // pred_check_branch
      %143 = sbr.rel (%p141) target = $region24
    $region23: #{input_forward.3} parent=5 // pred_region
      // Predicated region
      $region25: #{input_forward.3} parent=23 // pred_check
        %p144 = pneg %p85
      $region26: #{input_forward.3} parent=23 // pred_check_branch
        %146 = sbr.rel (%p144) target = $region28
      $region27: #{input_forward.3} parent=23 // pred_region
        %p147 = scmp.lt.s32.totalorder %s16, 3
        %s148 = scalar_select %p147, %s16, 3
        %p149 = scmp.lt.s32.totalorder %s17, 11
        %s150 = scalar_select %p149, %s17, 11
        %s151 = smul.addr %s150, 2
        %s152 = smul.addr %s148, 24
        %s153 = sadd.s32 %s151, %s152
        %s154 = smul.addr %s153, 8
        %s155 = scalar_lea.vmem %s2, %s154
      $region28: #{input_forward.3} parent=23 // pred_fallthru
        _
    $region24: #{input_forward.3} parent=5 // pred_fallthru
      _
    %p156 = scmp.le.s32.totalorder 1, %s9
    %p157 = scmp.lt.s32.totalorder %s9, 49
    %p158 = pnand %p156, %p157
    %p159 = pneg %p158
    // Predicated region
    $region29: #{input_forward.3} parent=5 // pred_check
      _
    $region30: #{input_forward.3} parent=5 // pred_check_branch
      %161 = sbr.rel (%p158) target = $region32
    $region31: #{input_forward.3} parent=5 // pred_region
      %s162 = ssub.s32 %s9, 1
      %p163 = pneg %p42
      %p164 = pneg %p39
      %p165 = pneg %p63
      %p166 = pneg %p60
      %p167 = scmp.lt.s32.totalorder %s18, 3
      %s168 = scalar_select %p167, %s18, 3
      %p169 = scmp.lt.s32.totalorder %s19, 11
      %s170 = scalar_select %p169, %s19, 11
      %s171 = smul.addr %s170, 2
      %s172 = smul.addr %s168, 24
      %s173 = sadd.s32 %s171, %s172
      %s174 = smul.addr %s173, 8
      %s175 = scalar_lea.vmem %s2, %s174
      %p176 = pneg %p91
      %p177 = pneg %p88
      %p178 = pneg %p119
      %p179 = pneg %p116
      %p180 = scmp.lt.s32.totalorder %s18, 3
      %s181 = scalar_select %p180, %s18, 3
      %p182 = scmp.lt.s32.totalorder %s19, 11
      %s183 = scalar_select %p182, %s19, 11
      %s184 = smul.addr %s183, 2
      %s185 = smul.addr %s181, 24
      %s186 = sadd.s32 %s184, %s185
      %s187 = smul.addr %s186, 8
      %s188 = scalar_lea.vmem %s3, %s187
      %p189 = scmp.lt.s32.totalorder %s18, 3
      %s190 = scalar_select %p189, %s18, 3
      %p191 = scmp.lt.s32.totalorder %s19, 11
      %s192 = scalar_select %p191, %s19, 11
      %s193 = smul.addr %s192, 2
      %s194 = smul.addr %s190, 24
      %s195 = sadd.s32 %s193, %s194
      %s196 = smul.addr %s195, 8
      %s197 = scalar_lea.vmem %s2, %s196
      %p198 = scmp.lt.s32.totalorder %s18, 3
      %s199 = scalar_select %p198, %s18, 3
      %p200 = scmp.lt.s32.totalorder %s19, 11
      %s201 = scalar_select %p200, %s19, 11
      %s202 = smul.addr %s201, 2
      %s203 = smul.addr %s199, 24
      %s204 = sadd.s32 %s202, %s203
      %s205 = smul.addr %s204, 8
      %s206 = scalar_lea.vmem %s3, %s205
      %v207 = vld [vmem:[%s0] sm:$0xff]
      %v208 = vld [vmem:[%s0 + $0x8] sm:$0x3]
      %v209 = vld [vmem:[%s0 + $0x10] sm:$0xff]
      %v210 = vld [vmem:[%s0 + $0x18] sm:$0x3]
      %v211 = vld [vmem:[%s0 + $0x20] sm:$0xff]
      %v212 = vld [vmem:[%s0 + $0x28] sm:$0x3]
      %v213 = vld [vmem:[%s0 + $0x30] sm:$0xff]
      %v214 = vld [vmem:[%s0 + $0x38] sm:$0x3]
      %vm215 = vcmask 130048
      %v216 = vsel %vm215, %v207, 0.0
      %vm217 = vcmask 123904
      %v218 = vsel %vm217, %v208, 0.0
      %v219 = vadd.f32 %v216, %v218
      %v220 = vsel %vm215, %v209, 0.0
      %v221 = vadd.f32 %v219, %v220
      %v222 = vsel %vm217, %v210, 0.0
      %v223 = vadd.f32 %v221, %v222
      %v224 = vsel %vm215, %v211, 0.0
      %v225 = vadd.f32 %v223, %v224
      %v226 = vsel %vm217, %v212, 0.0
      %v227 = vadd.f32 %v225, %v226
      %v228 = vsel %vm215, %v213, 0.0
      %v229 = vadd.f32 %v227, %v228
      %v230 = vsel %vm217, %v214, 0.0
      %v231 = vadd.f32 %v229, %v230
      %232 = vadd.xlane.f32.xlu0 %v231
      %v233 = vpop.xlane.xlu0 %232
      %v234 = vrot.slane %v233, 4
      %v235 = vadd.f32 %v233, %v234
      %v236 = vrot.slane %v235, 2
      %v237 = vadd.f32 %v235, %v236
      %v238 = vrot.slane %v237, 1
      %v239 = vadd.f32 %v237, %v238
      %s240 = vtos %v239
      %v241 = vld [vmem:[%s1] sm:$0xff]
      %v242 = vld [vmem:[%s1 + $0x8] sm:$0x3]
      %v243 = vld [vmem:[%s1 + $0x10] sm:$0xff]
      %v244 = vld [vmem:[%s1 + $0x18] sm:$0x3]
      %v245 = vld [vmem:[%s1 + $0x20] sm:$0xff]
      %v246 = vld [vmem:[%s1 + $0x28] sm:$0x3]
      %v247 = vld [vmem:[%s1 + $0x30] sm:$0xff]
      %v248 = vld [vmem:[%s1 + $0x38] sm:$0x3]
      %v249 = vsel %vm215, %v241, 0.0
      %v250 = vsel %vm217, %v242, 0.0
      %v251 = vadd.f32 %v249, %v250
      %v252 = vsel %vm215, %v243, 0.0
      %v253 = vadd.f32 %v251, %v252
      %v254 = vsel %vm217, %v244, 0.0
      %v255 = vadd.f32 %v253, %v254
      %v256 = vsel %vm215, %v245, 0.0
      %v257 = vadd.f32 %v255, %v256
      %v258 = vsel %vm217, %v246, 0.0
      %v259 = vadd.f32 %v257, %v258
      %v260 = vsel %vm215, %v247, 0.0
      %v261 = vadd.f32 %v259, %v260
      %v262 = vsel %vm217, %v248, 0.0
      %v263 = vadd.f32 %v261, %v262
      %264 = vadd.xlane.f32.xlu0 %v263
      %v265 = vpop.xlane.xlu0 %264
      %v266 = vrot.slane %v265, 4
      %v267 = vadd.f32 %v265, %v266
      %v268 = vrot.slane %v267, 2
      %v269 = vadd.f32 %v267, %v268
      %v270 = vrot.slane %v269, 1
      %v271 = vadd.f32 %v269, %v270
      %s272 = vtos %v271
      %v273 = vrcp.pop 7680.0
      %s274 = vtos %v273
      %s275 = smul.f32 %s240, %s274
      %s276 = smul.f32 %s240, %s275
      %s277 = ssub.f32 %s272, %s276
      %v278 = vrcp.pop 7679.0
      %s279 = vtos %v278
      %s280 = smul.f32 %s277, %s279
      %s281 = smax.f32 %s280, 0.0
      %v282 = vstv %s281
      %v283 = vrsqrt.pop %v282
      %v284 = vmul.f32 %v282, %v283
      %vm285 = vcmp.eq.f32.partialorder %v282, inf
      %v286 = vsel %vm285, %v282, %v284
      %vm287 = vcmp.eq.f32.partialorder %v282, 0.0
      %v288 = vand.u32 %v282, 2147483648
      %v289 = vsel %vm287, %v288, %v286
      %s290 = vtos %v289
      %v291 = vld [vmem:[%s197] sm:$0xff]
      %v292 = vld [vmem:[%s197 + $0x8] sm:$0x3]
      %v293 = vstv %s275
      %v294 = vsub.f32 %v291, %v293
      %v295 = vsub.f32 %v292, %v293
      %s296 = sadd.f32 %s290, 1e-05
      %v297 = vstv %s296
      %v298 = vrcp.pop %v297
      %v299 = vmul.f32 %v294, %v298
      %v300 = vmul.f32 %v295, %v298
      %301 = vst.msk [vmem:[%s206] sm:$0xff] %vm215, %v299
      %302 = vst.msk [vmem:[%s206 + $0x8] sm:$0x3] %vm217, %v300
      %p303 = scmp.lt.s32.totalorder %s18, 3
      %s304 = scalar_select %p303, %s18, 3
      %p305 = scmp.lt.s32.totalorder %s19, 11
      %s306 = scalar_select %p305, %s19, 11
      %s307 = smul.addr %s306, 2
      %s308 = smul.addr %s304, 24
      %s309 = sadd.s32 %s307, %s308
      %s310 = smul.addr %s309, 8
      %s311 = scalar_lea.vmem %s3, %s310
      // Predicated region
      $region33: #{input_forward.3} parent=31 // pred_check
        %p312 = pneg %p116
      $region34: #{input_forward.3} parent=31 // pred_check_branch
        %314 = sbr.rel (%p312) target = $region36
      $region35: #{input_forward.3} parent=31 // pred_region
        _
      $region36: #{input_forward.3} parent=31 // pred_fallthru
        _
    $region32: #{input_forward.3} parent=5 // pred_fallthru
      _
    %p315 = scmp.le.s32.totalorder 2, %s9
    // Predicated region
    $region37: #{input_forward.3} parent=5 // pred_check
      %p316 = pneg %p315
    $region38: #{input_forward.3} parent=5 // pred_check_branch
      %318 = sbr.rel (%p316) target = $region40
    $region39: #{input_forward.3} parent=5 // pred_region
      %s319 = ssub.s32 %s9, 2
      // Predicated region
      $region41: #{input_forward.3} parent=39 // pred_check
        %p320 = pneg %p122
      $region42: #{input_forward.3} parent=39 // pred_check_branch
        %322 = sbr.rel (%p320) target = $region44
      $region43: #{input_forward.3} parent=39 // pred_region
        %p323 = scmp.lt.s32.totalorder %s20, 3
        %s324 = scalar_select %p323, %s20, 3
        %p325 = scmp.lt.s32.totalorder %s21, 11
        %s326 = scalar_select %p325, %s21, 11
        %s327 = smul.addr %s326, 2
        %s328 = smul.addr %s324, 24
        %s329 = sadd.s32 %s327, %s328
        %s330 = smul.addr %s329, 8
        %s331 = scalar_lea.vmem %s3, %s330
      $region44: #{input_forward.3} parent=39 // pred_fallthru
        _
    $region40: #{input_forward.3} parent=5 // pred_fallthru
      _
  $region6: #{input_forward.3} parent=0 // loop_footer
    %s13 = sadd.s32 1, %s9
  $region7: #{input_forward.3} parent=0 // loop_footer_branch
    %8 = sbr.rel target = $region3
  $region8: #{input_forward.3} parent=0 // loop_exit
    _

// kernel: input_forward.2
$region0: #{input_forward.2}
  #allocation0 [shape = 'u32[]', space=smem, size = 0x4, offset = 0x4, fixed_abs, tag = 'smem constant byte address 0x4 - core index']
  #allocation1 [shape = 'u32[144,128]{1,0:T(1,128)}', space=vmem, size = 0x12000, scoped, tag = 'internal scratch']
  %s0 = inlined_call_operand.hbm [shape: f32[4,8,8,8], index: 0, kind: input, shape index: {}]
  %s1 = inlined_call_operand.hbm [shape: f32[10,8], index: 1, kind: input, shape index: {}]
  %s2 = inlined_call_operand.hbm [shape: f32[16,8], index: 2, kind: input, shape index: {}]
  %s3 = inlined_call_operand.vmem [shape: f32[4,12,10,16], index: 3, kind: output, shape index: {0}]
  %s4 = inlined_call_operand.vmem [shape: f32[4,10,16], index: 4, kind: output, shape index: {1}]
  %s5 = inlined_call_operand.vmem [shape: f32[4,10,16], index: 5, kind: output, shape index: {2}]
  %6 = xla_tuple %s3, %s4, %s5
  %s7 = sld [smem:[#allocation0]]
  $region73: #{input_forward.2} parent=0
    _
  %s9 = ssub.s32 1, %s7
  %s10 = scalar_select 0, %s9, %s7
  $region1: #{input_forward.2} parent=0
    #allocation2 [shape = 'u8[65536]{0}', space=vmem, size = 0x10000, scoped, tag = 'input window, operand 0']
    #allocation3 [shape = 's32[2]{0}', space=sflag, size = 0x8, scoped, tag = 'scoped memory for input_forward.2']
    #allocation4 [shape = 'u8[8192]{0}', space=vmem, size = 0x2000, scoped, tag = 'input window, operand 1, single buffered']
    #allocation5 [shape = 's32[1]{0}', space=sflag, size = 0x4, scoped, tag = 'scoped memory for input_forward.2']
    #allocation6 [shape = 'u8[8192]{0}', space=vmem, size = 0x2000, scoped, tag = 'input window, operand 2, single buffered']
    %11 = vsyncpa [#allocation3], 0
    %s12 = scalar_lea.sflag [#allocation3], 1
    %13 = vsyncpa %s12, 0
    %14 = vsyncpa [#allocation5], 0
    loop: start=0, step=1, limit=6
    $region2: #{input_forward.2} parent=1 // loop_pre_header
      _
    $region3: #{input_forward.2} parent=1 // loop_header
      %s16 = sphi 0, %s20
      %p17 = scmp.ge.s32.totalorder %s16, 6
      %s26 = sphi 0, %s28
      %s29 = sphi 0, %s26
      %s30 = sphi 0, %s29
      %s46 = sphi 0, %s30
      %s50 = sphi 0, %s50
      %s52 = sphi 0, %s50
      %s53 = sphi 0, %s52
      %s67 = sphi 0, %s53
      %s71 = sphi 0, %s71
      %s73 = sphi 0, %s71
      %s74 = sphi 0, %s73
      %s88 = sphi 0, %s74
      %s94 = sphi 0, %s96
      %s97 = sphi 0, %s94
      %s98 = sphi 0, %s97
      %s114 = sphi 0, %s98
      %s120 = sphi 0, %s122
      %s123 = sphi 0, %s120
      %s124 = sphi 0, %s123
      %s140 = sphi 0, %s124
      %s146 = sphi 0, %s148
      %s149 = sphi 0, %s146
      %s150 = sphi 0, %s149
      %s166 = sphi 0, %s150
    $region4: #{input_forward.2} parent=1 // loop_header_branch
      %19 = sbr.rel (%p17) target = $region8
    $region5: #{input_forward.2} parent=1 // loop_body
      %s21 = ssub.s32 %s16, 1
      %s22 = ssub.s32 %s16, 2
      %s23 = sadd.s32 %s16, 1
      %s24 = ssub.s32 %s16, %s23
      %p25 = scmp.eq.s32.totalorder %s24, 0
      %s27 = sadd.s32 %s26, 1
      %s28 = scalar_select %p25, %s26, %s27
      %p31 = pneg %p25
      %p32 = scmp.eq.s32.totalorder %s16, 3
      %p33 = por %p31, %p32
      %p34 = scmp.ne.s32.totalorder %s26, %s29
      %p35 = scmp.eq.s32.totalorder %s16, 0
      %p36 = por %p34, %p35
      %p37 = scmp.ne.s32.totalorder %s26, %s29
      %p38 = scmp.eq.s32.totalorder %s21, 3
      %p39 = por %p37, %p38
      %p40 = scmp.ne.s32.totalorder %s29, %s30
      %p41 = scmp.eq.s32.totalorder %s21, 0
      %p42 = por %p40, %p41
      %p43 = scmp.ne.s32.totalorder %s29, %s30
      %p44 = scmp.eq.s32.totalorder %s22, 3
      %p45 = por %p43, %p44
      %p47 = scmp.ne.s32.totalorder %s30, %s46
      %p48 = scmp.eq.s32.totalorder %s22, 0
      %p49 = por %p47, %p48
      %s51 = sadd.s32 %s50, 1
      %p54 = scmp.eq.s32.totalorder %s16, 3
      %p55 = scmp.ne.s32.totalorder %s50, %s52
      %p56 = scmp.eq.s32.totalorder %s16, 0
      %p57 = por %p55, %p56
      %p58 = scmp.ne.s32.totalorder %s50, %s52
      %p59 = scmp.eq.s32.totalorder %s21, 3
      %p60 = por %p58, %p59
      %p61 = scmp.ne.s32.totalorder %s52, %s53
      %p62 = scmp.eq.s32.totalorder %s21, 0
      %p63 = por %p61, %p62
      %p64 = scmp.ne.s32.totalorder %s52, %s53
      %p65 = scmp.eq.s32.totalorder %s22, 3
      %p66 = por %p64, %p65
      %p68 = scmp.ne.s32.totalorder %s53, %s67
      %p69 = scmp.eq.s32.totalorder %s22, 0
      %p70 = por %p68, %p69
      %s72 = sadd.s32 %s71, 1
      %p75 = scmp.eq.s32.totalorder %s16, 3
      %p76 = scmp.ne.s32.totalorder %s71, %s73
      %p77 = scmp.eq.s32.totalorder %s16, 0
      %p78 = por %p76, %p77
      %p79 = scmp.ne.s32.totalorder %s71, %s73
      %p80 = scmp.eq.s32.totalorder %s21, 3
      %p81 = por %p79, %p80
      %p82 = scmp.ne.s32.totalorder %s73, %s74
      %p83 = scmp.eq.s32.totalorder %s21, 0
      %p84 = por %p82, %p83
      %p85 = scmp.ne.s32.totalorder %s73, %s74
      %p86 = scmp.eq.s32.totalorder %s22, 3
      %p87 = por %p85, %p86
      %p89 = scmp.ne.s32.totalorder %s74, %s88
      %p90 = scmp.eq.s32.totalorder %s22, 0
      %p91 = por %p89, %p90
      %s92 = ssub.s32 %s16, %s23
      %p93 = scmp.eq.s32.totalorder %s92, 0
      %s95 = sadd.s32 %s94, 1
      %s96 = scalar_select %p93, %s94, %s95
      %p99 = pneg %p93
      %p100 = scmp.eq.s32.totalorder %s16, 3
      %p101 = por %p99, %p100
      %p102 = scmp.ne.s32.totalorder %s94, %s97
      %p103 = scmp.eq.s32.totalorder %s16, 0
      %p104 = por %p102, %p103
      %p105 = scmp.ne.s32.totalorder %s94, %s97
      %p106 = scmp.eq.s32.totalorder %s21, 3
      %p107 = por %p105, %p106
      %p108 = scmp.ne.s32.totalorder %s97, %s98
      %p109 = scmp.eq.s32.totalorder %s21, 0
      %p110 = por %p108, %p109
      %p111 = scmp.ne.s32.totalorder %s97, %s98
      %p112 = scmp.eq.s32.totalorder %s22, 3
      %p113 = por %p111, %p112
      %p115 = scmp.ne.s32.totalorder %s98, %s114
      %p116 = scmp.eq.s32.totalorder %s22, 0
      %p117 = por %p115, %p116
      %s118 = ssub.s32 %s16, %s23
      %p119 = scmp.eq.s32.totalorder %s118, 0
      %s121 = sadd.s32 %s120, 1
      %s122 = scalar_select %p119, %s120, %s121
      %p125 = pneg %p119
      %p126 = scmp.eq.s32.totalorder %s16, 3
      %p127 = por %p125, %p126
      %p128 = scmp.ne.s32.totalorder %s120, %s123
      %p129 = scmp.eq.s32.totalorder %s16, 0
      %p130 = por %p128, %p129
      %p131 = scmp.ne.s32.totalorder %s120, %s123
      %p132 = scmp.eq.s32.totalorder %s21, 3
      %p133 = por %p131, %p132
      %p134 = scmp.ne.s32.totalorder %s123, %s124
      %p135 = scmp.eq.s32.totalorder %s21, 0
      %p136 = por %p134, %p135
      %p137 = scmp.ne.s32.totalorder %s123, %s124
      %p138 = scmp.eq.s32.totalorder %s22, 3
      %p139 = por %p137, %p138
      %p141 = scmp.ne.s32.totalorder %s124, %s140
      %p142 = scmp.eq.s32.totalorder %s22, 0
      %p143 = por %p141, %p142
      %s144 = ssub.s32 %s16, %s23
      %p145 = scmp.eq.s32.totalorder %s144, 0
      %s147 = sadd.s32 %s146, 1
      %s148 = scalar_select %p145, %s146, %s147
      %p151 = pneg %p145
      %p152 = scmp.eq.s32.totalorder %s16, 3
      %p153 = por %p151, %p152
      %p154 = scmp.ne.s32.totalorder %s146, %s149
      %p155 = scmp.eq.s32.totalorder %s16, 0
      %p156 = por %p154, %p155
      %p157 = scmp.ne.s32.totalorder %s146, %s149
      %p158 = scmp.eq.s32.totalorder %s21, 3
      %p159 = por %p157, %p158
      %p160 = scmp.ne.s32.totalorder %s149, %s150
      %p161 = scmp.eq.s32.totalorder %s21, 0
      %p162 = por %p160, %p161
      %p163 = scmp.ne.s32.totalorder %s149, %s150
      %p164 = scmp.eq.s32.totalorder %s22, 3
      %p165 = por %p163, %p164
      %p167 = scmp.ne.s32.totalorder %s150, %s166
      %p168 = scmp.eq.s32.totalorder %s22, 0
      %p169 = por %p167, %p168
      %p170 = scmp.le.s32.totalorder 1, %s16
      %p171 = scmp.lt.s32.totalorder %s16, 5
      %p172 = pnand %p170, %p171
      %p173 = pneg %p172
      // Predicated region
      $region9: #{input_forward.2} parent=5 // pred_check
        _
      $region10: #{input_forward.2} parent=5 // pred_check_branch
        %175 = sbr.rel (%p172) target = $region12
      $region11: #{input_forward.2} parent=5 // pred_region
        %s176 = ssub.s32 %s16, 1
        // Predicated region
        $region13: #{input_forward.2} parent=11 // pred_check
          %p177 = pneg %p63
        $region14: #{input_forward.2} parent=11 // pred_check_branch
          %179 = sbr.rel (%p177) target = $region16
        $region15: #{input_forward.2} parent=11 // pred_region
          %s181 = ssub.s32 256, 256
          %182 = vsyncadd [#allocation5], %s181
          %s183 = sshll.u32 [#allocation4], 4
          %s184 = int_to_ptr.vmem [resolvable:$true] %s183
          %189 = dma.hbm_to_vmem [thread:$0]  %s1, 256, %s184, [#allocation5], 128, 128, 8
        $region16: #{input_forward.2} parent=11 // pred_fallthru
          _
        // Predicated region
        $region17: #{input_forward.2} parent=11 // pred_check
          %p190 = pneg %p84
        $region18: #{input_forward.2} parent=11 // pred_check_branch
          %192 = sbr.rel (%p190) target = $region20
        $region19: #{input_forward.2} parent=11 // pred_region
          %s194 = ssub.s32 256, 256
          %195 = vsyncadd [#allocation5], %s194
          %s196 = sshll.u32 [#allocation6], 4
          %s197 = int_to_ptr.vmem [resolvable:$true] %s196
          %202 = dma.hbm_to_vmem [thread:$0]  %s2, 256, %s197, [#allocation5], 128, 128, 8
        $region20: #{input_forward.2} parent=11 // pred_fallthru
          _
      $region12: #{input_forward.2} parent=5 // pred_fallthru
        _
      %p203 = scmp.lt.s32.totalorder %s16, 4
      // Predicated region
      $region21: #{input_forward.2} parent=5 // pred_check
        %p204 = pneg %p203
      $region22: #{input_forward.2} parent=5 // pred_check_branch
        %206 = sbr.rel (%p204) target = $region24
      $region23: #{input_forward.2} parent=5 // pred_region
        // Predicated region
        $region25: #{input_forward.2} parent=23 // pred_check
          %p207 = pneg %p36
        $region26: #{input_forward.2} parent=23 // pred_check_branch
          %209 = sbr.rel (%p207) target = $region28
        $region27: #{input_forward.2} parent=23 // pred_region
          %s210 = sand.u32 %s26, 1
          %s211 = scalar_lea.sflag [#allocation3], %s210
          %s212 = sand.u32 %s26, 1
          %s213 = smul.addr %s212, 64
          %s214 = scalar_lea.vmem [#allocation2], %s213
          %s216 = ssub.s32 1024, 1024
          %217 = vsyncadd %s211, %s216
          %s218 = smul.addr %s16, 8
          %s219 = smul.addr %s218, 128
          %s220 = scalar_lea.hbm %s0, %s219
          %s221 = sshll.u32 %s214, 4
          %s222 = int_to_ptr.vmem [resolvable:$true] %s221
          %227 = dma.hbm_to_vmem [thread:$0]  %s220, 1024, %s222, %s211, 128, 128, 8
        $region28: #{input_forward.2} parent=23 // pred_fallthru
          _
      $region24: #{input_forward.2} parent=5 // pred_fallthru
        _
      %p228 = scmp.le.s32.totalorder 1, %s16
      %p229 = scmp.lt.s32.totalorder %s16, 5
      %p230 = pnand %p228, %p229
      %p231 = pneg %p230
      // Predicated region
      $region29: #{input_forward.2} parent=5 // pred_check
        _
      $region30: #{input_forward.2} parent=5 // pred_check_branch
        %233 = sbr.rel (%p230) target = $region32
      $region31: #{input_forward.2} parent=5 // pred_region
        %s234 = ssub.s32 %s16, 1
        %s235 = sand.u32 %s29, 1
        %s236 = scalar_lea.sflag [#allocation3], %s235
        %s237 = sand.u32 %s29, 1
        %s238 = smul.addr %s237, 64
        %s239 = scalar_lea.vmem [#allocation2], %s238
        // Predicated region
        $region33: #{input_forward.2} parent=31 // pred_check
          %p240 = pneg %p42
        $region34: #{input_forward.2} parent=31 // pred_check_branch
          %242 = sbr.rel (%p240) target = $region36
        $region35: #{input_forward.2} parent=31 // pred_region
          %243 = dma.done %s236, 1024
        $region36: #{input_forward.2} parent=31 // pred_fallthru
          _
        // Predicated region
        $region37: #{input_forward.2} parent=31 // pred_check
          %p244 = pneg %p63
        $region38: #{input_forward.2} parent=31 // pred_check_branch
          %246 = sbr.rel (%p244) target = $region40
        $region39: #{input_forward.2} parent=31 // pred_region
          %247 = dma.done [#allocation5], 256
        $region40: #{input_forward.2} parent=31 // pred_fallthru
          _
        // Predicated region
        $region41: #{input_forward.2} parent=31 // pred_check
          %p248 = pneg %p84
        $region42: #{input_forward.2} parent=31 // pred_check_branch
          %250 = sbr.rel (%p248) target = $region44
        $region43: #{input_forward.2} parent=31 // pred_region
          %251 = dma.done [#allocation5], 256
        $region44: #{input_forward.2} parent=31 // pred_fallthru
          _
        %s252 = sand.u32 %s29, 1
        %s253 = scalar_lea.sflag [#allocation3], %s252
        %s254 = sand.u32 %s29, 1
        %s255 = smul.addr %s254, 64
        %s256 = scalar_lea.vmem [#allocation2], %s255
        %p257 = pneg %p42
        %p258 = pneg %p39
        %p259 = pneg %p63
        %p260 = pneg %p60
        %p261 = pneg %p84
        %p262 = pneg %p81
        %p263 = pneg %p110
        %p264 = pneg %p107
        %p265 = scmp.lt.s32.totalorder %s21, 3
        %s266 = scalar_select %p265, %s21, 3
        %s267 = smul.addr %s266, 24
        %s268 = smul.addr %s267, 8
        %s269 = scalar_lea.vmem %s3, %s268
        %p270 = pneg %p136
        %p271 = pneg %p133
        %p272 = scmp.lt.s32.totalorder %s21, 3
        %s273 = scalar_select %p272, %s21, 3
        %s274 = smul.addr %s273, 2
        %s275 = smul.addr %s274, 8
        %s276 = scalar_lea.vmem %s4, %s275
        %p277 = pneg %p162
        %p278 = pneg %p159
        %p279 = scmp.lt.s32.totalorder %s21, 3
        %s280 = scalar_select %p279, %s21, 3
        %s281 = smul.addr %s280, 2
        %s282 = smul.addr %s281, 8
        %s283 = scalar_lea.vmem %s5, %s282
        %p284 = scmp.lt.s32.totalorder %s21, 3
        %s285 = scalar_select %p284, %s21, 3
        %s286 = smul.addr %s285, 24
        %s287 = smul.addr %s286, 8
        %s288 = scalar_lea.vmem %s3, %s287
        %p289 = scmp.lt.s32.totalorder %s21, 3
        %s290 = scalar_select %p289, %s21, 3
        %s291 = smul.addr %s290, 2
        %s292 = smul.addr %s291, 8
        %s293 = scalar_lea.vmem %s4, %s292
        %p294 = scmp.lt.s32.totalorder %s21, 3
        %s295 = scalar_select %p294, %s21, 3
        %s296 = smul.addr %s295, 2
        %s297 = smul.addr %s296, 8
        %s298 = scalar_lea.vmem %s5, %s297
        %v299 = vld [vmem:[#allocation4] sm:$0xff]
        %v300 = vld [vmem:[#allocation4 + $0x8] sm:$0x3]
        %v301 = vld [vmem:[#allocation6] sm:$0xff]
        %v302 = vld [vmem:[#allocation6 + $0x8] sm:$0xff]
        %v303 = vld [vmem:[%s239] sm:$0xff]
        %s304 = scalar_lea.vmem %s239, 8 [#allocation2]
        %v305 = vld [vmem:[%s304] sm:$0xff]
        %v306 = vmul.f32 %v305, 0.0
        %v307 = vadd.f32 %v303, %v306
        %vm308 = vcmask 64512
        %v310 = vsel %vm308, %v299, 0
        %v313 = vsel %vm308, %v300, 0
        %315 = vmatprep.subr.mxu0 0.0
        %316 = vmatpush1.msra.mxu0 %v307
        %317 = vmatprep.subr.mxu0 0.0
        %318 = vmatpush1.msra.mxu0 0.0
        %319 = vmatprep.subr.mxu0 0.0
        %320 = vmatpush1.msra.mxu0 0.0
        %321 = vmatprep.subr.mxu0 0.0
        %322 = vmatpush1.msra.mxu0 0.0
        %323 = vmatprep.subr.mxu0 0.0
        %324 = vmatpush1.msra.mxu0 0.0
        %325 = vmatprep.subr.mxu0 0.0
        %326 = vmatpush1.msra.mxu0 0.0
        %327 = vmatprep.subr.mxu0 0.0
        %328 = vmatpush1.msra.mxu0 0.0
        %329 = vmatprep.subr.mxu0 0.0
        %330 = vmatpush1.msra.mxu0 0.0
        %331 = vmatprep.subr.mxu0 0.0
        %332 = vmatpush1.msra.mxu0 0.0
        %333 = vmatprep.subr.mxu0 0.0
        %334 = vmatpush1.msra.mxu0 0.0
        %335 = vmatprep.subr.mxu0 0.0
        %336 = vmatpush1.msra.mxu0 0.0
        %337 = vmatprep.subr.mxu0 0.0
        %338 = vmatpush1.msra.mxu0 0.0
        %339 = vmatprep.subr.mxu0 0.0
        %340 = vmatpush1.msra.mxu0 0.0
        %341 = vmatprep.subr.mxu0 0.0
        %342 = vmatpush1.msra.mxu0 0.0
        %343 = vmatprep.subr.mxu0 0.0
        %344 = vmatpush1.msra.mxu0 0.0
        %345 = vmatprep.subr.mxu0 0.0
        %346 = vmatpush1.msra.mxu0 0.0
        %347 = vmatprep.subr.mxu0 0.0
        %348 = vmatpush1.msra.mxu0 0.0
        %349 = vmatprep.subr.mxu0 0.0
        %350 = vmatpush1.msra.mxu0 0.0
        %351 = vmatprep.subr.mxu0 0.0
        %352 = vmatpush1.msra.mxu0 0.0
        %353 = vmatprep.subr.mxu0 0.0
        %354 = vmatpush1.msra.mxu0 0.0
        %355 = vmatprep.subr.mxu0 0.0
        %356 = vmatpush1.msra.mxu0 0.0
        %357 = vmatprep.subr.mxu0 0.0
        %358 = vmatpush1.msra.mxu0 0.0
        %359 = vmatprep.subr.mxu0 0.0
        %360 = vmatpush1.msra.mxu0 0.0
        %361 = vmatprep.subr.mxu0 0.0
        %362 = vmatpush1.msra.mxu0 0.0
        %363 = vmatprep.subr.mxu0 0.0
        %364 = vmatpush1.msra.mxu0 0.0
        %365 = vmatprep.subr.mxu0 0.0
        %366 = vmatpush1.msra.mxu0 0.0
        %367 = vmatprep.subr.mxu0 0.0
        %368 = vmatpush1.msra.mxu0 0.0
        %369 = vmatprep.subr.mxu0 0.0
        %370 = vmatpush1.msra.mxu0 0.0
        %371 = vmatprep.subr.mxu0 0.0
        %372 = vmatpush1.msra.mxu0 0.0
        %373 = vmatprep.subr.mxu0 0.0
        %374 = vmatpush1.msra.mxu0 0.0
        %375 = vmatprep.subr.mxu0 0.0
        %376 = vmatpush1.msra.mxu0 0.0
        %377 = vmatprep.subr.mxu0 0.0
        %378 = vmatpush1.msra.mxu0 0.0
        %379 = vmatprep.mubr.f32.mxu0 0.0
        %380 = vmatmul.mubr.f32.gmra.mrb[0].mxu0 %v310
        %v381 = vpop.f32.mrb[0].mxu0
        %v382 = vadd.f32 0.0, %v381
        %v383 = vpop.f32.mrb[0].mxu0
        %384 = vmatprep.mubr.f32.mxu0 0.0
        %385 = vmatmul.mubr.f32.gmra.mrb[0].mxu0 %v313
        %v386 = vpop.f32.mrb[0].mxu0
        %v387 = vadd.f32 0.0, %v386
        %v388 = vpop.f32.mrb[0].mxu0
        %389 = vdwg.mxu0
        %v391 = vsel %vm308, %v382, 0
        %v394 = vsel %vm308, %v387, 0
        %v397 = vsel %vm308, %v301, 0
        %v400 = vsel %vm308, %v302, 0
        %402 = vmatprep.subr.mxu0 0.0
        %403 = vmatpush1.xpose.msra.mxu0 %v397
        %404 = vmatprep.subr.mxu0 0.0
        %405 = vmatpush1.xpose.msra.mxu0 %v400
        %406 = vmatprep.subr.mxu0 0.0
        %407 = vmatpush1.xpose.msra.mxu0 0.0
        %408 = vmatprep.subr.mxu0 0.0
        %409 = vmatpush1.xpose.msra.mxu0 0.0
        %410 = vmatprep.subr.mxu0 0.0
        %411 = vmatpush1.xpose.msra.mxu0 0.0
        %412 = vmatprep.subr.mxu0 0.0
        %413 = vmatpush1.xpose.msra.mxu0 0.0
        %414 = vmatprep.subr.mxu0 0.0
        %415 = vmatpush1.xpose.msra.mxu0 0.0
        %416 = vmatprep.subr.mxu0 0.0
        %417 = vmatpush1.xpose.msra.mxu0 0.0
        %418 = vmatprep.subr.mxu0 0.0
        %419 = vmatpush1.xpose.msra.mxu0 0.0
        %420 = vmatprep.subr.mxu0 0.0
        %421 = vmatpush1.xpose.msra.mxu0 0.0
        %422 = vmatprep.subr.mxu0 0.0
        %423 = vmatpush1.xpose.msra.mxu0 0.0
        %424 = vmatprep.subr.mxu0 0.0
        %425 = vmatpush1.xpose.msra.mxu0 0.0
        %426 = vmatprep.subr.mxu0 0.0
        %427 = vmatpush1.xpose.msra.mxu0 0.0
        %428 = vmatprep.subr.mxu0 0.0
        %429 = vmatpush1.xpose.msra.mxu0 0.0
        %430 = vmatprep.subr.mxu0 0.0
        %431 = vmatpush1.xpose.msra.mxu0 0.0
        %432 = vmatprep.subr.mxu0 0.0
        %433 = vmatpush1.xpose.msra.mxu0 0.0
        %434 = vmatprep.subr.mxu0 0.0
        %435 = vmatpush1.xpose.msra.mxu0 0.0
        %436 = vmatprep.subr.mxu0 0.0
        %437 = vmatpush1.xpose.msra.mxu0 0.0
        %438 = vmatprep.subr.mxu0 0.0
        %439 = vmatpush1.xpose.msra.mxu0 0.0
        %440 = vmatprep.subr.mxu0 0.0
        %441 = vmatpush1.xpose.msra.mxu0 0.0
        %442 = vmatprep.subr.mxu0 0.0
        %443 = vmatpush1.xpose.msra.mxu0 0.0
        %444 = vmatprep.subr.mxu0 0.0
        %445 = vmatpush1.xpose.msra.mxu0 0.0
        %446 = vmatprep.subr.mxu0 0.0
        %447 = vmatpush1.xpose.msra.mxu0 0.0
        %448 = vmatprep.subr.mxu0 0.0
        %449 = vmatpush1.xpose.msra.mxu0 0.0
        %450 = vmatprep.subr.mxu0 0.0
        %451 = vmatpush1.xpose.msra.mxu0 0.0
        %452 = vmatprep.subr.mxu0 0.0
        %453 = vmatpush1.xpose.msra.mxu0 0.0
        %454 = vmatprep.subr.mxu0 0.0
        %455 = vmatpush1.xpose.msra.mxu0 0.0
        %456 = vmatprep.subr.mxu0 0.0
        %457 = vmatpush1.xpose.msra.mxu0 0.0
        %458 = vmatprep.subr.mxu0 0.0
        %459 = vmatpush1.xpose.msra.mxu0 0.0
        %460 = vmatprep.subr.mxu0 0.0
        %461 = vmatpush1.xpose.msra.mxu0 0.0
        %462 = vmatprep.subr.mxu0 0.0
        %463 = vmatpush1.xpose.msra.mxu0 0.0
        %464 = vmatprep.subr.mxu0 0.0
        %465 = vmatpush1.xpose.msra.mxu0 0.0
        %466 = vmatprep.mubr.f32.mxu0 0.0
        %467 = vmatmul.mubr.f32.gmra.mrb[0].mxu0 %v391
        %v468 = vpop.f32.mrb[0].mxu0
        %v469 = vadd.f32 0.0, %v468
        %v470 = vpop.f32.mrb[0].mxu0
        %471 = vmatprep.mubr.f32.mxu0 0.0
        %472 = vmatmul.mubr.f32.gmra.mrb[0].mxu0 %v394
        %v473 = vpop.f32.mrb[0].mxu0
        %v474 = vadd.f32 0.0, %v473
        %v475 = vpop.f32.mrb[0].mxu0
        %476 = vdwg.mxu0
        %v477 = vmax.f32 %v469, -1200.0
        %v478 = vmax.f32 %v474, -1200.0
        %v479 = vmin.f32 %v477, 1200.0
        %v480 = vmin.f32 %v478, 1200.0
        %v481 = vadd.f32 %v479, 0.0
        %v482 = vadd.f32 %v480, 0.0
        %v483 = vmul.f32 %v479, %v479
        %v484 = vmul.f32 %v480, %v480
        %v485 = vadd.f32 %v483, 0.0
        %v486 = vadd.f32 %v484, 0.0
        %vm487 = vcmask 130048
        %488 = vst.msk [vmem:[%s288] sm:$0xff] %vm487, %v479
        %vm489 = vcmask 123904
        %490 = vst.msk [vmem:[%s288 + $0x8] sm:$0x3] %vm489, %v480
        %v491 = vld [vmem:[%s239] sm:$0xff]
        %v492 = vld [vmem:[%s304] sm:$0xff]
        %v493 = vmul.f32 %v491, 0.36363637
        %v494 = vmul.f32 %v492, 0.6363636
        %v495 = vadd.f32 %v493, %v494
        %496 = vmatprep.subr.mxu0 0.0
        %497 = vmatpush1.msra.mxu0 %v495
        %498 = vmatprep.subr.mxu0 0.0
        %499 = vmatpush1.msra.mxu0 0.0
        %500 = vmatprep.subr.mxu0 0.0
        %501 = vmatpush1.msra.mxu0 0.0
        %502 = vmatprep.subr.mxu0 0.0
        %503 = vmatpush1.msra.mxu0 0.0
        %504 = vmatprep.subr.mxu0 0.0
        %505 = vmatpush1.msra.mxu0 0.0
        %506 = vmatprep.subr.mxu0 0.0
        %507 = vmatpush1.msra.mxu0 0.0
        %508 = vmatprep.subr.mxu0 0.0
        %509 = vmatpush1.msra.mxu0 0.0
        %510 = vmatprep.subr.mxu0 0.0
        %511 = vmatpush1.msra.mxu0 0.0
        %512 = vmatprep.subr.mxu0 0.0
        %513 = vmatpush1.msra.mxu0 0.0
        %514 = vmatprep.subr.mxu0 0.0
        %515 = vmatpush1.msra.mxu0 0.0
        %516 = vmatprep.subr.mxu0 0.0
        %517 = vmatpush1.msra.mxu0 0.0
        %518 = vmatprep.subr.mxu0 0.0
        %519 = vmatpush1.msra.mxu0 0.0
        %520 = vmatprep.subr.mxu0 0.0
        %521 = vmatpush1.msra.mxu0 0.0
        %522 = vmatprep.subr.mxu0 0.0
        %523 = vmatpush1.msra.mxu0 0.0
        %524 = vmatprep.subr.mxu0 0.0
        %525 = vmatpush1.msra.mxu0 0.0
        %526 = vmatprep.subr.mxu0 0.0
        %527 = vmatpush1.msra.mxu0 0.0
        %528 = vmatprep.subr.mxu0 0.0
        %529 = vmatpush1.msra.mxu0 0.0
        %530 = vmatprep.subr.mxu0 0.0
        %531 = vmatpush1.msra.mxu0 0.0
        %532 = vmatprep.subr.mxu0 0.0
        %533 = vmatpush1.msra.mxu0 0.0
        %534 = vmatprep.subr.mxu0 0.0
        %535 = vmatpush1.msra.mxu0 0.0
        %536 = vmatprep.subr.mxu0 0.0
        %537 = vmatpush1.msra.mxu0 0.0
        %538 = vmatprep.subr.mxu0 0.0
        %539 = vmatpush1.msra.mxu0 0.0
        %540 = vmatprep.subr.mxu0 0.0
        %541 = vmatpush1.msra.mxu0 0.0
        %542 = vmatprep.subr.mxu0 0.0
        %543 = vmatpush1.msra.mxu0 0.0
        %544 = vmatprep.subr.mxu0 0.0
        %545 = vmatpush1.msra.mxu0 0.0
        %546 = vmatprep.subr.mxu0 0.0
        %547 = vmatpush1.msra.mxu0 0.0
        %548 = vmatprep.subr.mxu0 0.0
        %549 = vmatpush1.msra.mxu0 0.0
        %550 = vmatprep.subr.mxu0 0.0
        %551 = vmatpush1.msra.mxu0 0.0
        %552 = vmatprep.subr.mxu0 0.0
        %553 = vmatpush1.msra.mxu0 0.0
        %554 = vmatprep.subr.mxu0 0.0
        %555 = vmatpush1.msra.mxu0 0.0
        %556 = vmatprep.subr.mxu0 0.0
        %557 = vmatpush1.msra.mxu0 0.0
        %558 = vmatprep.subr.mxu0 0.0
        %559 = vmatpush1.msra.mxu0 0.0
        %560 = vmatprep.mubr.f32.mxu0 0.0
        %561 = vmatmul.mubr.f32.gmra.mrb[0].mxu0 %v310
        %v562 = vpop.f32.mrb[0].mxu0
        %v563 = vadd.f32 0.0, %v562
        %v564 = vpop.f32.mrb[0].mxu0
        %565 = vmatprep.mubr.f32.mxu0 0.0
        %566 = vmatmul.mubr.f32.gmra.mrb[0].mxu0 %v313
        %v567 = vpop.f32.mrb[0].mxu0
        %v568 = vadd.f32 0.0, %v567
        %v569 = vpop.f32.mrb[0].mxu0
        %570 = vdwg.mxu0
        %v572 = vsel %vm308, %v563, 0
        %v575 = vsel %vm308, %v568, 0
        %577 = vmatprep.subr.mxu0 0.0
        %578 = vmatpush1.xpose.msra.mxu0 %v397
        %579 = vmatprep.subr.mxu0 0.0
        %580 = vmatpush1.xpose.msra.mxu0 %v400
        %581 = vmatprep.subr.mxu0 0.0
        %582 = vmatpush1.xpose.msra.mxu0 0.0
        %583 = vmatprep.subr.mxu0 0.0
        %584 = vmatpush1.xpose.msra.mxu0 0.0
        %585 = vmatprep.subr.mxu0 0.0
        %586 = vmatpush1.xpose.msra.mxu0 0.0
        %587 = vmatprep.subr.mxu0 0.0
        %588 = vmatpush1.xpose.msra.mxu0 0.0
        %589 = vmatprep.subr.mxu0 0.0
        %590 = vmatpush1.xpose.msra.mxu0 0.0
        %591 = vmatprep.subr.mxu0 0.0
        %592 = vmatpush1.xpose.msra.mxu0 0.0
        %593 = vmatprep.subr.mxu0 0.0
        %594 = vmatpush1.xpose.msra.mxu0 0.0
        %595 = vmatprep.subr.mxu0 0.0
        %596 = vmatpush1.xpose.msra.mxu0 0.0
        %597 = vmatprep.subr.mxu0 0.0
        %598 = vmatpush1.xpose.msra.mxu0 0.0
        %599 = vmatprep.subr.mxu0 0.0
        %600 = vmatpush1.xpose.msra.mxu0 0.0
        %601 = vmatprep.subr.mxu0 0.0
        %602 = vmatpush1.xpose.msra.mxu0 0.0
        %603 = vmatprep.subr.mxu0 0.0
        %604 = vmatpush1.xpose.msra.mxu0 0.0
        %605 = vmatprep.subr.mxu0 0.0
        %606 = vmatpush1.xpose.msra.mxu0 0.0
        %607 = vmatprep.subr.mxu0 0.0
        %608 = vmatpush1.xpose.msra.mxu0 0.0
        %609 = vmatprep.subr.mxu0 0.0
        %610 = vmatpush1.xpose.msra.mxu0 0.0
        %611 = vmatprep.subr.mxu0 0.0
        %612 = vmatpush1.xpose.msra.mxu0 0.0
        %613 = vmatprep.subr.mxu0 0.0
        %614 = vmatpush1.xpose.msra.mxu0 0.0
        %615 = vmatprep.subr.mxu0 0.0
        %616 = vmatpush1.xpose.msra.mxu0 0.0
        %617 = vmatprep.subr.mxu0 0.0
        %618 = vmatpush1.xpose.msra.mxu0 0.0
        %619 = vmatprep.subr.mxu0 0.0
        %620 = vmatpush1.xpose.msra.mxu0 0.0
        %621 = vmatprep.subr.mxu0 0.0
        %622 = vmatpush1.xpose.msra.mxu0 0.0
        %623 = vmatprep.subr.mxu0 0.0
        %624 = vmatpush1.xpose.msra.mxu0 0.0
        %625 = vmatprep.subr.mxu0 0.0
        %626 = vmatpush1.xpose.msra.mxu0 0.0
        %627 = vmatprep.subr.mxu0 0.0
        %628 = vmatpush1.xpose.msra.mxu0 0.0
        %629 = vmatprep.subr.mxu0 0.0
        %630 = vmatpush1.xpose.msra.mxu0 0.0
        %631 = vmatprep.subr.mxu0 0.0
        %632 = vmatpush1.xpose.msra.mxu0 0.0
        %633 = vmatprep.subr.mxu0 0.0
        %634 = vmatpush1.xpose.msra.mxu0 0.0
        %635 = vmatprep.subr.mxu0 0.0
        %636 = vmatpush1.xpose.msra.mxu0 0.0
        %637 = vmatprep.subr.mxu0 0.0
        %638 = vmatpush1.xpose.msra.mxu0 0.0
        %639 = vmatprep.subr.mxu0 0.0
        %640 = vmatpush1.xpose.msra.mxu0 0.0
        %641 = vmatprep.mubr.f32.mxu0 0.0
        %642 = vmatmul.mubr.f32.gmra.mrb[0].mxu0 %v572
        %v643 = vpop.f32.mrb[0].mxu0
        %v644 = vadd.f32 0.0, %v643
        %v645 = vpop.f32.mrb[0].mxu0
        %646 = vmatprep.mubr.f32.mxu0 0.0
        %647 = vmatmul.mubr.f32.gmra.mrb[0].mxu0 %v575
        %v648 = vpop.f32.mrb[0].mxu0
        %v649 = vadd.f32 0.0, %v648
        %v650 = vpop.f32.mrb[0].mxu0
        %651 = vdwg.mxu0
        %v652 = vmax.f32 %v644, -1200.0
        %v653 = vmax.f32 %v649, -1200.0
        %v654 = vmin.f32 %v652, 1200.0
        %v655 = vmin.f32 %v653, 1200.0
        %v656 = vadd.f32 %v481, %v654
        %v657 = vadd.f32 %v482, %v655
        %v658 = vmul.f32 %v654, %v654
        %v659 = vmul.f32 %v655, %v655
        %v660 = vadd.f32 %v485, %v658
        %v661 = vadd.f32 %v486, %v659
        %s662 = scalar_lea.vmem %s288, 16
        %663 = vst.msk [vmem:[%s662] sm:$0xff] %vm487, %v654
        %664 = vst.msk [vmem:[%s662 + $0x8] sm:$0x3] %vm489, %v655
        %v665 = vld [vmem:[%s304] sm:$0xff]
        %s666 = scalar_lea.vmem %s239, 16 [#allocation2]
        %v667 = vld [vmem:[%s666] sm:$0xff]
        %v668 = vmul.f32 %v665, 0.72727275
        %v669 = vmul.f32 %v667, 0.27272728
        %v670 = vadd.f32 %v668, %v669
        %671 = vmatprep.subr.mxu0 0.0
        %672 = vmatpush1.msra.mxu0 %v670
        %673 = vmatprep.subr.mxu0 0.0
        %674 = vmatpush1.msra.mxu0 0.0
        %675 = vmatprep.subr.mxu0 0.0
        %676 = vmatpush1.msra.mxu0 0.0
        %677 = vmatprep.subr.mxu0 0.0
        %678 = vmatpush1.msra.mxu0 0.0
        %679 = vmatprep.subr.mxu0 0.0
        %680 = vmatpush1.msra.mxu0 0.0
        %681 = vmatprep.subr.mxu0 0.0
        %682 = vmatpush1.msra.mxu0 0.0
        %683 = vmatprep.subr.mxu0 0.0
        %684 = vmatpush1.msra.mxu0 0.0
        %685 = vmatprep.subr.mxu0 0.0
        %686 = vmatpush1.msra.mxu0 0.0
        %687 = vmatprep.subr.mxu0 0.0
        %688 = vmatpush1.msra.mxu0 0.0
        %689 = vmatprep.subr.mxu0 0.0
        %690 = vmatpush1.msra.mxu0 0.0
        %691 = vmatprep.subr.mxu0 0.0
        %692 = vmatpush1.msra.mxu0 0.0
        %693 = vmatprep.subr.mxu0 0.0
        %694 = vmatpush1.msra.mxu0 0.0
        %695 = vmatprep.subr.mxu0 0.0
        %696 = vmatpush1.msra.mxu0 0.0
        %697 = vmatprep.subr.mxu0 0.0
        %698 = vmatpush1.msra.mxu0 0.0
        %699 = vmatprep.subr.mxu0 0.0
        %700 = vmatpush1.msra.mxu0 0.0
        %701 = vmatprep.subr.mxu0 0.0
        %702 = vmatpush1.msra.mxu0 0.0
        %703 = vmatprep.subr.mxu0 0.0
        %704 = vmatpush1.msra.mxu0 0.0
        %705 = vmatprep.subr.mxu0 0.0
        %706 = vmatpush1.msra.mxu0 0.0
        %707 = vmatprep.subr.mxu0 0.0
        %708 = vmatpush1.msra.mxu0 0.0
        %709 = vmatprep.subr.mxu0 0.0
        %710 = vmatpush1.msra.mxu0 0.0
        %711 = vmatprep.subr.mxu0 0.0
        %712 = vmatpush1.msra.mxu0 0.0
        %713 = vmatprep.subr.mxu0 0.0
        %714 = vmatpush1.msra.mxu0 0.0
        %715 = vmatprep.subr.mxu0 0.0
        %716 = vmatpush1.msra.mxu0 0.0
        %717 = vmatprep.subr.mxu0 0.0
        %718 = vmatpush1.msra.mxu0 0.0
        %719 = vmatprep.subr.mxu0 0.0
        %720 = vmatpush1.msra.mxu0 0.0
        %721 = vmatprep.subr.mxu0 0.0
        %722 = vmatpush1.msra.mxu0 0.0
        %723 = vmatprep.subr.mxu0 0.0
        %724 = vmatpush1.msra.mxu0 0.0
        %725 = vmatprep.subr.mxu0 0.0
        %726 = vmatpush1.msra.mxu0 0.0
        %727 = vmatprep.subr.mxu0 0.0
        %728 = vmatpush1.msra.mxu0 0.0
        %729 = vmatprep.subr.mxu0 0.0
        %730 = vmatpush1.msra.mxu0 0.0
        %731 = vmatprep.subr.mxu0 0.0
        %732 = vmatpush1.msra.mxu0 0.0
        %733 = vmatprep.subr.mxu0 0.0
        %734 = vmatpush1.msra.mxu0 0.0
        %735 = vmatprep.mubr.f32.mxu0 0.0
        %736 = vmatmul.mubr.f32.gmra.mrb[0].mxu0 %v310
        %v737 = vpop.f32.mrb[0].mxu0
        %v738 = vadd.f32 0.0, %v737
        %v739 = vpop.f32.mrb[0].mxu0
        %740 = vmatprep.mubr.f32.mxu0 0.0
        %741 = vmatmul.mubr.f32.gmra.mrb[0].mxu0 %v313
        %v742 = vpop.f32.mrb[0].mxu0
        %v743 = vadd.f32 0.0, %v742
        %v744 = vpop.f32.mrb[0].mxu0
        %745 = vdwg.mxu0
        %v747 = vsel %vm308, %v738, 0
        %v750 = vsel %vm308, %v743, 0
        %752 = vmatprep.subr.mxu0 0.0
        %753 = vmatpush1.xpose.msra.mxu0 %v397
        %754 = vmatprep.subr.mxu0 0.0
        %755 = vmatpush1.xpose.msra.mxu0 %v400
        %756 = vmatprep.subr.mxu0 0.0
        %757 = vmatpush1.xpose.msra.mxu0 0.0
        %758 = vmatprep.subr.mxu0 0.0
        %759 = vmatpush1.xpose.msra.mxu0 0.0
        %760 = vmatprep.subr.mxu0 0.0
        %761 = vmatpush1.xpose.msra.mxu0 0.0
        %762 = vmatprep.subr.mxu0 0.0
        %763 = vmatpush1.xpose.msra.mxu0 0.0
        %764 = vmatprep.subr.mxu0 0.0
        %765 = vmatpush1.xpose.msra.mxu0 0.0
        %766 = vmatprep.subr.mxu0 0.0
        %767 = vmatpush1.xpose.msra.mxu0 0.0
        %768 = vmatprep.subr.mxu0 0.0
        %769 = vmatpush1.xpose.msra.mxu0 0.0
        %770 = vmatprep.subr.mxu0 0.0
        %771 = vmatpush1.xpose.msra.mxu0 0.0
        %772 = vmatprep.subr.mxu0 0.0
        %773 = vmatpush1.xpose.msra.mxu0 0.0
        %774 = vmatprep.subr.mxu0 0.0
        %775 = vmatpush1.xpose.msra.mxu0 0.0
        %776 = vmatprep.subr.mxu0 0.0
        %777 = vmatpush1.xpose.msra.mxu0 0.0
        %778 = vmatprep.subr.mxu0 0.0
        %779 = vmatpush1.xpose.msra.mxu0 0.0
        %780 = vmatprep.subr.mxu0 0.0
        %781 = vmatpush1.xpose.msra.mxu0 0.0
        %782 = vmatprep.subr.mxu0 0.0
        %783 = vmatpush1.xpose.msra.mxu0 0.0
        %784 = vmatprep.subr.mxu0 0.0
        %785 = vmatpush1.xpose.msra.mxu0 0.0
        %786 = vmatprep.subr.mxu0 0.0
        %787 = vmatpush1.xpose.msra.mxu0 0.0
        %788 = vmatprep.subr.mxu0 0.0
        %789 = vmatpush1.xpose.msra.mxu0 0.0
        %790 = vmatprep.subr.mxu0 0.0
        %791 = vmatpush1.xpose.msra.mxu0 0.0
        %792 = vmatprep.subr.mxu0 0.0
        %793 = vmatpush1.xpose.msra.mxu0 0.0
        %794 = vmatprep.subr.mxu0 0.0
        %795 = vmatpush1.xpose.msra.mxu0 0.0
        %796 = vmatprep.subr.mxu0 0.0
        %797 = vmatpush1.xpose.msra.mxu0 0.0
        %798 = vmatprep.subr.mxu0 0.0
        %799 = vmatpush1.xpose.msra.mxu0 0.0
        %800 = vmatprep.subr.mxu0 0.0
        %801 = vmatpush1.xpose.msra.mxu0 0.0
        %802 = vmatprep.subr.mxu0 0.0
        %803 = vmatpush1.xpose.msra.mxu0 0.0
        %804 = vmatprep.subr.mxu0 0.0
        %805 = vmatpush1.xpose.msra.mxu0 0.0
        %806 = vmatprep.subr.mxu0 0.0
        %807 = vmatpush1.xpose.msra.mxu0 0.0
        %808 = vmatprep.subr.mxu0 0.0
        %809 = vmatpush1.xpose.msra.mxu0 0.0
        %810 = vmatprep.subr.mxu0 0.0
        %811 = vmatpush1.xpose.msra.mxu0 0.0
        %812 = vmatprep.subr.mxu0 0.0
        %813 = vmatpush1.xpose.msra.mxu0 0.0
        %814 = vmatprep.subr.mxu0 0.0
        %815 = vmatpush1.xpose.msra.mxu0 0.0
        %816 = vmatprep.mubr.f32.mxu0 0.0
        %817 = vmatmul.mubr.f32.gmra.mrb[0].mxu0 %v747
        %v818 = vpop.f32.mrb[0].mxu0
        %v819 = vadd.f32 0.0, %v818
        %v820 = vpop.f32.mrb[0].mxu0
        %821 = vmatprep.mubr.f32.mxu0 0.0
        %822 = vmatmul.mubr.f32.gmra.mrb[0].mxu0 %v750
        %v823 = vpop.f32.mrb[0].mxu0
        %v824 = vadd.f32 0.0, %v823
        %v825 = vpop.f32.mrb[0].mxu0
        %826 = vdwg.mxu0
        %v827 = vmax.f32 %v819, -1200.0
        %v828 = vmax.f32 %v824, -1200.0
        %v829 = vmin.f32 %v827, 1200.0
        %v830 = vmin.f32 %v828, 1200.0
        %v831 = vadd.f32 %v656, %v829
        %v832 = vadd.f32 %v657, %v830
        %v833 = vmul.f32 %v829, %v829
        %v834 = vmul.f32 %v830, %v830
        %v835 = vadd.f32 %v660, %v833
        %v836 = vadd.f32 %v661, %v834
        %s837 = scalar_lea.vmem %s288, 32
        %838 = vst.msk [vmem:[%s837] sm:$0xff] %vm487, %v829
        %839 = vst.msk [vmem:[%s837 + $0x8] sm:$0x3] %vm489, %v830
        %v840 = vld [vmem:[%s304] sm:$0xff]
        %v841 = vld [vmem:[%s666] sm:$0xff]
        %v842 = vmul.f32 %v840, 0.09090909
        %v843 = vmul.f32 %v841, 0.90909094
        %v844 = vadd.f32 %v842, %v843
        %845 = vmatprep.subr.mxu0 0.0
        %846 = vmatpush1.msra.mxu0 %v844
        %847 = vmatprep.subr.mxu0 0.0
        %848 = vmatpush1.msra.mxu0 0.0
        %849 = vmatprep.subr.mxu0 0.0
        %850 = vmatpush1.msra.mxu0 0.0
        %851 = vmatprep.subr.mxu0 0.0
        %852 = vmatpush1.msra.mxu0 0.0
        %853 = vmatprep.subr.mxu0 0.0
        %854 = vmatpush1.msra.mxu0 0.0
        %855 = vmatprep.subr.mxu0 0.0
        %856 = vmatpush1.msra.mxu0 0.0
        %857 = vmatprep.subr.mxu0 0.0
        %858 = vmatpush1.msra.mxu0 0.0
        %859 = vmatprep.subr.mxu0 0.0
        %860 = vmatpush1.msra.mxu0 0.0
        %861 = vmatprep.subr.mxu0 0.0
        %862 = vmatpush1.msra.mxu0 0.0
        %863 = vmatprep.subr.mxu0 0.0
        %864 = vmatpush1.msra.mxu0 0.0
        %865 = vmatprep.subr.mxu0 0.0
        %866 = vmatpush1.msra.mxu0 0.0
        %867 = vmatprep.subr.mxu0 0.0
        %868 = vmatpush1.msra.mxu0 0.0
        %869 = vmatprep.subr.mxu0 0.0
        %870 = vmatpush1.msra.mxu0 0.0
        %871 = vmatprep.subr.mxu0 0.0
        %872 = vmatpush1.msra.mxu0 0.0
        %873 = vmatprep.subr.mxu0 0.0
        %874 = vmatpush1.msra.mxu0 0.0
        %875 = vmatprep.subr.mxu0 0.0
        %876 = vmatpush1.msra.mxu0 0.0
        %877 = vmatprep.subr.mxu0 0.0
        %878 = vmatpush1.msra.mxu0 0.0
        %879 = vmatprep.subr.mxu0 0.0
        %880 = vmatpush1.msra.mxu0 0.0
        %881 = vmatprep.subr.mxu0 0.0
        %882 = vmatpush1.msra.mxu0 0.0
        %883 = vmatprep.subr.mxu0 0.0
        %884 = vmatpush1.msra.mxu0 0.0
        %885 = vmatprep.subr.mxu0 0.0
        %886 = vmatpush1.msra.mxu0 0.0
        %887 = vmatprep.subr.mxu0 0.0
        %888 = vmatpush1.msra.mxu0 0.0
        %889 = vmatprep.subr.mxu0 0.0
        %890 = vmatpush1.msra.mxu0 0.0
        %891 = vmatprep.subr.mxu0 0.0
        %892 = vmatpush1.msra.mxu0 0.0
        %893 = vmatprep.subr.mxu0 0.0
        %894 = vmatpush1.msra.mxu0 0.0
        %895 = vmatprep.subr.mxu0 0.0
        %896 = vmatpush1.msra.mxu0 0.0
        %897 = vmatprep.subr.mxu0 0.0
        %898 = vmatpush1.msra.mxu0 0.0
        %899 = vmatprep.subr.mxu0 0.0
        %900 = vmatpush1.msra.mxu0 0.0
        %901 = vmatprep.subr.mxu0 0.0
        %902 = vmatpush1.msra.mxu0 0.0
        %903 = vmatprep.subr.mxu0 0.0
        %904 = vmatpush1.msra.mxu0 0.0
        %905 = vmatprep.subr.mxu0 0.0
        %906 = vmatpush1.msra.mxu0 0.0
        %907 = vmatprep.subr.mxu0 0.0
        %908 = vmatpush1.msra.mxu0 0.0
        %909 = vmatprep.mubr.f32.mxu0 0.0
        %910 = vmatmul.mubr.f32.gmra.mrb[0].mxu0 %v310
        %v911 = vpop.f32.mrb[0].mxu0
        %v912 = vadd.f32 0.0, %v911
        %v913 = vpop.f32.mrb[0].mxu0
        %914 = vmatprep.mubr.f32.mxu0 0.0
        %915 = vmatmul.mubr.f32.gmra.mrb[0].mxu0 %v313
        %v916 = vpop.f32.mrb[0].mxu0
        %v917 = vadd.f32 0.0, %v916
        %v918 = vpop.f32.mrb[0].mxu0
        %919 = vdwg.mxu0
        %v921 = vsel %vm308, %v912, 0
        %v924 = vsel %vm308, %v917, 0
        %926 = vmatprep.subr.mxu0 0.0
        %927 = vmatpush1.xpose.msra.mxu0 %v397
        %928 = vmatprep.subr.mxu0 0.0
        %929 = vmatpush1.xpose.msra.mxu0 %v400
        %930 = vmatprep.subr.mxu0 0.0
        %931 = vmatpush1.xpose.msra.mxu0 0.0
        %932 = vmatprep.subr.mxu0 0.0
        %933 = vmatpush1.xpose.msra.mxu0 0.0
        %934 = vmatprep.subr.mxu0 0.0
        %935 = vmatpush1.xpose.msra.mxu0 0.0
        %936 = vmatprep.subr.mxu0 0.0
        %937 = vmatpush1.xpose.msra.mxu0 0.0
        %938 = vmatprep.subr.mxu0 0.0
        %939 = vmatpush1.xpose.msra.mxu0 0.0
        %940 = vmatprep.subr.mxu0 0.0
        %941 = vmatpush1.xpose.msra.mxu0 0.0
        %942 = vmatprep.subr.mxu0 0.0
        %943 = vmatpush1.xpose.msra.mxu0 0.0
        %944 = vmatprep.subr.mxu0 0.0
        %945 = vmatpush1.xpose.msra.mxu0 0.0
        %946 = vmatprep.subr.mxu0 0.0
        %947 = vmatpush1.xpose.msra.mxu0 0.0
        %948 = vmatprep.subr.mxu0 0.0
        %949 = vmatpush1.xpose.msra.mxu0 0.0
        %950 = vmatprep.subr.mxu0 0.0
        %951 = vmatpush1.xpose.msra.mxu0 0.0
        %952 = vmatprep.subr.mxu0 0.0
        %953 = vmatpush1.xpose.msra.mxu0 0.0
        %954 = vmatprep.subr.mxu0 0.0
        %955 = vmatpush1.xpose.msra.mxu0 0.0
        %956 = vmatprep.subr.mxu0 0.0
        %957 = vmatpush1.xpose.msra.mxu0 0.0
        %958 = vmatprep.subr.mxu0 0.0
        %959 = vmatpush1.xpose.msra.mxu0 0.0
        %960 = vmatprep.subr.mxu0 0.0
        %961 = vmatpush1.xpose.msra.mxu0 0.0
        %962 = vmatprep.subr.mxu0 0.0
        %963 = vmatpush1.xpose.msra.mxu0 0.0
        %964 = vmatprep.subr.mxu0 0.0
        %965 = vmatpush1.xpose.msra.mxu0 0.0
        %966 = vmatprep.subr.mxu0 0.0
        %967 = vmatpush1.xpose.msra.mxu0 0.0
        %968 = vmatprep.subr.mxu0 0.0
        %969 = vmatpush1.xpose.msra.mxu0 0.0
        %970 = vmatprep.subr.mxu0 0.0
        %971 = vmatpush1.xpose.msra.mxu0 0.0
        %972 = vmatprep.subr.mxu0 0.0
        %973 = vmatpush1.xpose.msra.mxu0 0.0
        %974 = vmatprep.subr.mxu0 0.0
        %975 = vmatpush1.xpose.msra.mxu0 0.0
        %976 = vmatprep.subr.mxu0 0.0
        %977 = vmatpush1.xpose.msra.mxu0 0.0
        %978 = vmatprep.subr.mxu0 0.0
        %979 = vmatpush1.xpose.msra.mxu0 0.0
        %980 = vmatprep.subr.mxu0 0.0
        %981 = vmatpush1.xpose.msra.mxu0 0.0
        %982 = vmatprep.subr.mxu0 0.0
        %983 = vmatpush1.xpose.msra.mxu0 0.0
        %984 = vmatprep.subr.mxu0 0.0
        %985 = vmatpush1.xpose.msra.mxu0 0.0
        %986 = vmatprep.subr.mxu0 0.0
        %987 = vmatpush1.xpose.msra.mxu0 0.0
        %988 = vmatprep.subr.mxu0 0.0
        %989 = vmatpush1.xpose.msra.mxu0 0.0
        %990 = vmatprep.mubr.f32.mxu0 0.0
        %991 = vmatmul.mubr.f32.gmra.mrb[0].mxu0 %v921
        %v992 = vpop.f32.mrb[0].mxu0
        %v993 = vadd.f32 0.0, %v992
        %v994 = vpop.f32.mrb[0].mxu0
        %995 = vmatprep.mubr.f32.mxu0 0.0
        %996 = vmatmul.mubr.f32.gmra.mrb[0].mxu0 %v924
        %v997 = vpop.f32.mrb[0].mxu0
        %v998 = vadd.f32 0.0, %v997
        %v999 = vpop.f32.mrb[0].mxu0
        %1000 = vdwg.mxu0
        %v1001 = vmax.f32 %v993, -1200.0
        %v1002 = vmax.f32 %v998, -1200.0
        %v1003 = vmin.f32 %v1001, 1200.0
        %v1004 = vmin.f32 %v1002, 1200.0
        %v1005 = vadd.f32 %v831, %v1003
        %v1006 = vadd.f32 %v832, %v1004
        %v1007 = vmul.f32 %v1003, %v1003
        %v1008 = vmul.f32 %v1004, %v1004
        %v1009 = vadd.f32 %v835, %v1007
        %v1010 = vadd.f32 %v836, %v1008
        %s1011 = scalar_lea.vmem %s288, 48
        %1012 = vst.msk [vmem:[%s1011] sm:$0xff] %vm487, %v1003
        %1013 = vst.msk [vmem:[%s1011 + $0x8] sm:$0x3] %vm489, %v1004
        %v1014 = vld [vmem:[%s666] sm:$0xff]
        %s1015 = scalar_lea.vmem %s239, 24 [#allocation2]
        %v1016 = vld [vmem:[%s1015] sm:$0xff]
        %v1017 = vmul.f32 %v1014, 0.45454547
        %v1018 = vmul.f32 %v1016, 0.54545456
        %v1019 = vadd.f32 %v1017, %v1018
        %1020 = vmatprep.subr.mxu0 0.0
        %1021 = vmatpush1.msra.mxu0 %v1019
        %1022 = vmatprep.subr.mxu0 0.0
        %1023 = vmatpush1.msra.mxu0 0.0
        %1024 = vmatprep.subr.mxu0 0.0
        %1025 = vmatpush1.msra.mxu0 0.0
        %1026 = vmatprep.subr.mxu0 0.0
        %1027 = vmatpush1.msra.mxu0 0.0
        %1028 = vmatprep.subr.mxu0 0.0
        %1029 = vmatpush1.msra.mxu0 0.0
        %1030 = vmatprep.subr.mxu0 0.0
        %1031 = vmatpush1.msra.mxu0 0.0
        %1032 = vmatprep.subr.mxu0 0.0
        %1033 = vmatpush1.msra.mxu0 0.0
        %1034 = vmatprep.subr.mxu0 0.0
        %1035 = vmatpush1.msra.mxu0 0.0
        %1036 = vmatprep.subr.mxu0 0.0
        %1037 = vmatpush1.msra.mxu0 0.0
        %1038 = vmatprep.subr.mxu0 0.0
        %1039 = vmatpush1.msra.mxu0 0.0
        %1040 = vmatprep.subr.mxu0 0.0
        %1041 = vmatpush1.msra.mxu0 0.0
        %1042 = vmatprep.subr.mxu0 0.0
        %1043 = vmatpush1.msra.mxu0 0.0
        %1044 = vmatprep.subr.mxu0 0.0
        %1045 = vmatpush1.msra.mxu0 0.0
        %1046 = vmatprep.subr.mxu0 0.0
        %1047 = vmatpush1.msra.mxu0 0.0
        %1048 = vmatprep.subr.mxu0 0.0
        %1049 = vmatpush1.msra.mxu0 0.0
        %1050 = vmatprep.subr.mxu0 0.0
        %1051 = vmatpush1.msra.mxu0 0.0
        %1052 = vmatprep.subr.mxu0 0.0
        %1053 = vmatpush1.msra.mxu0 0.0
        %1054 = vmatprep.subr.mxu0 0.0
        %1055 = vmatpush1.msra.mxu0 0.0
        %1056 = vmatprep.subr.mxu0 0.0
        %1057 = vmatpush1.msra.mxu0 0.0
        %1058 = vmatprep.subr.mxu0 0.0
        %1059 = vmatpush1.msra.mxu0 0.0
        %1060 = vmatprep.subr.mxu0 0.0
        %1061 = vmatpush1.msra.mxu0 0.0
        %1062 = vmatprep.subr.mxu0 0.0
        %1063 = vmatpush1.msra.mxu0 0.0
        %1064 = vmatprep.subr.mxu0 0.0
        %1065 = vmatpush1.msra.mxu0 0.0
        %1066 = vmatprep.subr.mxu0 0.0
        %1067 = vmatpush1.msra.mxu0 0.0
        %1068 = vmatprep.subr.mxu0 0.0
        %1069 = vmatpush1.msra.mxu0 0.0
        %1070 = vmatprep.subr.mxu0 0.0
        %1071 = vmatpush1.msra.mxu0 0.0
        %1072 = vmatprep.subr.mxu0 0.0
        %1073 = vmatpush1.msra.mxu0 0.0
        %1074 = vmatprep.subr.mxu0 0.0
        %1075 = vmatpush1.msra.mxu0 0.0
        %1076 = vmatprep.subr.mxu0 0.0
        %1077 = vmatpush1.msra.mxu0 0.0
        %1078 = vmatprep.subr.mxu0 0.0
        %1079 = vmatpush1.msra.mxu0 0.0
        %1080 = vmatprep.subr.mxu0 0.0
        %1081 = vmatpush1.msra.mxu0 0.0
        %1082 = vmatprep.subr.mxu0 0.0
        %1083 = vmatpush1.msra.mxu0 0.0
        %1084 = vmatprep.mubr.f32.mxu0 0.0
        %1085 = vmatmul.mubr.f32.gmra.mrb[0].mxu0 %v310
        %v1086 = vpop.f32.mrb[0].mxu0
        %v1087 = vadd.f32 0.0, %v1086
        %v1088 = vpop.f32.mrb[0].mxu0
        %1089 = vmatprep.mubr.f32.mxu0 0.0
        %1090 = vmatmul.mubr.f32.gmra.mrb[0].mxu0 %v313
        %v1091 = vpop.f32.mrb[0].mxu0
        %v1092 = vadd.f32 0.0, %v1091
        %v1093 = vpop.f32.mrb[0].mxu0
        %1094 = vdwg.mxu0
        %v1096 = vsel %vm308, %v1087, 0
        %v1099 = vsel %vm308, %v1092, 0
        %1101 = vmatprep.subr.mxu0 0.0
        %1102 = vmatpush1.xpose.msra.mxu0 %v397
        %1103 = vmatprep.subr.mxu0 0.0
        %1104 = vmatpush1.xpose.msra.mxu0 %v400
        %1105 = vmatprep.subr.mxu0 0.0
        %1106 = vmatpush1.xpose.msra.mxu0 0.0
        %1107 = vmatprep.subr.mxu0 0.0
        %1108 = vmatpush1.xpose.msra.mxu0 0.0
        %1109 = vmatprep.subr.mxu0 0.0
        %1110 = vmatpush1.xpose.msra.mxu0 0.0
        %1111 = vmatprep.subr.mxu0 0.0
        %1112 = vmatpush1.xpose.msra.mxu0 0.0
        %1113 = vmatprep.subr.mxu0 0.0
        %1114 = vmatpush1.xpose.msra.mxu0 0.0
        %1115 = vmatprep.subr.mxu0 0.0
        %1116 = vmatpush1.xpose.msra.mxu0 0.0
        %1117 = vmatprep.subr.mxu0 0.0
        %1118 = vmatpush1.xpose.msra.mxu0 0.0
        %1119 = vmatprep.subr.mxu0 0.0
        %1120 = vmatpush1.xpose.msra.mxu0 0.0
        %1121 = vmatprep.subr.mxu0 0.0
        %1122 = vmatpush1.xpose.msra.mxu0 0.0
        %1123 = vmatprep.subr.mxu0 0.0
        %1124 = vmatpush1.xpose.msra.mxu0 0.0
        %1125 = vmatprep.subr.mxu0 0.0
        %1126 = vmatpush1.xpose.msra.mxu0 0.0
        %1127 = vmatprep.subr.mxu0 0.0
        %1128 = vmatpush1.xpose.msra.mxu0 0.0
        %1129 = vmatprep.subr.mxu0 0.0
        %1130 = vmatpush1.xpose.msra.mxu0 0.0
        %1131 = vmatprep.subr.mxu0 0.0
        %1132 = vmatpush1.xpose.msra.mxu0 0.0
        %1133 = vmatprep.subr.mxu0 0.0
        %1134 = vmatpush1.xpose.msra.mxu0 0.0
        %1135 = vmatprep.subr.mxu0 0.0
        %1136 = vmatpush1.xpose.msra.mxu0 0.0
        %1137 = vmatprep.subr.mxu0 0.0
        %1138 = vmatpush1.xpose.msra.mxu0 0.0
        %1139 = vmatprep.subr.mxu0 0.0
        %1140 = vmatpush1.xpose.msra.mxu0 0.0
        %1141 = vmatprep.subr.mxu0 0.0
        %1142 = vmatpush1.xpose.msra.mxu0 0.0
        %1143 = vmatprep.subr.mxu0 0.0
        %1144 = vmatpush1.xpose.msra.mxu0 0.0
        %1145 = vmatprep.subr.mxu0 0.0
        %1146 = vmatpush1.xpose.msra.mxu0 0.0
        %1147 = vmatprep.subr.mxu0 0.0
        %1148 = vmatpush1.xpose.msra.mxu0 0.0
        %1149 = vmatprep.subr.mxu0 0.0
        %1150 = vmatpush1.xpose.msra.mxu0 0.0
        %1151 = vmatprep.subr.mxu0 0.0
        %1152 = vmatpush1.xpose.msra.mxu0 0.0
        %1153 = vmatprep.subr.mxu0 0.0
        %1154 = vmatpush1.xpose.msra.mxu0 0.0
        %1155 = vmatprep.subr.mxu0 0.0
        %1156 = vmatpush1.xpose.msra.mxu0 0.0
        %1157 = vmatprep.subr.mxu0 0.0
        %1158 = vmatpush1.xpose.msra.mxu0 0.0
        %1159 = vmatprep.subr.mxu0 0.0
        %1160 = vmatpush1.xpose.msra.mxu0 0.0
        %1161 = vmatprep.subr.mxu0 0.0
        %1162 = vmatpush1.xpose.msra.mxu0 0.0
        %1163 = vmatprep.subr.mxu0 0.0
        %1164 = vmatpush1.xpose.msra.mxu0 0.0
        %1165 = vmatprep.mubr.f32.mxu0 0.0
        %1166 = vmatmul.mubr.f32.gmra.mrb[0].mxu0 %v1096
        %v1167 = vpop.f32.mrb[0].mxu0
        %v1168 = vadd.f32 0.0, %v1167
        %v1169 = vpop.f32.mrb[0].mxu0
        %1170 = vmatprep.mubr.f32.mxu0 0.0
        %1171 = vmatmul.mubr.f32.gmra.mrb[0].mxu0 %v1099
        %v1172 = vpop.f32.mrb[0].mxu0
        %v1173 = vadd.f32 0.0, %v1172
        %v1174 = vpop.f32.mrb[0].mxu0
        %1175 = vdwg.mxu0
        %v1176 = vmax.f32 %v1168, -1200.0
        %v1177 = vmax.f32 %v1173, -1200.0
        %v1178 = vmin.f32 %v1176, 1200.0
        %v1179 = vmin.f32 %v1177, 1200.0
        %v1180 = vadd.f32 %v1005, %v1178
        %v1181 = vadd.f32 %v1006, %v1179
        %v1182 = vmul.f32 %v1178, %v1178
        %v1183 = vmul.f32 %v1179, %v1179
        %v1184 = vadd.f32 %v1009, %v1182
        %v1185 = vadd.f32 %v1010, %v1183
        %s1186 = scalar_lea.vmem %s288, 64
        %1187 = vst.msk [vmem:[%s1186] sm:$0xff] %vm487, %v1178
        %1188 = vst.msk [vmem:[%s1186 + $0x8] sm:$0x3] %vm489, %v1179
        %v1189 = vld [vmem:[%s1015] sm:$0xff]
        %s1190 = scalar_lea.vmem %s239, 32 [#allocation2]
        %v1191 = vld [vmem:[%s1190] sm:$0xff]
        %v1192 = vmul.f32 %v1189, 0.8181818
        %v1193 = vmul.f32 %v1191, 0.18181819
        %v1194 = vadd.f32 %v1192, %v1193
        %1195 = vmatprep.subr.mxu0 0.0
        %1196 = vmatpush1.msra.mxu0 %v1194
        %1197 = vmatprep.subr.mxu0 0.0
        %1198 = vmatpush1.msra.mxu0 0.0
        %1199 = vmatprep.subr.mxu0 0.0
        %1200 = vmatpush1.msra.mxu0 0.0
        %1201 = vmatprep.subr.mxu0 0.0
        %1202 = vmatpush1.msra.mxu0 0.0
        %1203 = vmatprep.subr.mxu0 0.0
        %1204 = vmatpush1.msra.mxu0 0.0
        %1205 = vmatprep.subr.mxu0 0.0
        %1206 = vmatpush1.msra.mxu0 0.0
        %1207 = vmatprep.subr.mxu0 0.0
        %1208 = vmatpush1.msra.mxu0 0.0
        %1209 = vmatprep.subr.mxu0 0.0
        %1210 = vmatpush1.msra.mxu0 0.0
        %1211 = vmatprep.subr.mxu0 0.0
        %1212 = vmatpush1.msra.mxu0 0.0
        %1213 = vmatprep.subr.mxu0 0.0
        %1214 = vmatpush1.msra.mxu0 0.0
        %1215 = vmatprep.subr.mxu0 0.0
        %1216 = vmatpush1.msra.mxu0 0.0
        %1217 = vmatprep.subr.mxu0 0.0
        %1218 = vmatpush1.msra.mxu0 0.0
        %1219 = vmatprep.subr.mxu0 0.0
        %1220 = vmatpush1.msra.mxu0 0.0
        %1221 = vmatprep.subr.mxu0 0.0
        %1222 = vmatpush1.msra.mxu0 0.0
        %1223 = vmatprep.subr.mxu0 0.0
        %1224 = vmatpush1.msra.mxu0 0.0
        %1225 = vmatprep.subr.mxu0 0.0
        %1226 = vmatpush1.msra.mxu0 0.0
        %1227 = vmatprep.subr.mxu0 0.0
        %1228 = vmatpush1.msra.mxu0 0.0
        %1229 = vmatprep.subr.mxu0 0.0
        %1230 = vmatpush1.msra.mxu0 0.0
        %1231 = vmatprep.subr.mxu0 0.0
        %1232 = vmatpush1.msra.mxu0 0.0
        %1233 = vmatprep.subr.mxu0 0.0
        %1234 = vmatpush1.msra.mxu0 0.0
        %1235 = vmatprep.subr.mxu0 0.0
        %1236 = vmatpush1.msra.mxu0 0.0
        %1237 = vmatprep.subr.mxu0 0.0
        %1238 = vmatpush1.msra.mxu0 0.0
        %1239 = vmatprep.subr.mxu0 0.0
        %1240 = vmatpush1.msra.mxu0 0.0
        %1241 = vmatprep.subr.mxu0 0.0
        %1242 = vmatpush1.msra.mxu0 0.0
        %1243 = vmatprep.subr.mxu0 0.0
        %1244 = vmatpush1.msra.mxu0 0.0
        %1245 = vmatprep.subr.mxu0 0.0
        %1246 = vmatpush1.msra.mxu0 0.0
        %1247 = vmatprep.subr.mxu0 0.0
        %1248 = vmatpush1.msra.mxu0 0.0
        %1249 = vmatprep.subr.mxu0 0.0
        %1250 = vmatpush1.msra.mxu0 0.0
        %1251 = vmatprep.subr.mxu0 0.0
        %1252 = vmatpush1.msra.mxu0 0.0
        %1253 = vmatprep.subr.mxu0 0.0
        %1254 = vmatpush1.msra.mxu0 0.0
        %1255 = vmatprep.subr.mxu0 0.0
        %1256 = vmatpush1.msra.mxu0 0.0
        %1257 = vmatprep.subr.mxu0 0.0
        %1258 = vmatpush1.msra.mxu0 0.0
        %1259 = vmatprep.mubr.f32.mxu0 0.0
        %1260 = vmatmul.mubr.f32.gmra.mrb[0].mxu0 %v310
        %v1261 = vpop.f32.mrb[0].mxu0
        %v1262 = vadd.f32 0.0, %v1261
        %v1263 = vpop.f32.mrb[0].mxu0
        %1264 = vmatprep.mubr.f32.mxu0 0.0
        %1265 = vmatmul.mubr.f32.gmra.mrb[0].mxu0 %v313
        %v1266 = vpop.f32.mrb[0].mxu0
        %v1267 = vadd.f32 0.0, %v1266
        %v1268 = vpop.f32.mrb[0].mxu0
        %1269 = vdwg.mxu0
        %v1271 = vsel %vm308, %v1262, 0
        %v1274 = vsel %vm308, %v1267, 0
        %1276 = vmatprep.subr.mxu0 0.0
        %1277 = vmatpush1.xpose.msra.mxu0 %v397
        %1278 = vmatprep.subr.mxu0 0.0
        %1279 = vmatpush1.xpose.msra.mxu0 %v400
        %1280 = vmatprep.subr.mxu0 0.0
        %1281 = vmatpush1.xpose.msra.mxu0 0.0
        %1282 = vmatprep.subr.mxu0 0.0
        %1283 = vmatpush1.xpose.msra.mxu0 0.0
        %1284 = vmatprep.subr.mxu0 0.0
        %1285 = vmatpush1.xpose.msra.mxu0 0.0
        %1286 = vmatprep.subr.mxu0 0.0
        %1287 = vmatpush1.xpose.msra.mxu0 0.0
        %1288 = vmatprep.subr.mxu0 0.0
        %1289 = vmatpush1.xpose.msra.mxu0 0.0
        %1290 = vmatprep.subr.mxu0 0.0
        %1291 = vmatpush1.xpose.msra.mxu0 0.0
        %1292 = vmatprep.subr.mxu0 0.0
        %1293 = vmatpush1.xpose.msra.mxu0 0.0
        %1294 = vmatprep.subr.mxu0 0.0
        %1295 = vmatpush1.xpose.msra.mxu0 0.0
        %1296 = vmatprep.subr.mxu0 0.0
        %1297 = vmatpush1.xpose.msra.mxu0 0.0
        %1298 = vmatprep.subr.mxu0 0.0
        %1299 = vmatpush1.xpose.msra.mxu0 0.0
        %1300 = vmatprep.subr.mxu0 0.0
        %1301 = vmatpush1.xpose.msra.mxu0 0.0
        %1302 = vmatprep.subr.mxu0 0.0
        %1303 = vmatpush1.xpose.msra.mxu0 0.0
        %1304 = vmatprep.subr.mxu0 0.0
        %1305 = vmatpush1.xpose.msra.mxu0 0.0
        %1306 = vmatprep.subr.mxu0 0.0
        %1307 = vmatpush1.xpose.msra.mxu0 0.0
        %1308 = vmatprep.subr.mxu0 0.0
        %1309 = vmatpush1.xpose.msra.mxu0 0.0
        %1310 = vmatprep.subr.mxu0 0.0
        %1311 = vmatpush1.xpose.msra.mxu0 0.0
        %1312 = vmatprep.subr.mxu0 0.0
        %1313 = vmatpush1.xpose.msra.mxu0 0.0
        %1314 = vmatprep.subr.mxu0 0.0
        %1315 = vmatpush1.xpose.msra.mxu0 0.0
        %1316 = vmatprep.subr.mxu0 0.0
        %1317 = vmatpush1.xpose.msra.mxu0 0.0
        %1318 = vmatprep.subr.mxu0 0.0
        %1319 = vmatpush1.xpose.msra.mxu0 0.0
        %1320 = vmatprep.subr.mxu0 0.0
        %1321 = vmatpush1.xpose.msra.mxu0 0.0
        %1322 = vmatprep.subr.mxu0 0.0
        %1323 = vmatpush1.xpose.msra.mxu0 0.0
        %1324 = vmatprep.subr.mxu0 0.0
        %1325 = vmatpush1.xpose.msra.mxu0 0.0
        %1326 = vmatprep.subr.mxu0 0.0
        %1327 = vmatpush1.xpose.msra.mxu0 0.0
        %1328 = vmatprep.subr.mxu0 0.0
        %1329 = vmatpush1.xpose.msra.mxu0 0.0
        %1330 = vmatprep.subr.mxu0 0.0
        %1331 = vmatpush1.xpose.msra.mxu0 0.0
        %1332 = vmatprep.subr.mxu0 0.0
        %1333 = vmatpush1.xpose.msra.mxu0 0.0
        %1334 = vmatprep.subr.mxu0 0.0
        %1335 = vmatpush1.xpose.msra.mxu0 0.0
        %1336 = vmatprep.subr.mxu0 0.0
        %1337 = vmatpush1.xpose.msra.mxu0 0.0
        %1338 = vmatprep.subr.mxu0 0.0
        %1339 = vmatpush1.xpose.msra.mxu0 0.0
        %1340 = vmatprep.mubr.f32.mxu0 0.0
        %1341 = vmatmul.mubr.f32.gmra.mrb[0].mxu0 %v1271
        %v1342 = vpop.f32.mrb[0].mxu0
        %v1343 = vadd.f32 0.0, %v1342
        %v1344 = vpop.f32.mrb[0].mxu0
        %1345 = vmatprep.mubr.f32.mxu0 0.0
        %1346 = vmatmul.mubr.f32.gmra.mrb[0].mxu0 %v1274
        %v1347 = vpop.f32.mrb[0].mxu0
        %v1348 = vadd.f32 0.0, %v1347
        %v1349 = vpop.f32.mrb[0].mxu0
        %1350 = vdwg.mxu0
        %v1351 = vmax.f32 %v1343, -1200.0
        %v1352 = vmax.f32 %v1348, -1200.0
        %v1353 = vmin.f32 %v1351, 1200.0
        %v1354 = vmin.f32 %v1352, 1200.0
        %v1355 = vadd.f32 %v1180, %v1353
        %v1356 = vadd.f32 %v1181, %v1354
        %v1357 = vmul.f32 %v1353, %v1353
        %v1358 = vmul.f32 %v1354, %v1354
        %v1359 = vadd.f32 %v1184, %v1357
        %v1360 = vadd.f32 %v1185, %v1358
        %s1361 = scalar_lea.vmem %s288, 80
        %1362 = vst.msk [vmem:[%s1361] sm:$0xff] %vm487, %v1353
        %1363 = vst.msk [vmem:[%s1361 + $0x8] sm:$0x3] %vm489, %v1354
        %v1364 = vld [vmem:[%s1015] sm:$0xff]
        %v1365 = vld [vmem:[%s1190] sm:$0xff]
        %v1366 = vmul.f32 %v1364, 0.18181819
        %v1367 = vmul.f32 %v1365, 0.8181818
        %v1368 = vadd.f32 %v1366, %v1367
        %1369 = vmatprep.subr.mxu0 0.0
        %1370 = vmatpush1.msra.mxu0 %v1368
        %1371 = vmatprep.subr.mxu0 0.0
        %1372 = vmatpush1.msra.mxu0 0.0
        %1373 = vmatprep.subr.mxu0 0.0
        %1374 = vmatpush1.msra.mxu0 0.0
        %1375 = vmatprep.subr.mxu0 0.0
        %1376 = vmatpush1.msra.mxu0 0.0
        %1377 = vmatprep.subr.mxu0 0.0
        %1378 = vmatpush1.msra.mxu0 0.0
        %1379 = vmatprep.subr.mxu0 0.0
        %1380 = vmatpush1.msra.mxu0 0.0
        %1381 = vmatprep.subr.mxu0 0.0
        %1382 = vmatpush1.msra.mxu0 0.0
        %1383 = vmatprep.subr.mxu0 0.0
        %1384 = vmatpush1.msra.mxu0 0.0
        %1385 = vmatprep.subr.mxu0 0.0
        %1386 = vmatpush1.msra.mxu0 0.0
        %1387 = vmatprep.subr.mxu0 0.0
        %1388 = vmatpush1.msra.mxu0 0.0
        %1389 = vmatprep.subr.mxu0 0.0
        %1390 = vmatpush1.msra.mxu0 0.0
        %1391 = vmatprep.subr.mxu0 0.0
        %1392 = vmatpush1.msra.mxu0 0.0
        %1393 = vmatprep.subr.mxu0 0.0
        %1394 = vmatpush1.msra.mxu0 0.0
        %1395 = vmatprep.subr.mxu0 0.0
        %1396 = vmatpush1.msra.mxu0 0.0
        %1397 = vmatprep.subr.mxu0 0.0
        %1398 = vmatpush1.msra.mxu0 0.0
        %1399 = vmatprep.subr.mxu0 0.0
        %1400 = vmatpush1.msra.mxu0 0.0
        %1401 = vmatprep.subr.mxu0 0.0
        %1402 = vmatpush1.msra.mxu0 0.0
        %1403 = vmatprep.subr.mxu0 0.0
        %1404 = vmatpush1.msra.mxu0 0.0
        %1405 = vmatprep.subr.mxu0 0.0
        %1406 = vmatpush1.msra.mxu0 0.0
        %1407 = vmatprep.subr.mxu0 0.0
        %1408 = vmatpush1.msra.mxu0 0.0
        %1409 = vmatprep.subr.mxu0 0.0
        %1410 = vmatpush1.msra.mxu0 0.0
        %1411 = vmatprep.subr.mxu0 0.0
        %1412 = vmatpush1.msra.mxu0 0.0
        %1413 = vmatprep.subr.mxu0 0.0
        %1414 = vmatpush1.msra.mxu0 0.0
        %1415 = vmatprep.subr.mxu0 0.0
        %1416 = vmatpush1.msra.mxu0 0.0
        %1417 = vmatprep.subr.mxu0 0.0
        %1418 = vmatpush1.msra.mxu0 0.0
        %1419 = vmatprep.subr.mxu0 0.0
        %1420 = vmatpush1.msra.mxu0 0.0
        %1421 = vmatprep.subr.mxu0 0.0
        %1422 = vmatpush1.msra.mxu0 0.0
        %1423 = vmatprep.subr.mxu0 0.0
        %1424 = vmatpush1.msra.mxu0 0.0
        %1425 = vmatprep.subr.mxu0 0.0
        %1426 = vmatpush1.msra.mxu0 0.0
        %1427 = vmatprep.subr.mxu0 0.0
        %1428 = vmatpush1.msra.mxu0 0.0
        %1429 = vmatprep.subr.mxu0 0.0
        %1430 = vmatpush1.msra.mxu0 0.0
        %1431 = vmatprep.subr.mxu0 0.0
        %1432 = vmatpush1.msra.mxu0 0.0
        %1433 = vmatprep.mubr.f32.mxu0 0.0
        %1434 = vmatmul.mubr.f32.gmra.mrb[0].mxu0 %v310
        %v1435 = vpop.f32.mrb[0].mxu0
        %v1436 = vadd.f32 0.0, %v1435
        %v1437 = vpop.f32.mrb[0].mxu0
        %1438 = vmatprep.mubr.f32.mxu0 0.0
        %1439 = vmatmul.mubr.f32.gmra.mrb[0].mxu0 %v313
        %v1440 = vpop.f32.mrb[0].mxu0
        %v1441 = vadd.f32 0.0, %v1440
        %v1442 = vpop.f32.mrb[0].mxu0
        %1443 = vdwg.mxu0
        %v1445 = vsel %vm308, %v1436, 0
        %v1448 = vsel %vm308, %v1441, 0
        %1450 = vmatprep.subr.mxu0 0.0
        %1451 = vmatpush1.xpose.msra.mxu0 %v397
        %1452 = vmatprep.subr.mxu0 0.0
        %1453 = vmatpush1.xpose.msra.mxu0 %v400
        %1454 = vmatprep.subr.mxu0 0.0
        %1455 = vmatpush1.xpose.msra.mxu0 0.0
        %1456 = vmatprep.subr.mxu0 0.0
        %1457 = vmatpush1.xpose.msra.mxu0 0.0
        %1458 = vmatprep.subr.mxu0 0.0
        %1459 = vmatpush1.xpose.msra.mxu0 0.0
        %1460 = vmatprep.subr.mxu0 0.0
        %1461 = vmatpush1.xpose.msra.mxu0 0.0
        %1462 = vmatprep.subr.mxu0 0.0
        %1463 = vmatpush1.xpose.msra.mxu0 0.0
        %1464 = vmatprep.subr.mxu0 0.0
        %1465 = vmatpush1.xpose.msra.mxu0 0.0
        %1466 = vmatprep.subr.mxu0 0.0
        %1467 = vmatpush1.xpose.msra.mxu0 0.0
        %1468 = vmatprep.subr.mxu0 0.0
        %1469 = vmatpush1.xpose.msra.mxu0 0.0
        %1470 = vmatprep.subr.mxu0 0.0
        %1471 = vmatpush1.xpose.msra.mxu0 0.0
        %1472 = vmatprep.subr.mxu0 0.0
        %1473 = vmatpush1.xpose.msra.mxu0 0.0
        %1474 = vmatprep.subr.mxu0 0.0
        %1475 = vmatpush1.xpose.msra.mxu0 0.0
        %1476 = vmatprep.subr.mxu0 0.0
        %1477 = vmatpush1.xpose.msra.mxu0 0.0
        %1478 = vmatprep.subr.mxu0 0.0
        %1479 = vmatpush1.xpose.msra.mxu0 0.0
        %1480 = vmatprep.subr.mxu0 0.0
        %1481 = vmatpush1.xpose.msra.mxu0 0.0
        %1482 = vmatprep.subr.mxu0 0.0
        %1483 = vmatpush1.xpose.msra.mxu0 0.0
        %1484 = vmatprep.subr.mxu0 0.0
        %1485 = vmatpush1.xpose.msra.mxu0 0.0
        %1486 = vmatprep.subr.mxu0 0.0
        %1487 = vmatpush1.xpose.msra.mxu0 0.0
        %1488 = vmatprep.subr.mxu0 0.0
        %1489 = vmatpush1.xpose.msra.mxu0 0.0
        %1490 = vmatprep.subr.mxu0 0.0
        %1491 = vmatpush1.xpose.msra.mxu0 0.0
        %1492 = vmatprep.subr.mxu0 0.0
        %1493 = vmatpush1.xpose.msra.mxu0 0.0
        %1494 = vmatprep.subr.mxu0 0.0
        %1495 = vmatpush1.xpose.msra.mxu0 0.0
        %1496 = vmatprep.subr.mxu0 0.0
        %1497 = vmatpush1.xpose.msra.mxu0 0.0
        %1498 = vmatprep.subr.mxu0 0.0
        %1499 = vmatpush1.xpose.msra.mxu0 0.0
        %1500 = vmatprep.subr.mxu0 0.0
        %1501 = vmatpush1.xpose.msra.mxu0 0.0
        %1502 = vmatprep.subr.mxu0 0.0
        %1503 = vmatpush1.xpose.msra.mxu0 0.0
        %1504 = vmatprep.subr.mxu0 0.0
        %1505 = vmatpush1.xpose.msra.mxu0 0.0
        %1506 = vmatprep.subr.mxu0 0.0
        %1507 = vmatpush1.xpose.msra.mxu0 0.0
        %1508 = vmatprep.subr.mxu0 0.0
        %1509 = vmatpush1.xpose.msra.mxu0 0.0
        %1510 = vmatprep.subr.mxu0 0.0
        %1511 = vmatpush1.xpose.msra.mxu0 0.0
        %1512 = vmatprep.subr.mxu0 0.0
        %1513 = vmatpush1.xpose.msra.mxu0 0.0
        %1514 = vmatprep.mubr.f32.mxu0 0.0
        %1515 = vmatmul.mubr.f32.gmra.mrb[0].mxu0 %v1445
        %v1516 = vpop.f32.mrb[0].mxu0
        %v1517 = vadd.f32 0.0, %v1516
        %v1518 = vpop.f32.mrb[0].mxu0
        %1519 = vmatprep.mubr.f32.mxu0 0.0
        %1520 = vmatmul.mubr.f32.gmra.mrb[0].mxu0 %v1448
        %v1521 = vpop.f32.mrb[0].mxu0
        %v1522 = vadd.f32 0.0, %v1521
        %v1523 = vpop.f32.mrb[0].mxu0
        %1524 = vdwg.mxu0
        %v1525 = vmax.f32 %v1517, -1200.0
        %v1526 = vmax.f32 %v1522, -1200.0
        %v1527 = vmin.f32 %v1525, 1200.0
        %v1528 = vmin.f32 %v1526, 1200.0
        %v1529 = vadd.f32 %v1355, %v1527
        %v1530 = vadd.f32 %v1356, %v1528
        %v1531 = vmul.f32 %v1527, %v1527
        %v1532 = vmul.f32 %v1528, %v1528
        %v1533 = vadd.f32 %v1359, %v1531
        %v1534 = vadd.f32 %v1360, %v1532
        %s1535 = scalar_lea.vmem %s288, 96
        %1536 = vst.msk [vmem:[%s1535] sm:$0xff] %vm487, %v1527
        %1537 = vst.msk [vmem:[%s1535 + $0x8] sm:$0x3] %vm489, %v1528
        %v1538 = vld [vmem:[%s1190] sm:$0xff]
        %s1539 = scalar_lea.vmem %s239, 40 [#allocation2]
        %v1540 = vld [vmem:[%s1539] sm:$0xff]
        %v1541 = vmul.f32 %v1538, 0.54545456
        %v1542 = vmul.f32 %v1540, 0.45454547
        %v1543 = vadd.f32 %v1541, %v1542
        %1544 = vmatprep.subr.mxu0 0.0
        %1545 = vmatpush1.msra.mxu0 %v1543
        %1546 = vmatprep.subr.mxu0 0.0
        %1547 = vmatpush1.msra.mxu0 0.0
        %1548 = vmatprep.subr.mxu0 0.0
        %1549 = vmatpush1.msra.mxu0 0.0
        %1550 = vmatprep.subr.mxu0 0.0
        %1551 = vmatpush1.msra.mxu0 0.0
        %1552 = vmatprep.subr.mxu0 0.0
        %1553 = vmatpush1.msra.mxu0 0.0
        %1554 = vmatprep.subr.mxu0 0.0
        %1555 = vmatpush1.msra.mxu0 0.0
        %1556 = vmatprep.subr.mxu0 0.0
        %1557 = vmatpush1.msra.mxu0 0.0
        %1558 = vmatprep.subr.mxu0 0.0
        %1559 = vmatpush1.msra.mxu0 0.0
        %1560 = vmatprep.subr.mxu0 0.0
        %1561 = vmatpush1.msra.mxu0 0.0
        %1562 = vmatprep.subr.mxu0 0.0
        %1563 = vmatpush1.msra.mxu0 0.0
        %1564 = vmatprep.subr.mxu0 0.0
        %1565 = vmatpush1.msra.mxu0 0.0
        %1566 = vmatprep.subr.mxu0 0.0
        %1567 = vmatpush1.msra.mxu0 0.0
        %1568 = vmatprep.subr.mxu0 0.0
        %1569 = vmatpush1.msra.mxu0 0.0
        %1570 = vmatprep.subr.mxu0 0.0
        %1571 = vmatpush1.msra.mxu0 0.0
        %1572 = vmatprep.subr.mxu0 0.0
        %1573 = vmatpush1.msra.mxu0 0.0
        %1574 = vmatprep.subr.mxu0 0.0
        %1575 = vmatpush1.msra.mxu0 0.0
        %1576 = vmatprep.subr.mxu0 0.0
        %1577 = vmatpush1.msra.mxu0 0.0
        %1578 = vmatprep.subr.mxu0 0.0
        %1579 = vmatpush1.msra.mxu0 0.0
        %1580 = vmatprep.subr.mxu0 0.0
        %1581 = vmatpush1.msra.mxu0 0.0
        %1582 = vmatprep.subr.mxu0 0.0
        %1583 = vmatpush1.msra.mxu0 0.0
        %1584 = vmatprep.subr.mxu0 0.0
        %1585 = vmatpush1.msra.mxu0 0.0
        %1586 = vmatprep.subr.mxu0 0.0
        %1587 = vmatpush1.msra.mxu0 0.0
        %1588 = vmatprep.subr.mxu0 0.0
        %1589 = vmatpush1.msra.mxu0 0.0
        %1590 = vmatprep.subr.mxu0 0.0
        %1591 = vmatpush1.msra.mxu0 0.0
        %1592 = vmatprep.subr.mxu0 0.0
        %1593 = vmatpush1.msra.mxu0 0.0
        %1594 = vmatprep.subr.mxu0 0.0
        %1595 = vmatpush1.msra.mxu0 0.0
        %1596 = vmatprep.subr.mxu0 0.0
        %1597 = vmatpush1.msra.mxu0 0.0
        %1598 = vmatprep.subr.mxu0 0.0
        %1599 = vmatpush1.msra.mxu0 0.0
        %1600 = vmatprep.subr.mxu0 0.0
        %1601 = vmatpush1.msra.mxu0 0.0
        %1602 = vmatprep.subr.mxu0 0.0
        %1603 = vmatpush1.msra.mxu0 0.0
        %1604 = vmatprep.subr.mxu0 0.0
        %1605 = vmatpush1.msra.mxu0 0.0
        %1606 = vmatprep.subr.mxu0 0.0
        %1607 = vmatpush1.msra.mxu0 0.0
        %1608 = vmatprep.mubr.f32.mxu0 0.0
        %1609 = vmatmul.mubr.f32.gmra.mrb[0].mxu0 %v310
        %v1610 = vpop.f32.mrb[0].mxu0
        %v1611 = vadd.f32 0.0, %v1610
        %v1612 = vpop.f32.mrb[0].mxu0
        %1613 = vmatprep.mubr.f32.mxu0 0.0
        %1614 = vmatmul.mubr.f32.gmra.mrb[0].mxu0 %v313
        %v1615 = vpop.f32.mrb[0].mxu0
        %v1616 = vadd.f32 0.0, %v1615
        %v1617 = vpop.f32.mrb[0].mxu0
        %1618 = vdwg.mxu0
        %v1620 = vsel %vm308, %v1611, 0
        %v1623 = vsel %vm308, %v1616, 0
        %1625 = vmatprep.subr.mxu0 0.0
        %1626 = vmatpush1.xpose.msra.mxu0 %v397
        %1627 = vmatprep.subr.mxu0 0.0
        %1628 = vmatpush1.xpose.msra.mxu0 %v400
        %1629 = vmatprep.subr.mxu0 0.0
        %1630 = vmatpush1.xpose.msra.mxu0 0.0
        %1631 = vmatprep.subr.mxu0 0.0
        %1632 = vmatpush1.xpose.msra.mxu0 0.0
        %1633 = vmatprep.subr.mxu0 0.0
        %1634 = vmatpush1.xpose.msra.mxu0 0.0
        %1635 = vmatprep.subr.mxu0 0.0
        %1636 = vmatpush1.xpose.msra.mxu0 0.0
        %1637 = vmatprep.subr.mxu0 0.0
        %1638 = vmatpush1.xpose.msra.mxu0 0.0
        %1639 = vmatprep.subr.mxu0 0.0
        %1640 = vmatpush1.xpose.msra.mxu0 0.0
        %1641 = vmatprep.subr.mxu0 0.0
        %1642 = vmatpush1.xpose.msra.mxu0 0.0
        %1643 = vmatprep.subr.mxu0 0.0
        %1644 = vmatpush1.xpose.msra.mxu0 0.0
        %1645 = vmatprep.subr.mxu0 0.0
        %1646 = vmatpush1.xpose.msra.mxu0 0.0
        %1647 = vmatprep.subr.mxu0 0.0
        %1648 = vmatpush1.xpose.msra.mxu0 0.0
        %1649 = vmatprep.subr.mxu0 0.0
        %1650 = vmatpush1.xpose.msra.mxu0 0.0
        %1651 = vmatprep.subr.mxu0 0.0
        %1652 = vmatpush1.xpose.msra.mxu0 0.0
        %1653 = vmatprep.subr.mxu0 0.0
        %1654 = vmatpush1.xpose.msra.mxu0 0.0
        %1655 = vmatprep.subr.mxu0 0.0
        %1656 = vmatpush1.xpose.msra.mxu0 0.0
        %1657 = vmatprep.subr.mxu0 0.0
        %1658 = vmatpush1.xpose.msra.mxu0 0.0
        %1659 = vmatprep.subr.mxu0 0.0
        %1660 = vmatpush1.xpose.msra.mxu0 0.0
        %1661 = vmatprep.subr.mxu0 0.0
        %1662 = vmatpush1.xpose.msra.mxu0 0.0
        %1663 = vmatprep.subr.mxu0 0.0
        %1664 = vmatpush1.xpose.msra.mxu0 0.0
        %1665 = vmatprep.subr.mxu0 0.0
        %1666 = vmatpush1.xpose.msra.mxu0 0.0
        %1667 = vmatprep.subr.mxu0 0.0
        %1668 = vmatpush1.xpose.msra.mxu0 0.0
        %1669 = vmatprep.subr.mxu0 0.0
        %1670 = vmatpush1.xpose.msra.mxu0 0.0
        %1671 = vmatprep.subr.mxu0 0.0
        %1672 = vmatpush1.xpose.msra.mxu0 0.0
        %1673 = vmatprep.subr.mxu0 0.0
        %1674 = vmatpush1.xpose.msra.mxu0 0.0
        %1675 = vmatprep.subr.mxu0 0.0
        %1676 = vmatpush1.xpose.msra.mxu0 0.0
        %1677 = vmatprep.subr.mxu0 0.0
        %1678 = vmatpush1.xpose.msra.mxu0 0.0
        %1679 = vmatprep.subr.mxu0 0.0
        %1680 = vmatpush1.xpose.msra.mxu0 0.0
        %1681 = vmatprep.subr.mxu0 0.0
        %1682 = vmatpush1.xpose.msra.mxu0 0.0
        %1683 = vmatprep.subr.mxu0 0.0
        %1684 = vmatpush1.xpose.msra.mxu0 0.0
        %1685 = vmatprep.subr.mxu0 0.0
        %1686 = vmatpush1.xpose.msra.mxu0 0.0
        %1687 = vmatprep.subr.mxu0 0.0
        %1688 = vmatpush1.xpose.msra.mxu0 0.0
        %1689 = vmatprep.mubr.f32.mxu0 0.0
        %1690 = vmatmul.mubr.f32.gmra.mrb[0].mxu0 %v1620
        %v1691 = vpop.f32.mrb[0].mxu0
        %v1692 = vadd.f32 0.0, %v1691
        %v1693 = vpop.f32.mrb[0].mxu0
        %1694 = vmatprep.mubr.f32.mxu0 0.0
        %1695 = vmatmul.mubr.f32.gmra.mrb[0].mxu0 %v1623
        %v1696 = vpop.f32.mrb[0].mxu0
        %v1697 = vadd.f32 0.0, %v1696
        %v1698 = vpop.f32.mrb[0].mxu0
        %1699 = vdwg.mxu0
        %v1700 = vmax.f32 %v1692, -1200.0
        %v1701 = vmax.f32 %v1697, -1200.0
        %v1702 = vmin.f32 %v1700, 1200.0
        %v1703 = vmin.f32 %v1701, 1200.0
        %v1704 = vadd.f32 %v1529, %v1702
        %v1705 = vadd.f32 %v1530, %v1703
        %v1706 = vmul.f32 %v1702, %v1702
        %v1707 = vmul.f32 %v1703, %v1703
        %v1708 = vadd.f32 %v1533, %v1706
        %v1709 = vadd.f32 %v1534, %v1707
        %s1710 = scalar_lea.vmem %s288, 112
        %1711 = vst.msk [vmem:[%s1710] sm:$0xff] %vm487, %v1702
        %1712 = vst.msk [vmem:[%s1710 + $0x8] sm:$0x3] %vm489, %v1703
        %v1713 = vld [vmem:[%s1539] sm:$0xff]
        %s1714 = scalar_lea.vmem %s239, 48 [#allocation2]
        %v1715 = vld [vmem:[%s1714] sm:$0xff]
        %v1716 = vmul.f32 %v1713, 0.90909094
        %v1717 = vmul.f32 %v1715, 0.09090909
        %v1718 = vadd.f32 %v1716, %v1717
        %1719 = vmatprep.subr.mxu0 0.0
        %1720 = vmatpush1.msra.mxu0 %v1718
        %1721 = vmatprep.subr.mxu0 0.0
        %1722 = vmatpush1.msra.mxu0 0.0
        %1723 = vmatprep.subr.mxu0 0.0
        %1724 = vmatpush1.msra.mxu0 0.0
        %1725 = vmatprep.subr.mxu0 0.0
        %1726 = vmatpush1.msra.mxu0 0.0
        %1727 = vmatprep.subr.mxu0 0.0
        %1728 = vmatpush1.msra.mxu0 0.0
        %1729 = vmatprep.subr.mxu0 0.0
        %1730 = vmatpush1.msra.mxu0 0.0
        %1731 = vmatprep.subr.mxu0 0.0
        %1732 = vmatpush1.msra.mxu0 0.0
        %1733 = vmatprep.subr.mxu0 0.0
        %1734 = vmatpush1.msra.mxu0 0.0
        %1735 = vmatprep.subr.mxu0 0.0
        %1736 = vmatpush1.msra.mxu0 0.0
        %1737 = vmatprep.subr.mxu0 0.0
        %1738 = vmatpush1.msra.mxu0 0.0
        %1739 = vmatprep.subr.mxu0 0.0
        %1740 = vmatpush1.msra.mxu0 0.0
        %1741 = vmatprep.subr.mxu0 0.0
        %1742 = vmatpush1.msra.mxu0 0.0
        %1743 = vmatprep.subr.mxu0 0.0
        %1744 = vmatpush1.msra.mxu0 0.0
        %1745 = vmatprep.subr.mxu0 0.0
        %1746 = vmatpush1.msra.mxu0 0.0
        %1747 = vmatprep.subr.mxu0 0.0
        %1748 = vmatpush1.msra.mxu0 0.0
        %1749 = vmatprep.subr.mxu0 0.0
        %1750 = vmatpush1.msra.mxu0 0.0
        %1751 = vmatprep.subr.mxu0 0.0
        %1752 = vmatpush1.msra.mxu0 0.0
        %1753 = vmatprep.subr.mxu0 0.0
        %1754 = vmatpush1.msra.mxu0 0.0
        %1755 = vmatprep.subr.mxu0 0.0
        %1756 = vmatpush1.msra.mxu0 0.0
        %1757 = vmatprep.subr.mxu0 0.0
        %1758 = vmatpush1.msra.mxu0 0.0
        %1759 = vmatprep.subr.mxu0 0.0
        %1760 = vmatpush1.msra.mxu0 0.0
        %1761 = vmatprep.subr.mxu0 0.0
        %1762 = vmatpush1.msra.mxu0 0.0
        %1763 = vmatprep.subr.mxu0 0.0
        %1764 = vmatpush1.msra.mxu0 0.0
        %1765 = vmatprep.subr.mxu0 0.0
        %1766 = vmatpush1.msra.mxu0 0.0
        %1767 = vmatprep.subr.mxu0 0.0
        %1768 = vmatpush1.msra.mxu0 0.0
        %1769 = vmatprep.subr.mxu0 0.0
        %1770 = vmatpush1.msra.mxu0 0.0
        %1771 = vmatprep.subr.mxu0 0.0
        %1772 = vmatpush1.msra.mxu0 0.0
        %1773 = vmatprep.subr.mxu0 0.0
        %1774 = vmatpush1.msra.mxu0 0.0
        %1775 = vmatprep.subr.mxu0 0.0
        %1776 = vmatpush1.msra.mxu0 0.0
        %1777 = vmatprep.subr.mxu0 0.0
        %1778 = vmatpush1.msra.mxu0 0.0
        %1779 = vmatprep.subr.mxu0 0.0
        %1780 = vmatpush1.msra.mxu0 0.0
        %1781 = vmatprep.subr.mxu0 0.0
        %1782 = vmatpush1.msra.mxu0 0.0
        %1783 = vmatprep.mubr.f32.mxu0 0.0
        %1784 = vmatmul.mubr.f32.gmra.mrb[0].mxu0 %v310
        %v1785 = vpop.f32.mrb[0].mxu0
        %v1786 = vadd.f32 0.0, %v1785
        %v1787 = vpop.f32.mrb[0].mxu0
        %1788 = vmatprep.mubr.f32.mxu0 0.0
        %1789 = vmatmul.mubr.f32.gmra.mrb[0].mxu0 %v313
        %v1790 = vpop.f32.mrb[0].mxu0
        %v1791 = vadd.f32 0.0, %v1790
        %v1792 = vpop.f32.mrb[0].mxu0
        %1793 = vdwg.mxu0
        %v1795 = vsel %vm308, %v1786, 0
        %v1798 = vsel %vm308, %v1791, 0
        %1800 = vmatprep.subr.mxu0 0.0
        %1801 = vmatpush1.xpose.msra.mxu0 %v397
        %1802 = vmatprep.subr.mxu0 0.0
        %1803 = vmatpush1.xpose.msra.mxu0 %v400
        %1804 = vmatprep.subr.mxu0 0.0
        %1805 = vmatpush1.xpose.msra.mxu0 0.0
        %1806 = vmatprep.subr.mxu0 0.0
        %1807 = vmatpush1.xpose.msra.mxu0 0.0
        %1808 = vmatprep.subr.mxu0 0.0
        %1809 = vmatpush1.xpose.msra.mxu0 0.0
        %1810 = vmatprep.subr.mxu0 0.0
        %1811 = vmatpush1.xpose.msra.mxu0 0.0
        %1812 = vmatprep.subr.mxu0 0.0
        %1813 = vmatpush1.xpose.msra.mxu0 0.0
        %1814 = vmatprep.subr.mxu0 0.0
        %1815 = vmatpush1.xpose.msra.mxu0 0.0
        %1816 = vmatprep.subr.mxu0 0.0
        %1817 = vmatpush1.xpose.msra.mxu0 0.0
        %1818 = vmatprep.subr.mxu0 0.0
        %1819 = vmatpush1.xpose.msra.mxu0 0.0
        %1820 = vmatprep.subr.mxu0 0.0
        %1821 = vmatpush1.xpose.msra.mxu0 0.0
        %1822 = vmatprep.subr.mxu0 0.0
        %1823 = vmatpush1.xpose.msra.mxu0 0.0
        %1824 = vmatprep.subr.mxu0 0.0
        %1825 = vmatpush1.xpose.msra.mxu0 0.0
        %1826 = vmatprep.subr.mxu0 0.0
        %1827 = vmatpush1.xpose.msra.mxu0 0.0
        %1828 = vmatprep.subr.mxu0 0.0
        %1829 = vmatpush1.xpose.msra.mxu0 0.0
        %1830 = vmatprep.subr.mxu0 0.0
        %1831 = vmatpush1.xpose.msra.mxu0 0.0
        %1832 = vmatprep.subr.mxu0 0.0
        %1833 = vmatpush1.xpose.msra.mxu0 0.0
        %1834 = vmatprep.subr.mxu0 0.0
        %1835 = vmatpush1.xpose.msra.mxu0 0.0
        %1836 = vmatprep.subr.mxu0 0.0
        %1837 = vmatpush1.xpose.msra.mxu0 0.0
        %1838 = vmatprep.subr.mxu0 0.0
        %1839 = vmatpush1.xpose.msra.mxu0 0.0
        %1840 = vmatprep.subr.mxu0 0.0
        %1841 = vmatpush1.xpose.msra.mxu0 0.0
        %1842 = vmatprep.subr.mxu0 0.0
        %1843 = vmatpush1.xpose.msra.mxu0 0.0
        %1844 = vmatprep.subr.mxu0 0.0
        %1845 = vmatpush1.xpose.msra.mxu0 0.0
        %1846 = vmatprep.subr.mxu0 0.0
        %1847 = vmatpush1.xpose.msra.mxu0 0.0
        %1848 = vmatprep.subr.mxu0 0.0
        %1849 = vmatpush1.xpose.msra.mxu0 0.0
        %1850 = vmatprep.subr.mxu0 0.0
        %1851 = vmatpush1.xpose.msra.mxu0 0.0
        %1852 = vmatprep.subr.mxu0 0.0
        %1853 = vmatpush1.xpose.msra.mxu0 0.0
        %1854 = vmatprep.subr.mxu0 0.0
        %1855 = vmatpush1.xpose.msra.mxu0 0.0
        %1856 = vmatprep.subr.mxu0 0.0
        %1857 = vmatpush1.xpose.msra.mxu0 0.0
        %1858 = vmatprep.subr.mxu0 0.0
        %1859 = vmatpush1.xpose.msra.mxu0 0.0
        %1860 = vmatprep.subr.mxu0 0.0
        %1861 = vmatpush1.xpose.msra.mxu0 0.0
        %1862 = vmatprep.subr.mxu0 0.0
        %1863 = vmatpush1.xpose.msra.mxu0 0.0
        %1864 = vmatprep.mubr.f32.mxu0 0.0
        %1865 = vmatmul.mubr.f32.gmra.mrb[0].mxu0 %v1795
        %v1866 = vpop.f32.mrb[0].mxu0
        %v1867 = vadd.f32 0.0, %v1866
        %v1868 = vpop.f32.mrb[0].mxu0
        %1869 = vmatprep.mubr.f32.mxu0 0.0
        %1870 = vmatmul.mubr.f32.gmra.mrb[0].mxu0 %v1798
        %v1871 = vpop.f32.mrb[0].mxu0
        %v1872 = vadd.f32 0.0, %v1871
        %v1873 = vpop.f32.mrb[0].mxu0
        %1874 = vdwg.mxu0
        %v1875 = vmax.f32 %v1867, -1200.0
        %v1876 = vmax.f32 %v1872, -1200.0
        %v1877 = vmin.f32 %v1875, 1200.0
        %v1878 = vmin.f32 %v1876, 1200.0
        %v1879 = vadd.f32 %v1704, %v1877
        %v1880 = vadd.f32 %v1705, %v1878
        %v1881 = vmul.f32 %v1877, %v1877
        %v1882 = vmul.f32 %v1878, %v1878
        %v1883 = vadd.f32 %v1708, %v1881
        %v1884 = vadd.f32 %v1709, %v1882
        %s1885 = scalar_lea.vmem %s288, 128
        %1886 = vst.msk [vmem:[%s1885] sm:$0xff] %vm487, %v1877
        %1887 = vst.msk [vmem:[%s1885 + $0x8] sm:$0x3] %vm489, %v1878
        %v1888 = vld [vmem:[%s1539] sm:$0xff]
        %v1889 = vld [vmem:[%s1714] sm:$0xff]
        %v1890 = vmul.f32 %v1888, 0.27272728
        %v1891 = vmul.f32 %v1889, 0.72727275
        %v1892 = vadd.f32 %v1890, %v1891
        %1893 = vmatprep.subr.mxu0 0.0
        %1894 = vmatpush1.msra.mxu0 %v1892
        %1895 = vmatprep.subr.mxu0 0.0
        %1896 = vmatpush1.msra.mxu0 0.0
        %1897 = vmatprep.subr.mxu0 0.0
        %1898 = vmatpush1.msra.mxu0 0.0
        %1899 = vmatprep.subr.mxu0 0.0
        %1900 = vmatpush1.msra.mxu0 0.0
        %1901 = vmatprep.subr.mxu0 0.0
        %1902 = vmatpush1.msra.mxu0 0.0
        %1903 = vmatprep.subr.mxu0 0.0
        %1904 = vmatpush1.msra.mxu0 0.0
        %1905 = vmatprep.subr.mxu0 0.0
        %1906 = vmatpush1.msra.mxu0 0.0
        %1907 = vmatprep.subr.mxu0 0.0
        %1908 = vmatpush1.msra.mxu0 0.0
        %1909 = vmatprep.subr.mxu0 0.0
        %1910 = vmatpush1.msra.mxu0 0.0
        %1911 = vmatprep.subr.mxu0 0.0
        %1912 = vmatpush1.msra.mxu0 0.0
        %1913 = vmatprep.subr.mxu0 0.0
        %1914 = vmatpush1.msra.mxu0 0.0
        %1915 = vmatprep.subr.mxu0 0.0
        %1916 = vmatpush1.msra.mxu0 0.0
        %1917 = vmatprep.subr.mxu0 0.0
        %1918 = vmatpush1.msra.mxu0 0.0
        %1919 = vmatprep.subr.mxu0 0.0
        %1920 = vmatpush1.msra.mxu0 0.0
        %1921 = vmatprep.subr.mxu0 0.0
        %1922 = vmatpush1.msra.mxu0 0.0
        %1923 = vmatprep.subr.mxu0 0.0
        %1924 = vmatpush1.msra.mxu0 0.0
        %1925 = vmatprep.subr.mxu0 0.0
        %1926 = vmatpush1.msra.mxu0 0.0
        %1927 = vmatprep.subr.mxu0 0.0
        %1928 = vmatpush1.msra.mxu0 0.0
        %1929 = vmatprep.subr.mxu0 0.0
        %1930 = vmatpush1.msra.mxu0 0.0
        %1931 = vmatprep.subr.mxu0 0.0
        %1932 = vmatpush1.msra.mxu0 0.0
        %1933 = vmatprep.subr.mxu0 0.0
        %1934 = vmatpush1.msra.mxu0 0.0
        %1935 = vmatprep.subr.mxu0 0.0
        %1936 = vmatpush1.msra.mxu0 0.0
        %1937 = vmatprep.subr.mxu0 0.0
        %1938 = vmatpush1.msra.mxu0 0.0
        %1939 = vmatprep.subr.mxu0 0.0
        %1940 = vmatpush1.msra.mxu0 0.0
        %1941 = vmatprep.subr.mxu0 0.0
        %1942 = vmatpush1.msra.mxu0 0.0
        %1943 = vmatprep.subr.mxu0 0.0
        %1944 = vmatpush1.msra.mxu0 0.0
        %1945 = vmatprep.subr.mxu0 0.0
        %1946 = vmatpush1.msra.mxu0 0.0
        %1947 = vmatprep.subr.mxu0 0.0
        %1948 = vmatpush1.msra.mxu0 0.0
        %1949 = vmatprep.subr.mxu0 0.0
        %1950 = vmatpush1.msra.mxu0 0.0
        %1951 = vmatprep.subr.mxu0 0.0
        %1952 = vmatpush1.msra.mxu0 0.0
        %1953 = vmatprep.subr.mxu0 0.0
        %1954 = vmatpush1.msra.mxu0 0.0
        %1955 = vmatprep.subr.mxu0 0.0
        %1956 = vmatpush1.msra.mxu0 0.0
        %1957 = vmatprep.mubr.f32.mxu0 0.0
        %1958 = vmatmul.mubr.f32.gmra.mrb[0].mxu0 %v310
        %v1959 = vpop.f32.mrb[0].mxu0
        %v1960 = vadd.f32 0.0, %v1959
        %v1961 = vpop.f32.mrb[0].mxu0
        %1962 = vmatprep.mubr.f32.mxu0 0.0
        %1963 = vmatmul.mubr.f32.gmra.mrb[0].mxu0 %v313
        %v1964 = vpop.f32.mrb[0].mxu0
        %v1965 = vadd.f32 0.0, %v1964
        %v1966 = vpop.f32.mrb[0].mxu0
        %1967 = vdwg.mxu0
        %v1969 = vsel %vm308, %v1960, 0
        %v1972 = vsel %vm308, %v1965, 0
        %1974 = vmatprep.subr.mxu0 0.0
        %1975 = vmatpush1.xpose.msra.mxu0 %v397
        %1976 = vmatprep.subr.mxu0 0.0
        %1977 = vmatpush1.xpose.msra.mxu0 %v400
        %1978 = vmatprep.subr.mxu0 0.0
        %1979 = vmatpush1.xpose.msra.mxu0 0.0
        %1980 = vmatprep.subr.mxu0 0.0
        %1981 = vmatpush1.xpose.msra.mxu0 0.0
        %1982 = vmatprep.subr.mxu0 0.0
        %1983 = vmatpush1.xpose.msra.mxu0 0.0
        %1984 = vmatprep.subr.mxu0 0.0
        %1985 = vmatpush1.xpose.msra.mxu0 0.0
        %1986 = vmatprep.subr.mxu0 0.0
        %1987 = vmatpush1.xpose.msra.mxu0 0.0
        %1988 = vmatprep.subr.mxu0 0.0
        %1989 = vmatpush1.xpose.msra.mxu0 0.0
        %1990 = vmatprep.subr.mxu0 0.0
        %1991 = vmatpush1.xpose.msra.mxu0 0.0
        %1992 = vmatprep.subr.mxu0 0.0
        %1993 = vmatpush1.xpose.msra.mxu0 0.0
        %1994 = vmatprep.subr.mxu0 0.0
        %1995 = vmatpush1.xpose.msra.mxu0 0.0
        %1996 = vmatprep.subr.mxu0 0.0
        %1997 = vmatpush1.xpose.msra.mxu0 0.0
        %1998 = vmatprep.subr.mxu0 0.0
        %1999 = vmatpush1.xpose.msra.mxu0 0.0
        %2000 = vmatprep.subr.mxu0 0.0
        %2001 = vmatpush1.xpose.msra.mxu0 0.0
        %2002 = vmatprep.subr.mxu0 0.0
        %2003 = vmatpush1.xpose.msra.mxu0 0.0
        %2004 = vmatprep.subr.mxu0 0.0
        %2005 = vmatpush1.xpose.msra.mxu0 0.0
        %2006 = vmatprep.subr.mxu0 0.0
        %2007 = vmatpush1.xpose.msra.mxu0 0.0
        %2008 = vmatprep.subr.mxu0 0.0
        %2009 = vmatpush1.xpose.msra.mxu0 0.0
        %2010 = vmatprep.subr.mxu0 0.0
        %2011 = vmatpush1.xpose.msra.mxu0 0.0
        %2012 = vmatprep.subr.mxu0 0.0
        %2013 = vmatpush1.xpose.msra.mxu0 0.0
        %2014 = vmatprep.subr.mxu0 0.0
        %2015 = vmatpush1.xpose.msra.mxu0 0.0
        %2016 = vmatprep.subr.mxu0 0.0
        %2017 = vmatpush1.xpose.msra.mxu0 0.0
        %2018 = vmatprep.subr.mxu0 0.0
        %2019 = vmatpush1.xpose.msra.mxu0 0.0
        %2020 = vmatprep.subr.mxu0 0.0
        %2021 = vmatpush1.xpose.msra.mxu0 0.0
        %2022 = vmatprep.subr.mxu0 0.0
        %2023 = vmatpush1.xpose.msra.mxu0 0.0
        %2024 = vmatprep.subr.mxu0 0.0
        %2025 = vmatpush1.xpose.msra.mxu0 0.0
        %2026 = vmatprep.subr.mxu0 0.0
        %2027 = vmatpush1.xpose.msra.mxu0 0.0
        %2028 = vmatprep.subr.mxu0 0.0
        %2029 = vmatpush1.xpose.msra.mxu0 0.0
        %2030 = vmatprep.subr.mxu0 0.0
        %2031 = vmatpush1.xpose.msra.mxu0 0.0
        %2032 = vmatprep.subr.mxu0 0.0
        %2033 = vmatpush1.xpose.msra.mxu0 0.0
        %2034 = vmatprep.subr.mxu0 0.0
        %2035 = vmatpush1.xpose.msra.mxu0 0.0
        %2036 = vmatprep.subr.mxu0 0.0
        %2037 = vmatpush1.xpose.msra.mxu0 0.0
        %2038 = vmatprep.mubr.f32.mxu0 0.0
        %2039 = vmatmul.mubr.f32.gmra.mrb[0].mxu0 %v1969
        %v2040 = vpop.f32.mrb[0].mxu0
        %v2041 = vadd.f32 0.0, %v2040
        %v2042 = vpop.f32.mrb[0].mxu0
        %2043 = vmatprep.mubr.f32.mxu0 0.0
        %2044 = vmatmul.mubr.f32.gmra.mrb[0].mxu0 %v1972
        %v2045 = vpop.f32.mrb[0].mxu0
        %v2046 = vadd.f32 0.0, %v2045
        %v2047 = vpop.f32.mrb[0].mxu0
        %2048 = vdwg.mxu0
        %v2049 = vmax.f32 %v2041, -1200.0
        %v2050 = vmax.f32 %v2046, -1200.0
        %v2051 = vmin.f32 %v2049, 1200.0
        %v2052 = vmin.f32 %v2050, 1200.0
        %v2053 = vadd.f32 %v1879, %v2051
        %v2054 = vadd.f32 %v1880, %v2052
        %v2055 = vmul.f32 %v2051, %v2051
        %v2056 = vmul.f32 %v2052, %v2052
        %v2057 = vadd.f32 %v1883, %v2055
        %v2058 = vadd.f32 %v1884, %v2056
        %s2059 = scalar_lea.vmem %s288, 144
        %2060 = vst.msk [vmem:[%s2059] sm:$0xff] %vm487, %v2051
        %2061 = vst.msk [vmem:[%s2059 + $0x8] sm:$0x3] %vm489, %v2052
        %v2062 = vld [vmem:[%s1714] sm:$0xff]
        %s2063 = scalar_lea.vmem %s239, 56 [#allocation2]
        %v2064 = vld [vmem:[%s2063] sm:$0xff]
        %v2065 = vmul.f32 %v2062, 0.6363636
        %v2066 = vmul.f32 %v2064, 0.36363637
        %v2067 = vadd.f32 %v2065, %v2066
        %2068 = vmatprep.subr.mxu0 0.0
        %2069 = vmatpush1.msra.mxu0 %v2067
        %2070 = vmatprep.subr.mxu0 0.0
        %2071 = vmatpush1.msra.mxu0 0.0
        %2072 = vmatprep.subr.mxu0 0.0
        %2073 = vmatpush1.msra.mxu0 0.0
        %2074 = vmatprep.subr.mxu0 0.0
        %2075 = vmatpush1.msra.mxu0 0.0
        %2076 = vmatprep.subr.mxu0 0.0
        %2077 = vmatpush1.msra.mxu0 0.0
        %2078 = vmatprep.subr.mxu0 0.0
        %2079 = vmatpush1.msra.mxu0 0.0
        %2080 = vmatprep.subr.mxu0 0.0
        %2081 = vmatpush1.msra.mxu0 0.0
        %2082 = vmatprep.subr.mxu0 0.0
        %2083 = vmatpush1.msra.mxu0 0.0
        %2084 = vmatprep.subr.mxu0 0.0
        %2085 = vmatpush1.msra.mxu0 0.0
        %2086 = vmatprep.subr.mxu0 0.0
        %2087 = vmatpush1.msra.mxu0 0.0
        %2088 = vmatprep.subr.mxu0 0.0
        %2089 = vmatpush1.msra.mxu0 0.0
        %2090 = vmatprep.subr.mxu0 0.0
        %2091 = vmatpush1.msra.mxu0 0.0
        %2092 = vmatprep.subr.mxu0 0.0
        %2093 = vmatpush1.msra.mxu0 0.0
        %2094 = vmatprep.subr.mxu0 0.0
        %2095 = vmatpush1.msra.mxu0 0.0
        %2096 = vmatprep.subr.mxu0 0.0
        %2097 = vmatpush1.msra.mxu0 0.0
        %2098 = vmatprep.subr.mxu0 0.0
        %2099 = vmatpush1.msra.mxu0 0.0
        %2100 = vmatprep.subr.mxu0 0.0
        %2101 = vmatpush1.msra.mxu0 0.0
        %2102 = vmatprep.subr.mxu0 0.0
        %2103 = vmatpush1.msra.mxu0 0.0
        %2104 = vmatprep.subr.mxu0 0.0
        %2105 = vmatpush1.msra.mxu0 0.0
        %2106 = vmatprep.subr.mxu0 0.0
        %2107 = vmatpush1.msra.mxu0 0.0
        %2108 = vmatprep.subr.mxu0 0.0
        %2109 = vmatpush1.msra.mxu0 0.0
        %2110 = vmatprep.subr.mxu0 0.0
        %2111 = vmatpush1.msra.mxu0 0.0
        %2112 = vmatprep.subr.mxu0 0.0
        %2113 = vmatpush1.msra.mxu0 0.0
        %2114 = vmatprep.subr.mxu0 0.0
        %2115 = vmatpush1.msra.mxu0 0.0
        %2116 = vmatprep.subr.mxu0 0.0
        %2117 = vmatpush1.msra.mxu0 0.0
        %2118 = vmatprep.subr.mxu0 0.0
        %2119 = vmatpush1.msra.mxu0 0.0
        %2120 = vmatprep.subr.mxu0 0.0
        %2121 = vmatpush1.msra.mxu0 0.0
        %2122 = vmatprep.subr.mxu0 0.0
        %2123 = vmatpush1.msra.mxu0 0.0
        %2124 = vmatprep.subr.mxu0 0.0
        %2125 = vmatpush1.msra.mxu0 0.0
        %2126 = vmatprep.subr.mxu0 0.0
        %2127 = vmatpush1.msra.mxu0 0.0
        %2128 = vmatprep.subr.mxu0 0.0
        %2129 = vmatpush1.msra.mxu0 0.0
        %2130 = vmatprep.subr.mxu0 0.0
        %2131 = vmatpush1.msra.mxu0 0.0
        %2132 = vmatprep.mubr.f32.mxu0 0.0
        %2133 = vmatmul.mubr.f32.gmra.mrb[0].mxu0 %v310
        %v2134 = vpop.f32.mrb[0].mxu0
        %v2135 = vadd.f32 0.0, %v2134
        %v2136 = vpop.f32.mrb[0].mxu0
        %2137 = vmatprep.mubr.f32.mxu0 0.0
        %2138 = vmatmul.mubr.f32.gmra.mrb[0].mxu0 %v313
        %v2139 = vpop.f32.mrb[0].mxu0
        %v2140 = vadd.f32 0.0, %v2139
        %v2141 = vpop.f32.mrb[0].mxu0
        %2142 = vdwg.mxu0
        %v2144 = vsel %vm308, %v2135, 0
        %v2147 = vsel %vm308, %v2140, 0
        %2149 = vmatprep.subr.mxu0 0.0
        %2150 = vmatpush1.xpose.msra.mxu0 %v397
        %2151 = vmatprep.subr.mxu0 0.0
        %2152 = vmatpush1.xpose.msra.mxu0 %v400
        %2153 = vmatprep.subr.mxu0 0.0
        %2154 = vmatpush1.xpose.msra.mxu0 0.0
        %2155 = vmatprep.subr.mxu0 0.0
        %2156 = vmatpush1.xpose.msra.mxu0 0.0
        %2157 = vmatprep.subr.mxu0 0.0
        %2158 = vmatpush1.xpose.msra.mxu0 0.0
        %2159 = vmatprep.subr.mxu0 0.0
        %2160 = vmatpush1.xpose.msra.mxu0 0.0
        %2161 = vmatprep.subr.mxu0 0.0
        %2162 = vmatpush1.xpose.msra.mxu0 0.0
        %2163 = vmatprep.subr.mxu0 0.0
        %2164 = vmatpush1.xpose.msra.mxu0 0.0
        %2165 = vmatprep.subr.mxu0 0.0
        %2166 = vmatpush1.xpose.msra.mxu0 0.0
        %2167 = vmatprep.subr.mxu0 0.0
        %2168 = vmatpush1.xpose.msra.mxu0 0.0
        %2169 = vmatprep.subr.mxu0 0.0
        %2170 = vmatpush1.xpose.msra.mxu0 0.0
        %2171 = vmatprep.subr.mxu0 0.0
        %2172 = vmatpush1.xpose.msra.mxu0 0.0
        %2173 = vmatprep.subr.mxu0 0.0
        %2174 = vmatpush1.xpose.msra.mxu0 0.0
        %2175 = vmatprep.subr.mxu0 0.0
        %2176 = vmatpush1.xpose.msra.mxu0 0.0
        %2177 = vmatprep.subr.mxu0 0.0
        %2178 = vmatpush1.xpose.msra.mxu0 0.0
        %2179 = vmatprep.subr.mxu0 0.0
        %2180 = vmatpush1.xpose.msra.mxu0 0.0
        %2181 = vmatprep.subr.mxu0 0.0
        %2182 = vmatpush1.xpose.msra.mxu0 0.0
        %2183 = vmatprep.subr.mxu0 0.0
        %2184 = vmatpush1.xpose.msra.mxu0 0.0
        %2185 = vmatprep.subr.mxu0 0.0
        %2186 = vmatpush1.xpose.msra.mxu0 0.0
        %2187 = vmatprep.subr.mxu0 0.0
        %2188 = vmatpush1.xpose.msra.mxu0 0.0
        %2189 = vmatprep.subr.mxu0 0.0
        %2190 = vmatpush1.xpose.msra.mxu0 0.0
        %2191 = vmatprep.subr.mxu0 0.0
        %2192 = vmatpush1.xpose.msra.mxu0 0.0
        %2193 = vmatprep.subr.mxu0 0.0
        %2194 = vmatpush1.xpose.msra.mxu0 0.0
        %2195 = vmatprep.subr.mxu0 0.0
        %2196 = vmatpush1.xpose.msra.mxu0 0.0
        %2197 = vmatprep.subr.mxu0 0.0
        %2198 = vmatpush1.xpose.msra.mxu0 0.0
        %2199 = vmatprep.subr.mxu0 0.0
        %2200 = vmatpush1.xpose.msra.mxu0 0.0
        %2201 = vmatprep.subr.mxu0 0.0
        %2202 = vmatpush1.xpose.msra.mxu0 0.0
        %2203 = vmatprep.subr.mxu0 0.0
        %2204 = vmatpush1.xpose.msra.mxu0 0.0
        %2205 = vmatprep.subr.mxu0 0.0
        %2206 = vmatpush1.xpose.msra.mxu0 0.0
        %2207 = vmatprep.subr.mxu0 0.0
        %2208 = vmatpush1.xpose.msra.mxu0 0.0
        %2209 = vmatprep.subr.mxu0 0.0
        %2210 = vmatpush1.xpose.msra.mxu0 0.0
        %2211 = vmatprep.subr.mxu0 0.0
        %2212 = vmatpush1.xpose.msra.mxu0 0.0
        %2213 = vmatprep.mubr.f32.mxu0 0.0
        %2214 = vmatmul.mubr.f32.gmra.mrb[0].mxu0 %v2144
        %v2215 = vpop.f32.mrb[0].mxu0
        %v2216 = vadd.f32 0.0, %v2215
        %v2217 = vpop.f32.mrb[0].mxu0
        %2218 = vmatprep.mubr.f32.mxu0 0.0
        %2219 = vmatmul.mubr.f32.gmra.mrb[0].mxu0 %v2147
        %v2220 = vpop.f32.mrb[0].mxu0
        %v2221 = vadd.f32 0.0, %v2220
        %v2222 = vpop.f32.mrb[0].mxu0
        %2223 = vdwg.mxu0
        %v2224 = vmax.f32 %v2216, -1200.0
        %v2225 = vmax.f32 %v2221, -1200.0
        %v2226 = vmin.f32 %v2224, 1200.0
        %v2227 = vmin.f32 %v2225, 1200.0
        %v2228 = vadd.f32 %v2053, %v2226
        %v2229 = vadd.f32 %v2054, %v2227
        %v2230 = vmul.f32 %v2226, %v2226
        %v2231 = vmul.f32 %v2227, %v2227
        %v2232 = vadd.f32 %v2057, %v2230
        %v2233 = vadd.f32 %v2058, %v2231
        %s2234 = scalar_lea.vmem %s288, 160
        %2235 = vst.msk [vmem:[%s2234] sm:$0xff] %vm487, %v2226
        %2236 = vst.msk [vmem:[%s2234 + $0x8] sm:$0x3] %vm489, %v2227
        %v2237 = vld [vmem:[%s2063] sm:$0xff]
        %v2238 = vmul.f32 %v2237, 0.0
        %v2239 = vadd.f32 %v2237, %v2238
        %2240 = vmatprep.subr.mxu0 0.0
        %2241 = vmatpush1.msra.mxu0 %v2239
        %2242 = vmatprep.subr.mxu0 0.0
        %2243 = vmatpush1.msra.mxu0 0.0
        %2244 = vmatprep.subr.mxu0 0.0
        %2245 = vmatpush1.msra.mxu0 0.0
        %2246 = vmatprep.subr.mxu0 0.0
        %2247 = vmatpush1.msra.mxu0 0.0
        %2248 = vmatprep.subr.mxu0 0.0
        %2249 = vmatpush1.msra.mxu0 0.0
        %2250 = vmatprep.subr.mxu0 0.0
        %2251 = vmatpush1.msra.mxu0 0.0
        %2252 = vmatprep.subr.mxu0 0.0
        %2253 = vmatpush1.msra.mxu0 0.0
        %2254 = vmatprep.subr.mxu0 0.0
        %2255 = vmatpush1.msra.mxu0 0.0
        %2256 = vmatprep.subr.mxu0 0.0
        %2257 = vmatpush1.msra.mxu0 0.0
        %2258 = vmatprep.subr.mxu0 0.0
        %2259 = vmatpush1.msra.mxu0 0.0
        %2260 = vmatprep.subr.mxu0 0.0
        %2261 = vmatpush1.msra.mxu0 0.0
        %2262 = vmatprep.subr.mxu0 0.0
        %2263 = vmatpush1.msra.mxu0 0.0
        %2264 = vmatprep.subr.mxu0 0.0
        %2265 = vmatpush1.msra.mxu0 0.0
        %2266 = vmatprep.subr.mxu0 0.0
        %2267 = vmatpush1.msra.mxu0 0.0
        %2268 = vmatprep.subr.mxu0 0.0
        %2269 = vmatpush1.msra.mxu0 0.0
        %2270 = vmatprep.subr.mxu0 0.0
        %2271 = vmatpush1.msra.mxu0 0.0
        %2272 = vmatprep.subr.mxu0 0.0
        %2273 = vmatpush1.msra.mxu0 0.0
        %2274 = vmatprep.subr.mxu0 0.0
        %2275 = vmatpush1.msra.mxu0 0.0
        %2276 = vmatprep.subr.mxu0 0.0
        %2277 = vmatpush1.msra.mxu0 0.0
        %2278 = vmatprep.subr.mxu0 0.0
        %2279 = vmatpush1.msra.mxu0 0.0
        %2280 = vmatprep.subr.mxu0 0.0
        %2281 = vmatpush1.msra.mxu0 0.0
        %2282 = vmatprep.subr.mxu0 0.0
        %2283 = vmatpush1.msra.mxu0 0.0
        %2284 = vmatprep.subr.mxu0 0.0
        %2285 = vmatpush1.msra.mxu0 0.0
        %2286 = vmatprep.subr.mxu0 0.0
        %2287 = vmatpush1.msra.mxu0 0.0
        %2288 = vmatprep.subr.mxu0 0.0
        %2289 = vmatpush1.msra.mxu0 0.0
        %2290 = vmatprep.subr.mxu0 0.0
        %2291 = vmatpush1.msra.mxu0 0.0
        %2292 = vmatprep.subr.mxu0 0.0
        %2293 = vmatpush1.msra.mxu0 0.0
        %2294 = vmatprep.subr.mxu0 0.0
        %2295 = vmatpush1.msra.mxu0 0.0
        %2296 = vmatprep.subr.mxu0 0.0
        %2297 = vmatpush1.msra.mxu0 0.0
        %2298 = vmatprep.subr.mxu0 0.0
        %2299 = vmatpush1.msra.mxu0 0.0
        %2300 = vmatprep.subr.mxu0 0.0
        %2301 = vmatpush1.msra.mxu0 0.0
        %2302 = vmatprep.subr.mxu0 0.0
        %2303 = vmatpush1.msra.mxu0 0.0
        %2304 = vmatprep.mubr.f32.mxu0 0.0
        %2305 = vmatmul.mubr.f32.gmra.mrb[0].mxu0 %v310
        %v2306 = vpop.f32.mrb[0].mxu0
        %v2307 = vadd.f32 0.0, %v2306
        %v2308 = vpop.f32.mrb[0].mxu0
        %2309 = vmatprep.mubr.f32.mxu0 0.0
        %2310 = vmatmul.mubr.f32.gmra.mrb[0].mxu0 %v313
        %v2311 = vpop.f32.mrb[0].mxu0
        %v2312 = vadd.f32 0.0, %v2311
        %v2313 = vpop.f32.mrb[0].mxu0
        %2314 = vdwg.mxu0
        %v2316 = vsel %vm308, %v2307, 0
        %v2319 = vsel %vm308, %v2312, 0
        %2321 = vmatprep.subr.mxu0 0.0
        %2322 = vmatpush1.xpose.msra.mxu0 %v397
        %2323 = vmatprep.subr.mxu0 0.0
        %2324 = vmatpush1.xpose.msra.mxu0 %v400
        %2325 = vmatprep.subr.mxu0 0.0
        %2326 = vmatpush1.xpose.msra.mxu0 0.0
        %2327 = vmatprep.subr.mxu0 0.0
        %2328 = vmatpush1.xpose.msra.mxu0 0.0
        %2329 = vmatprep.subr.mxu0 0.0
        %2330 = vmatpush1.xpose.msra.mxu0 0.0
        %2331 = vmatprep.subr.mxu0 0.0
        %2332 = vmatpush1.xpose.msra.mxu0 0.0
        %2333 = vmatprep.subr.mxu0 0.0
        %2334 = vmatpush1.xpose.msra.mxu0 0.0
        %2335 = vmatprep.subr.mxu0 0.0
        %2336 = vmatpush1.xpose.msra.mxu0 0.0
        %2337 = vmatprep.subr.mxu0 0.0
        %2338 = vmatpush1.xpose.msra.mxu0 0.0
        %2339 = vmatprep.subr.mxu0 0.0
        %2340 = vmatpush1.xpose.msra.mxu0 0.0
        %2341 = vmatprep.subr.mxu0 0.0
        %2342 = vmatpush1.xpose.msra.mxu0 0.0
        %2343 = vmatprep.subr.mxu0 0.0
        %2344 = vmatpush1.xpose.msra.mxu0 0.0
        %2345 = vmatprep.subr.mxu0 0.0
        %2346 = vmatpush1.xpose.msra.mxu0 0.0
        %2347 = vmatprep.subr.mxu0 0.0
        %2348 = vmatpush1.xpose.msra.mxu0 0.0
        %2349 = vmatprep.subr.mxu0 0.0
        %2350 = vmatpush1.xpose.msra.mxu0 0.0
        %2351 = vmatprep.subr.mxu0 0.0
        %2352 = vmatpush1.xpose.msra.mxu0 0.0
        %2353 = vmatprep.subr.mxu0 0.0
        %2354 = vmatpush1.xpose.msra.mxu0 0.0
        %2355 = vmatprep.subr.mxu0 0.0
        %2356 = vmatpush1.xpose.msra.mxu0 0.0
        %2357 = vmatprep.subr.mxu0 0.0
        %2358 = vmatpush1.xpose.msra.mxu0 0.0
        %2359 = vmatprep.subr.mxu0 0.0
        %2360 = vmatpush1.xpose.msra.mxu0 0.0
        %2361 = vmatprep.subr.mxu0 0.0
        %2362 = vmatpush1.xpose.msra.mxu0 0.0
        %2363 = vmatprep.subr.mxu0 0.0
        %2364 = vmatpush1.xpose.msra.mxu0 0.0
        %2365 = vmatprep.subr.mxu0 0.0
        %2366 = vmatpush1.xpose.msra.mxu0 0.0
        %2367 = vmatprep.subr.mxu0 0.0
        %2368 = vmatpush1.xpose.msra.mxu0 0.0
        %2369 = vmatprep.subr.mxu0 0.0
        %2370 = vmatpush1.xpose.msra.mxu0 0.0
        %2371 = vmatprep.subr.mxu0 0.0
        %2372 = vmatpush1.xpose.msra.mxu0 0.0
        %2373 = vmatprep.subr.mxu0 0.0
        %2374 = vmatpush1.xpose.msra.mxu0 0.0
        %2375 = vmatprep.subr.mxu0 0.0
        %2376 = vmatpush1.xpose.msra.mxu0 0.0
        %2377 = vmatprep.subr.mxu0 0.0
        %2378 = vmatpush1.xpose.msra.mxu0 0.0
        %2379 = vmatprep.subr.mxu0 0.0
        %2380 = vmatpush1.xpose.msra.mxu0 0.0
        %2381 = vmatprep.subr.mxu0 0.0
        %2382 = vmatpush1.xpose.msra.mxu0 0.0
        %2383 = vmatprep.subr.mxu0 0.0
        %2384 = vmatpush1.xpose.msra.mxu0 0.0
        %2385 = vmatprep.mubr.f32.mxu0 0.0
        %2386 = vmatmul.mubr.f32.gmra.mrb[0].mxu0 %v2316
        %v2387 = vpop.f32.mrb[0].mxu0
        %v2388 = vadd.f32 0.0, %v2387
        %v2389 = vpop.f32.mrb[0].mxu0
        %2390 = vmatprep.mubr.f32.mxu0 0.0
        %2391 = vmatmul.mubr.f32.gmra.mrb[0].mxu0 %v2319
        %v2392 = vpop.f32.mrb[0].mxu0
        %v2393 = vadd.f32 0.0, %v2392
        %v2394 = vpop.f32.mrb[0].mxu0
        %2395 = vdwg.mxu0
        %v2396 = vmax.f32 %v2388, -1200.0
        %v2397 = vmax.f32 %v2393, -1200.0
        %v2398 = vmin.f32 %v2396, 1200.0
        %v2399 = vmin.f32 %v2397, 1200.0
        %v2400 = vadd.f32 %v2228, %v2398
        %v2401 = vadd.f32 %v2229, %v2399
        %v2402 = vmul.f32 %v2398, %v2398
        %v2403 = vmul.f32 %v2399, %v2399
        %v2404 = vadd.f32 %v2232, %v2402
        %v2405 = vadd.f32 %v2233, %v2403
        %s2406 = scalar_lea.vmem %s288, 176
        %2407 = vst.msk [vmem:[%s2406] sm:$0xff] %vm487, %v2398
        %2408 = vst.msk [vmem:[%s2406 + $0x8] sm:$0x3] %vm489, %v2399
        %2409 = vst.msk [vmem:[%s293] sm:$0xff] %vm487, %v2400
        %2410 = vst.msk [vmem:[%s293 + $0x8] sm:$0x3] %vm489, %v2401
        %2411 = vst.msk [vmem:[%s298] sm:$0xff] %vm487, %v2404
        %2412 = vst.msk [vmem:[%s298 + $0x8] sm:$0x3] %vm489, %v2405
        %p2413 = scmp.lt.s32.totalorder %s21, 3
        %s2414 = scalar_select %p2413, %s21, 3
        %s2415 = smul.addr %s2414, 24
        %s2416 = smul.addr %s2415, 8
        %s2417 = scalar_lea.vmem %s3, %s2416
        %p2418 = scmp.lt.s32.totalorder %s21, 3
        %s2419 = scalar_select %p2418, %s21, 3
        %s2420 = smul.addr %s2419, 2
        %s2421 = smul.addr %s2420, 8
        %s2422 = scalar_lea.vmem %s4, %s2421
        %p2423 = scmp.lt.s32.totalorder %s21, 3
        %s2424 = scalar_select %p2423, %s21, 3
        %s2425 = smul.addr %s2424, 2
        %s2426 = smul.addr %s2425, 8
        %s2427 = scalar_lea.vmem %s5, %s2426
        // Predicated region
        $region45: #{input_forward.2} parent=31 // pred_check
          %p2428 = pneg %p107
        $region46: #{input_forward.2} parent=31 // pred_check_branch
          %2430 = sbr.rel (%p2428) target = $region48
        $region47: #{input_forward.2} parent=31 // pred_region
          _
        $region48: #{input_forward.2} parent=31 // pred_fallthru
          _
        // Predicated region
        $region49: #{input_forward.2} parent=31 // pred_check
          %p2431 = pneg %p133
        $region50: #{input_forward.2} parent=31 // pred_check_branch
          %2433 = sbr.rel (%p2431) target = $region52
        $region51: #{input_forward.2} parent=31 // pred_region
          _
        $region52: #{input_forward.2} parent=31 // pred_fallthru
          _
        // Predicated region
        $region53: #{input_forward.2} parent=31 // pred_check
          %p2434 = pneg %p159
        $region54: #{input_forward.2} parent=31 // pred_check_branch
          %2436 = sbr.rel (%p2434) target = $region56
        $region55: #{input_forward.2} parent=31 // pred_region
          _
        $region56: #{input_forward.2} parent=31 // pred_fallthru
          _
      $region32: #{input_forward.2} parent=5 // pred_fallthru
        _
      %p2437 = scmp.le.s32.totalorder 2, %s16
      // Predicated region
      $region57: #{input_forward.2} parent=5 // pred_check
        %p2438 = pneg %p2437
      $region58: #{input_forward.2} parent=5 // pred_check_branch
        %2440 = sbr.rel (%p2438) target = $region60
      $region59: #{input_forward.2} parent=5 // pred_region
        %s2441 = ssub.s32 %s16, 2
        // Predicated region
        $region61: #{input_forward.2} parent=59 // pred_check
          %p2442 = pneg %p113
        $region62: #{input_forward.2} parent=59 // pred_check_branch
          %2444 = sbr.rel (%p2442) target = $region64
        $region63: #{input_forward.2} parent=59 // pred_region
          %p2445 = scmp.lt.s32.totalorder %s22, 3
          %s2446 = scalar_select %p2445, %s22, 3
          %s2447 = smul.addr %s2446, 24
          %s2448 = smul.addr %s2447, 8
          %s2449 = scalar_lea.vmem %s3, %s2448
        $region64: #{input_forward.2} parent=59 // pred_fallthru
          _
        // Predicated region
        $region65: #{input_forward.2} parent=59 // pred_check
          %p2450 = pneg %p139
        $region66: #{input_forward.2} parent=59 // pred_check_branch
          %2452 = sbr.rel (%p2450) target = $region68
        $region67: #{input_forward.2} parent=59 // pred_region
          %p2453 = scmp.lt.s32.totalorder %s22, 3
          %s2454 = scalar_select %p2453, %s22, 3
          %s2455 = smul.addr %s2454, 2
          %s2456 = smul.addr %s2455, 8
          %s2457 = scalar_lea.vmem %s4, %s2456
        $region68: #{input_forward.2} parent=59 // pred_fallthru
          _
        // Predicated region
        $region69: #{input_forward.2} parent=59 // pred_check
          %p2458 = pneg %p165
        $region70: #{input_forward.2} parent=59 // pred_check_branch
          %2460 = sbr.rel (%p2458) target = $region72
        $region71: #{input_forward.2} parent=59 // pred_region
          %p2461 = scmp.lt.s32.totalorder %s22, 3
          %s2462 = scalar_select %p2461, %s22, 3
          %s2463 = smul.addr %s2462, 2
          %s2464 = smul.addr %s2463, 8
          %s2465 = scalar_lea.vmem %s5, %s2464
        $region72: #{input_forward.2} parent=59 // pred_fallthru
          _
      $region60: #{input_forward.2} parent=5 // pred_fallthru
        _
    $region6: #{input_forward.2} parent=1 // loop_footer
      %s20 = sadd.s32 1, %s16
    $region7: #{input_forward.2} parent=1 // loop_footer_branch
      %15 = sbr.rel target = $region3
    $region8: #{input_forward.2} parent=1 // loop_exit
      _
    %2466 = vsyncpa [#allocation3], 1
    %s2467 = scalar_lea.sflag [#allocation3], 1
    %2468 = vsyncpa %s2467, 1
    %2469 = vsyncpa [#allocation5], 1

</llo_original>
